<compile_context>
chip_gen: v6e
topology: v6e:2x2x1
jax: 0.10.0
libtpu: 0.0.40
codegen_flags: <defaults>
</compile_context>

<pallas_src>
import jax
import jax.numpy as jnp
from jax.experimental import pallas as pl
from jax.experimental.pallas import tpu as pltpu


# ----------------------------------------------------------------------- kernel code

def _lstm_cell(pre, h, c, whh):
    """One LSTM cell update. `pre` already contains x @ W_ih^T + (b_ih + b_hh)."""
    H = h.shape[-1]
    gates = pre + jnp.dot(h, whh, preferred_element_type=jnp.float32)
    # Two full-width activation passes (4H lanes == one vreg span at H=32),
    # sliced afterwards.
    sig = jax.nn.sigmoid(gates)
    tah = jnp.tanh(gates)
    i = sig[:, 0:H]
    f = sig[:, H:2 * H]
    g = tah[:, 2 * H:3 * H]
    o = sig[:, 3 * H:4 * H]
    c_new = f * c + i * g
    h_new = o * jnp.tanh(c_new)
    return h_new, c_new


def _track_res_kernel(enc_pos_ref, enc_sal_ref, dec_pos_ref, dec_sal_ref,
                      pe_wih, pe_whh, pe_b,
                      se_wih, se_whh, se_b,
                      fe_wih_s, fe_wih_p, fe_whh, fe_b,
                      pd_wih, pd_whh, pd_b,
                      sd_wih, sd_whh, sd_b,
                      fd_wih_s, fd_wih_p, fd_whh, fd_b,
                      po_w, fold_w, out_b,
                      out_ref):
    f32 = jnp.float32
    B = dec_pos_ref.shape[0]
    M = enc_pos_ref.shape[0] // B           # M_WINDOW
    Hw = dec_sal_ref.shape[0] // B          # H_WINDOW
    H = pe_whh.shape[0]

    def slab(x2d, t, T):
        """Rows {b*T + t} of a (B*T, F) time-batched array -> (B, F)."""
        rows = [x2d[b * T + t:b * T + t + 1, :] for b in range(B)]
        return rows[0] if B == 1 else jnp.concatenate(rows, axis=0)

    # -------- hoisted, time-batched input projections (biases folded in) ----------
    pre_pos = jnp.dot(enc_pos_ref[...], pe_wih[...],
                      preferred_element_type=f32) + pe_b[...]       # (B*M, 4H)
    pre_sal = jnp.dot(enc_sal_ref[...], se_wih[...],
                      preferred_element_type=f32) + se_b[...]       # (B*M, 4H)
    pre_dsal = jnp.dot(dec_sal_ref[...], sd_wih[...],
                       preferred_element_type=f32) + sd_b[...]      # (B*Hw, 4H)

    pe_whh_v = pe_whh[...]
    se_whh_v = se_whh[...]
    fe_whh_v = fe_whh[...]
    fe_wih_s_v = fe_wih_s[...]
    fe_wih_p_v = fe_wih_p[...]
    fe_b_v = fe_b[...]

    zero = jnp.zeros((B, H), f32)
    h1, c1 = zero, zero   # sense_pos_enc -> sense_pos_dec state
    h2, c2 = zero, zero   # sense_sal_enc -> sense_sal_dec state
    hf, cf = zero, zero   # fuse_1_enc   -> fuse_1_dec   state

    # -------- encoder: three LSTMs in lock-step; sequences never materialize ------
    for t in range(M):
        h1, c1 = _lstm_cell(slab(pre_pos, t, M), h1, c1, pe_whh_v)
        h2, c2 = _lstm_cell(slab(pre_sal, t, M), h2, c2, se_whh_v)
        f_pre = (jnp.dot(h2, fe_wih_s_v, preferred_element_type=f32)
                 + jnp.dot(h1, fe_wih_p_v, preferred_element_type=f32)
                 + fe_b_v)
        hf, cf = _lstm_cell(f_pre, hf, cf, fe_whh_v)

    # -------- decoder saliency branch (independent of position feedback) ----------
    sd_whh_v = sd_whh[...]
    fd_wih_s_v = fd_wih_s[...]
    fd_b_v = fd_b[...]
    fuse_sal_pre = []
    for t in range(Hw):
        h2, c2 = _lstm_cell(slab(pre_dsal, t, Hw), h2, c2, sd_whh_v)
        fuse_sal_pre.append(
            jnp.dot(h2, fd_wih_s_v, preferred_element_type=f32) + fd_b_v)

    # -------- autoregressive decoder feedback loop ---------------------------------
    pd_wih_v = pd_wih[...]; pd_whh_v = pd_whh[...]; pd_b_v = pd_b[...]
    fd_wih_p_v = fd_wih_p[...]; fd_whh_v = fd_whh[...]
    po_w_v = po_w[...]
    fold_w_v = fold_w[...]      # fuse_2 ∘ fc_layer_out folded to one (H, 3) weight
    out_b_v = out_b[...]        # fc_pos_only.b + fuse_2.b @ fc_out.W + fc_out.b

    inp = dec_pos_ref[...]                                           # (B, 3)
    for t in range(Hw):
        # sense_pos_dec (seq len 1)
        p_pre = jnp.dot(inp, pd_wih_v, preferred_element_type=f32) + pd_b_v
        h1, c1 = _lstm_cell(p_pre, h1, c1, pd_whh_v)

        # fuse_1_dec on cat([sal_hidden, pos_hidden]); the saliency half was
        # precomputed above, so only the pos half sits on the feedback path.
        f_pre = fuse_sal_pre[t] + jnp.dot(h1, fd_wih_p_v,
                                          preferred_element_type=f32)
        hf, cf = _lstm_cell(f_pre, hf, cf, fd_whh_v)

        # pred = toPosition([toPosition([inp, fc_pos_only(h1)]), fc_out(fuse_2(hf))])
        #      = inp + h1 @ W_po + hf @ (W_f2 @ W_out) + merged_bias
        # TODO(synk): toPosition implemented as a residual add; the original TRACK
        #             toPosition re-normalizes onto the unit sphere (not provided).
        pred = (inp
                + jnp.dot(h1, po_w_v, preferred_element_type=f32)
                + jnp.dot(hf, fold_w_v, preferred_element_type=f32)
                + out_b_v)

        out_ref[:, t * 3:(t + 1) * 3] = pred                         # lane-packed
        inp = pred


# ----------------------------------------------------------------------- wrapper

def _vmem_spec():
    return pl.BlockSpec(memory_space=pltpu.MemorySpace.VMEM)


def track_res_forward(params, enc_pos, enc_sal, dec_pos, dec_sal):
    """Mirrors TRACKResModel.forward.
    enc_pos: (B, M, 3), enc_sal: (B, M, h, w), dec_pos: (B, 1, 3),
    dec_sal: (B, Hw, h, w).  Returns (B, Hw, 3)."""
    B, M, _ = enc_pos.shape
    Hw = dec_sal.shape[1]
    SAL = enc_sal.shape[2] * enc_sal.shape[3]

    pe, se, fe = params["pos_enc"], params["sal_enc"], params["fuse_enc"]
    pd, sd, fd = params["pos_dec"], params["sal_dec"], params["fuse_dec"]
    po, f2, fo = params["fc_pos_only"], params["fuse_2"], params["fc_out"]

    # Host-side algebraic fold of fuse_2 -> fc_layer_out (exact up to f32 rounding):
    #   out_res = (hf @ W_f2 + b_f2) @ W_out + b_out = hf @ (W_f2 @ W_out) + b'
    # and merge that bias with fc_pos_only's bias so the kernel's per-step epilogue
    # is just three adds + two narrow matmuls.
    hp = jax.lax.Precision.HIGHEST
    fold_w = jnp.dot(f2["w"], fo["w"], precision=hp)                         # (H, 3)
    out_b = po["b"] + jnp.dot(f2["b"], fo["w"], precision=hp) + fo["b"]      # (1, 3)

    args = (
        # contiguous (free) reshapes only — no host-side transposes
        enc_pos.reshape(B * M, 3),
        enc_sal.reshape(B * M, SAL),
        dec_pos.reshape(B, 3),
        dec_sal.reshape(B * Hw, SAL),
        pe["wih"], pe["whh"], pe["b"],
        se["wih"], se["whh"], se["b"],
        fe["wih_sal"], fe["wih_pos"], fe["whh"], fe["b"],
        pd["wih"], pd["whh"], pd["b"],
        sd["wih"], sd["whh"], sd["b"],
        fd["wih_sal"], fd["wih_pos"], fd["whh"], fd["b"],
        po["w"], fold_w, out_b,
    )
    out2d = pl.pallas_call(
        _track_res_kernel,
        out_shape=jax.ShapeDtypeStruct((B, Hw * 3), jnp.float32),
        in_specs=[_vmem_spec() for _ in args],
        out_specs=_vmem_spec(),
        # TODO(synk): at real saliency resolutions / batch sizes, tile the saliency
        # streams over time with a grid + BlockSpec and set vmem_limit_bytes
        # (v7x has 64 MiB VMEM); at these sizes everything fits whole.
    )(*args)
    return out2d.reshape(B, Hw, 3)


# ----------------------------------------------------------------------- parameters

def _init_lstm(key, in_size, hidden):
    k = 1.0 / jnp.sqrt(hidden)
    k1, k2, k3, k4 = jax.random.split(key, 4)
    w_ih = jax.random.uniform(k1, (4 * hidden, in_size), jnp.float32, -k, k)
    w_hh = jax.random.uniform(k2, (4 * hidden, hidden), jnp.float32, -k, k)
    b_ih = jax.random.uniform(k3, (4 * hidden,), jnp.float32, -k, k)
    b_hh = jax.random.uniform(k4, (4 * hidden,), jnp.float32, -k, k)
    return {"wih": w_ih.T, "whh": w_hh.T, "b": (b_ih + b_hh)[None, :]}


def _init_linear(key, in_size, out_size):
    k = 1.0 / jnp.sqrt(in_size)
    k1, k2 = jax.random.split(key)
    w = jax.random.uniform(k1, (out_size, in_size), jnp.float32, -k, k)
    b = jax.random.uniform(k2, (out_size,), jnp.float32, -k, k)
    return {"w": w.T, "b": b[None, :]}


def _split_fuse(lstm_params, hidden):
    # fuse LSTM input is cat([sal_hidden, pos_hidden], -1); splitting W_ih rows
    # lets the kernel avoid the concat entirely.
    return {"wih_sal": lstm_params["wih"][:hidden],
            "wih_pos": lstm_params["wih"][hidden:],
            "whh": lstm_params["whh"], "b": lstm_params["b"]}


def init_params(key, salmap_shape, hidden):
    sal = salmap_shape[0] * salmap_shape[1]
    ks = jax.random.split(key, 9)
    return {
        "pos_enc": _init_lstm(ks[0], 3, hidden),
        "sal_enc": _init_lstm(ks[1], sal, hidden),
        "fuse_enc": _split_fuse(_init_lstm(ks[2], 2 * hidden, hidden), hidden),
        "pos_dec": _init_lstm(ks[3], 3, hidden),
        "sal_dec": _init_lstm(ks[4], sal, hidden),
        "fuse_dec": _split_fuse(_init_lstm(ks[5], 2 * hidden, hidden), hidden),
        "fuse_2": _init_linear(ks[6], hidden, hidden),
        "fc_out": _init_linear(ks[7], hidden, 3),
        "fc_pos_only": _init_linear(ks[8], hidden, 3),
    }


# ----------------------------------------------------------------------- reference

def _ref_lstm_step(x, h, c, wih, whh, b):
    hp = jax.lax.Precision.HIGHEST
    gates = jnp.dot(x, wih, precision=hp) + jnp.dot(h, whh, precision=hp) + b
    H = h.shape[-1]
    i = jax.nn.sigmoid(gates[:, :H])
    f = jax.nn.sigmoid(gates[:, H:2 * H])
    g = jnp.tanh(gates[:, 2 * H:3 * H])
    o = jax.nn.sigmoid(gates[:, 3 * H:])
    c = f * c + i * g
    h = o * jnp.tanh(c)
    return h, c


def track_res_reference(params, enc_pos, enc_sal, dec_pos, dec_sal):
    """Pure-JAX mirror of TRACKResModel.forward (correctness check)."""
    hp = jax.lax.Precision.HIGHEST
    B, M, _ = enc_pos.shape
    Hw = dec_sal.shape[1]
    SAL = enc_sal.shape[2] * enc_sal.shape[3]
    H = params["pos_enc"]["whh"].shape[0]
    zero = jnp.zeros((B, H), jnp.float32)

    pe, se, fe = params["pos_enc"], params["sal_enc"], params["fuse_enc"]
    pd, sd, fd = params["pos_dec"], params["sal_dec"], params["fuse_dec"]
    po, f2, fo = params["fc_pos_only"], params["fuse_2"], params["fc_out"]
    fe_wih = jnp.concatenate([fe["wih_sal"], fe["wih_pos"]], axis=0)
    fd_wih = jnp.concatenate([fd["wih_sal"], fd["wih_pos"]], axis=0)

    enc_sal_f = enc_sal.reshape(B, M, SAL)
    h1 = c1 = h2 = c2 = hf = cf = zero
    for t in range(M):
        h1, c1 = _ref_lstm_step(enc_pos[:, t], h1, c1, pe["wih"], pe["whh"], pe["b"])
        h2, c2 = _ref_lstm_step(enc_sal_f[:, t], h2, c2, se["wih"], se["whh"], se["b"])
        conc = jnp.concatenate([h2, h1], axis=-1)
        hf, cf = _ref_lstm_step(conc, hf, cf, fe_wih, fe["whh"], fe["b"])

    dec_sal_f = dec_sal.reshape(B, Hw, SAL)
    inp = dec_pos[:, 0]
    preds = []
    for t in range(Hw):
        h1, c1 = _ref_lstm_step(inp, h1, c1, pd["wih"], pd["whh"], pd["b"])
        out_pos_only = inp + (jnp.dot(h1, po["w"], precision=hp) + po["b"])
        h2, c2 = _ref_lstm_step(dec_sal_f[:, t], h2, c2, sd["wih"], sd["whh"], sd["b"])
        conc = jnp.concatenate([h2, h1], axis=-1)
        hf, cf = _ref_lstm_step(conc, hf, cf, fd_wih, fd["whh"], fd["b"])
        fuse2 = jnp.dot(hf, f2["w"], precision=hp) + f2["b"]
        out_res = jnp.dot(fuse2, fo["w"], precision=hp) + fo["b"]
        pred = out_pos_only + out_res
        preds.append(pred)
        inp = pred
    return jnp.stack(preds, axis=1)


# ----------------------------------------------------------------------- main

if __name__ == "__main__":
    B = 2
    M_WINDOW = 4
    H_WINDOW = 4
    SAL_H, SAL_W = 8, 8
    HIDDEN = 32

    root = jax.random.PRNGKey(0)
    kp, kd = jax.random.split(root)
    params = init_params(kp, (SAL_H, SAL_W), HIDDEN)

    k1, k2, k3, k4 = jax.random.split(kd, 4)
    enc_pos = jax.random.normal(k1, (B, M_WINDOW, 3), jnp.float32)
    enc_sal = jax.random.uniform(k2, (B, M_WINDOW, SAL_H, SAL_W), jnp.float32)
    dec_pos = jax.random.normal(k3, (B, 1, 3), jnp.float32)
    dec_sal = jax.random.uniform(k4, (B, H_WINDOW, SAL_H, SAL_W), jnp.float32)

    fwd = jax.jit(track_res_forward)
    out = jax.block_until_ready(fwd(params, enc_pos, enc_sal, dec_pos, dec_sal))

    assert out.shape == (B, H_WINDOW, 3), out.shape
    assert bool(jnp.all(jnp.isfinite(out)))

    ref = jax.jit(track_res_reference)(params, enc_pos, enc_sal, dec_pos, dec_sal)
    max_err = float(jnp.max(jnp.abs(out - ref)))
    assert max_err < 2e-2, max_err

    print("KERNEL_OK")
</pallas_src>

<mosaic_0001>
module attributes {stable_mosaic.version = 11 : i64} {
  func.func @_track_res_kernel(%arg0: memref<8x3xf32, #tpu.memory_space<vmem>>, %arg1: memref<8x64xf32, #tpu.memory_space<vmem>>, %arg2: memref<2x3xf32, #tpu.memory_space<vmem>>, %arg3: memref<8x64xf32, #tpu.memory_space<vmem>>, %arg4: memref<3x128xf32, #tpu.memory_space<vmem>>, %arg5: memref<32x128xf32, #tpu.memory_space<vmem>>, %arg6: memref<1x128xf32, #tpu.memory_space<vmem>>, %arg7: memref<64x128xf32, #tpu.memory_space<vmem>>, %arg8: memref<32x128xf32, #tpu.memory_space<vmem>>, %arg9: memref<1x128xf32, #tpu.memory_space<vmem>>, %arg10: memref<32x128xf32, #tpu.memory_space<vmem>>, %arg11: memref<32x128xf32, #tpu.memory_space<vmem>>, %arg12: memref<32x128xf32, #tpu.memory_space<vmem>>, %arg13: memref<1x128xf32, #tpu.memory_space<vmem>>, %arg14: memref<3x128xf32, #tpu.memory_space<vmem>>, %arg15: memref<32x128xf32, #tpu.memory_space<vmem>>, %arg16: memref<1x128xf32, #tpu.memory_space<vmem>>, %arg17: memref<64x128xf32, #tpu.memory_space<vmem>>, %arg18: memref<32x128xf32, #tpu.memory_space<vmem>>, %arg19: memref<1x128xf32, #tpu.memory_space<vmem>>, %arg20: memref<32x128xf32, #tpu.memory_space<vmem>>, %arg21: memref<32x128xf32, #tpu.memory_space<vmem>>, %arg22: memref<32x128xf32, #tpu.memory_space<vmem>>, %arg23: memref<1x128xf32, #tpu.memory_space<vmem>>, %arg24: memref<32x3xf32, #tpu.memory_space<vmem>>, %arg25: memref<32x3xf32, #tpu.memory_space<vmem>>, %arg26: memref<1x3xf32, #tpu.memory_space<vmem>>, %arg27: memref<2x12xf32, #tpu.memory_space<vmem>>) attributes {dimension_semantics = [], scalar_prefetch = 0 : i64, scratch_operands = 0 : i64, tpu.core_type = #tpu.core_type<tc>} {
    %c0 = arith.constant 0 : index
    %c0_0 = arith.constant 0 : index
    %0 = vector.load %arg0[%c0, %c0_0] : memref<8x3xf32, #tpu.memory_space<vmem>>, vector<8x3xf32>
    %c0_1 = arith.constant 0 : index
    %c0_2 = arith.constant 0 : index
    %1 = vector.load %arg4[%c0_1, %c0_2] : memref<3x128xf32, #tpu.memory_space<vmem>>, vector<3x128xf32>
    %cst = arith.constant dense<0.000000e+00> : vector<8x128xf32>
    %2 = tpu.matmul %0, %1, %cst {dimension_numbers = #tpu.dot_dimension_numbers<[1], [0], [0], [1], [0, 0, 1, 1], [], []>} : vector<8x3xf32>, vector<3x128xf32>, vector<8x128xf32> -> vector<8x128xf32>
    %c0_3 = arith.constant 0 : index
    %c0_4 = arith.constant 0 : index
    %3 = vector.load %arg6[%c0_3, %c0_4] : memref<1x128xf32, #tpu.memory_space<vmem>>, vector<1x128xf32>
    %4 = vector.broadcast %3 : vector<1x128xf32> to vector<8x128xf32>
    %5 = arith.addf %2, %4 : vector<8x128xf32>
    %c0_5 = arith.constant 0 : index
    %c0_6 = arith.constant 0 : index
    %6 = vector.load %arg1[%c0_5, %c0_6] : memref<8x64xf32, #tpu.memory_space<vmem>>, vector<8x64xf32>
    %c0_7 = arith.constant 0 : index
    %c0_8 = arith.constant 0 : index
    %7 = vector.load %arg7[%c0_7, %c0_8] : memref<64x128xf32, #tpu.memory_space<vmem>>, vector<64x128xf32>
    %cst_9 = arith.constant dense<0.000000e+00> : vector<8x128xf32>
    %8 = tpu.matmul %6, %7, %cst_9 {dimension_numbers = #tpu.dot_dimension_numbers<[1], [0], [0], [1], [0, 0, 1, 1], [], []>} : vector<8x64xf32>, vector<64x128xf32>, vector<8x128xf32> -> vector<8x128xf32>
    %c0_10 = arith.constant 0 : index
    %c0_11 = arith.constant 0 : index
    %9 = vector.load %arg9[%c0_10, %c0_11] : memref<1x128xf32, #tpu.memory_space<vmem>>, vector<1x128xf32>
    %10 = vector.broadcast %9 : vector<1x128xf32> to vector<8x128xf32>
    %11 = arith.addf %8, %10 : vector<8x128xf32>
    %c0_12 = arith.constant 0 : index
    %c0_13 = arith.constant 0 : index
    %12 = vector.load %arg3[%c0_12, %c0_13] : memref<8x64xf32, #tpu.memory_space<vmem>>, vector<8x64xf32>
    %c0_14 = arith.constant 0 : index
    %c0_15 = arith.constant 0 : index
    %13 = vector.load %arg17[%c0_14, %c0_15] : memref<64x128xf32, #tpu.memory_space<vmem>>, vector<64x128xf32>
    %cst_16 = arith.constant dense<0.000000e+00> : vector<8x128xf32>
    %14 = tpu.matmul %12, %13, %cst_16 {dimension_numbers = #tpu.dot_dimension_numbers<[1], [0], [0], [1], [0, 0, 1, 1], [], []>} : vector<8x64xf32>, vector<64x128xf32>, vector<8x128xf32> -> vector<8x128xf32>
    %c0_17 = arith.constant 0 : index
    %c0_18 = arith.constant 0 : index
    %15 = vector.load %arg19[%c0_17, %c0_18] : memref<1x128xf32, #tpu.memory_space<vmem>>, vector<1x128xf32>
    %16 = vector.broadcast %15 : vector<1x128xf32> to vector<8x128xf32>
    %17 = arith.addf %14, %16 : vector<8x128xf32>
    %c0_19 = arith.constant 0 : index
    %c0_20 = arith.constant 0 : index
    %18 = vector.load %arg5[%c0_19, %c0_20] : memref<32x128xf32, #tpu.memory_space<vmem>>, vector<32x128xf32>
    %c0_21 = arith.constant 0 : index
    %c0_22 = arith.constant 0 : index
    %19 = vector.load %arg8[%c0_21, %c0_22] : memref<32x128xf32, #tpu.memory_space<vmem>>, vector<32x128xf32>
    %c0_23 = arith.constant 0 : index
    %c0_24 = arith.constant 0 : index
    %20 = vector.load %arg12[%c0_23, %c0_24] : memref<32x128xf32, #tpu.memory_space<vmem>>, vector<32x128xf32>
    %c0_25 = arith.constant 0 : index
    %c0_26 = arith.constant 0 : index
    %21 = vector.load %arg10[%c0_25, %c0_26] : memref<32x128xf32, #tpu.memory_space<vmem>>, vector<32x128xf32>
    %c0_27 = arith.constant 0 : index
    %c0_28 = arith.constant 0 : index
    %22 = vector.load %arg11[%c0_27, %c0_28] : memref<32x128xf32, #tpu.memory_space<vmem>>, vector<32x128xf32>
    %c0_29 = arith.constant 0 : index
    %c0_30 = arith.constant 0 : index
    %23 = vector.load %arg13[%c0_29, %c0_30] : memref<1x128xf32, #tpu.memory_space<vmem>>, vector<1x128xf32>
    %cst_31 = arith.constant 0.000000e+00 : f32
    %24 = vector.broadcast %cst_31 : f32 to vector<2x32xf32>
    %25 = vector.extract_strided_slice %5 {offsets = [0, 0], sizes = [1, 128], strides = [1, 1]} : vector<8x128xf32> to vector<1x128xf32>
    %26 = vector.extract_strided_slice %5 {offsets = [4, 0], sizes = [1, 128], strides = [1, 1]} : vector<8x128xf32> to vector<1x128xf32>
    %27 = tpu.concatenate %25, %26 in 0 : vector<1x128xf32>, vector<1x128xf32> -> vector<2x128xf32>
    %cst_32 = arith.constant dense<0.000000e+00> : vector<2x128xf32>
    %28 = tpu.matmul %24, %18, %cst_32 {dimension_numbers = #tpu.dot_dimension_numbers<[1], [0], [0], [1], [0, 0, 1, 1], [], []>} : vector<2x32xf32>, vector<32x128xf32>, vector<2x128xf32> -> vector<2x128xf32>
    %29 = arith.addf %27, %28 : vector<2x128xf32>
    %30 = arith.negf %29 : vector<2x128xf32>
    %31 = math.exp %30 : vector<2x128xf32>
    %cst_33 = arith.constant 1.000000e+00 : f32
    %32 = vector.broadcast %cst_33 : f32 to vector<2x128xf32>
    %33 = arith.addf %32, %31 : vector<2x128xf32>
    %34 = arith.divf %32, %33 : vector<2x128xf32>
    %35 = math.tanh %29 : vector<2x128xf32>
    %36 = vector.extract_strided_slice %34 {offsets = [0, 0], sizes = [2, 32], strides = [1, 1]} : vector<2x128xf32> to vector<2x32xf32>
    %37 = vector.extract_strided_slice %34 {offsets = [0, 32], sizes = [2, 32], strides = [1, 1]} : vector<2x128xf32> to vector<2x32xf32>
    %38 = vector.extract_strided_slice %35 {offsets = [0, 64], sizes = [2, 32], strides = [1, 1]} : vector<2x128xf32> to vector<2x32xf32>
    %39 = vector.extract_strided_slice %34 {offsets = [0, 96], sizes = [2, 32], strides = [1, 1]} : vector<2x128xf32> to vector<2x32xf32>
    %40 = arith.mulf %37, %24 : vector<2x32xf32>
    %41 = arith.mulf %36, %38 : vector<2x32xf32>
    %42 = arith.addf %40, %41 : vector<2x32xf32>
    %43 = math.tanh %42 : vector<2x32xf32>
    %44 = arith.mulf %39, %43 : vector<2x32xf32>
    %45 = vector.extract_strided_slice %11 {offsets = [0, 0], sizes = [1, 128], strides = [1, 1]} : vector<8x128xf32> to vector<1x128xf32>
    %46 = vector.extract_strided_slice %11 {offsets = [4, 0], sizes = [1, 128], strides = [1, 1]} : vector<8x128xf32> to vector<1x128xf32>
    %47 = tpu.concatenate %45, %46 in 0 : vector<1x128xf32>, vector<1x128xf32> -> vector<2x128xf32>
    %cst_34 = arith.constant dense<0.000000e+00> : vector<2x128xf32>
    %48 = tpu.matmul %24, %19, %cst_34 {dimension_numbers = #tpu.dot_dimension_numbers<[1], [0], [0], [1], [0, 0, 1, 1], [], []>} : vector<2x32xf32>, vector<32x128xf32>, vector<2x128xf32> -> vector<2x128xf32>
    %49 = arith.addf %47, %48 : vector<2x128xf32>
    %50 = arith.negf %49 : vector<2x128xf32>
    %51 = math.exp %50 : vector<2x128xf32>
    %cst_35 = arith.constant 1.000000e+00 : f32
    %52 = vector.broadcast %cst_35 : f32 to vector<2x128xf32>
    %53 = arith.addf %52, %51 : vector<2x128xf32>
    %54 = arith.divf %52, %53 : vector<2x128xf32>
    %55 = math.tanh %49 : vector<2x128xf32>
    %56 = vector.extract_strided_slice %54 {offsets = [0, 0], sizes = [2, 32], strides = [1, 1]} : vector<2x128xf32> to vector<2x32xf32>
    %57 = vector.extract_strided_slice %54 {offsets = [0, 32], sizes = [2, 32], strides = [1, 1]} : vector<2x128xf32> to vector<2x32xf32>
    %58 = vector.extract_strided_slice %55 {offsets = [0, 64], sizes = [2, 32], strides = [1, 1]} : vector<2x128xf32> to vector<2x32xf32>
    %59 = vector.extract_strided_slice %54 {offsets = [0, 96], sizes = [2, 32], strides = [1, 1]} : vector<2x128xf32> to vector<2x32xf32>
    %60 = arith.mulf %57, %24 : vector<2x32xf32>
    %61 = arith.mulf %56, %58 : vector<2x32xf32>
    %62 = arith.addf %60, %61 : vector<2x32xf32>
    %63 = math.tanh %62 : vector<2x32xf32>
    %64 = arith.mulf %59, %63 : vector<2x32xf32>
    %cst_36 = arith.constant dense<0.000000e+00> : vector<2x128xf32>
    %65 = tpu.matmul %64, %21, %cst_36 {dimension_numbers = #tpu.dot_dimension_numbers<[1], [0], [0], [1], [0, 0, 1, 1], [], []>} : vector<2x32xf32>, vector<32x128xf32>, vector<2x128xf32> -> vector<2x128xf32>
    %cst_37 = arith.constant dense<0.000000e+00> : vector<2x128xf32>
    %66 = tpu.matmul %44, %22, %cst_37 {dimension_numbers = #tpu.dot_dimension_numbers<[1], [0], [0], [1], [0, 0, 1, 1], [], []>} : vector<2x32xf32>, vector<32x128xf32>, vector<2x128xf32> -> vector<2x128xf32>
    %67 = arith.addf %65, %66 : vector<2x128xf32>
    %68 = vector.broadcast %23 : vector<1x128xf32> to vector<2x128xf32>
    %69 = arith.addf %67, %68 : vector<2x128xf32>
    %cst_38 = arith.constant dense<0.000000e+00> : vector<2x128xf32>
    %70 = tpu.matmul %24, %20, %cst_38 {dimension_numbers = #tpu.dot_dimension_numbers<[1], [0], [0], [1], [0, 0, 1, 1], [], []>} : vector<2x32xf32>, vector<32x128xf32>, vector<2x128xf32> -> vector<2x128xf32>
    %71 = arith.addf %69, %70 : vector<2x128xf32>
    %72 = arith.negf %71 : vector<2x128xf32>
    %73 = math.exp %72 : vector<2x128xf32>
    %cst_39 = arith.constant 1.000000e+00 : f32
    %74 = vector.broadcast %cst_39 : f32 to vector<2x128xf32>
    %75 = arith.addf %74, %73 : vector<2x128xf32>
    %76 = arith.divf %74, %75 : vector<2x128xf32>
    %77 = math.tanh %71 : vector<2x128xf32>
    %78 = vector.extract_strided_slice %76 {offsets = [0, 0], sizes = [2, 32], strides = [1, 1]} : vector<2x128xf32> to vector<2x32xf32>
    %79 = vector.extract_strided_slice %76 {offsets = [0, 32], sizes = [2, 32], strides = [1, 1]} : vector<2x128xf32> to vector<2x32xf32>
    %80 = vector.extract_strided_slice %77 {offsets = [0, 64], sizes = [2, 32], strides = [1, 1]} : vector<2x128xf32> to vector<2x32xf32>
    %81 = vector.extract_strided_slice %76 {offsets = [0, 96], sizes = [2, 32], strides = [1, 1]} : vector<2x128xf32> to vector<2x32xf32>
    %82 = arith.mulf %79, %24 : vector<2x32xf32>
    %83 = arith.mulf %78, %80 : vector<2x32xf32>
    %84 = arith.addf %82, %83 : vector<2x32xf32>
    %85 = math.tanh %84 : vector<2x32xf32>
    %86 = arith.mulf %81, %85 : vector<2x32xf32>
    %87 = vector.extract_strided_slice %5 {offsets = [1, 0], sizes = [1, 128], strides = [1, 1]} : vector<8x128xf32> to vector<1x128xf32>
    %88 = vector.extract_strided_slice %5 {offsets = [5, 0], sizes = [1, 128], strides = [1, 1]} : vector<8x128xf32> to vector<1x128xf32>
    %89 = tpu.concatenate %87, %88 in 0 : vector<1x128xf32>, vector<1x128xf32> -> vector<2x128xf32>
    %cst_40 = arith.constant dense<0.000000e+00> : vector<2x128xf32>
    %90 = tpu.matmul %44, %18, %cst_40 {dimension_numbers = #tpu.dot_dimension_numbers<[1], [0], [0], [1], [0, 0, 1, 1], [], []>} : vector<2x32xf32>, vector<32x128xf32>, vector<2x128xf32> -> vector<2x128xf32>
    %91 = arith.addf %89, %90 : vector<2x128xf32>
    %92 = arith.negf %91 : vector<2x128xf32>
    %93 = math.exp %92 : vector<2x128xf32>
    %cst_41 = arith.constant 1.000000e+00 : f32
    %94 = vector.broadcast %cst_41 : f32 to vector<2x128xf32>
    %95 = arith.addf %94, %93 : vector<2x128xf32>
    %96 = arith.divf %94, %95 : vector<2x128xf32>
    %97 = math.tanh %91 : vector<2x128xf32>
    %98 = vector.extract_strided_slice %96 {offsets = [0, 0], sizes = [2, 32], strides = [1, 1]} : vector<2x128xf32> to vector<2x32xf32>
    %99 = vector.extract_strided_slice %96 {offsets = [0, 32], sizes = [2, 32], strides = [1, 1]} : vector<2x128xf32> to vector<2x32xf32>
    %100 = vector.extract_strided_slice %97 {offsets = [0, 64], sizes = [2, 32], strides = [1, 1]} : vector<2x128xf32> to vector<2x32xf32>
    %101 = vector.extract_strided_slice %96 {offsets = [0, 96], sizes = [2, 32], strides = [1, 1]} : vector<2x128xf32> to vector<2x32xf32>
    %102 = arith.mulf %99, %42 : vector<2x32xf32>
    %103 = arith.mulf %98, %100 : vector<2x32xf32>
    %104 = arith.addf %102, %103 : vector<2x32xf32>
    %105 = math.tanh %104 : vector<2x32xf32>
    %106 = arith.mulf %101, %105 : vector<2x32xf32>
    %107 = vector.extract_strided_slice %11 {offsets = [1, 0], sizes = [1, 128], strides = [1, 1]} : vector<8x128xf32> to vector<1x128xf32>
    %108 = vector.extract_strided_slice %11 {offsets = [5, 0], sizes = [1, 128], strides = [1, 1]} : vector<8x128xf32> to vector<1x128xf32>
    %109 = tpu.concatenate %107, %108 in 0 : vector<1x128xf32>, vector<1x128xf32> -> vector<2x128xf32>
    %cst_42 = arith.constant dense<0.000000e+00> : vector<2x128xf32>
    %110 = tpu.matmul %64, %19, %cst_42 {dimension_numbers = #tpu.dot_dimension_numbers<[1], [0], [0], [1], [0, 0, 1, 1], [], []>} : vector<2x32xf32>, vector<32x128xf32>, vector<2x128xf32> -> vector<2x128xf32>
    %111 = arith.addf %109, %110 : vector<2x128xf32>
    %112 = arith.negf %111 : vector<2x128xf32>
    %113 = math.exp %112 : vector<2x128xf32>
    %cst_43 = arith.constant 1.000000e+00 : f32
    %114 = vector.broadcast %cst_43 : f32 to vector<2x128xf32>
    %115 = arith.addf %114, %113 : vector<2x128xf32>
    %116 = arith.divf %114, %115 : vector<2x128xf32>
    %117 = math.tanh %111 : vector<2x128xf32>
    %118 = vector.extract_strided_slice %116 {offsets = [0, 0], sizes = [2, 32], strides = [1, 1]} : vector<2x128xf32> to vector<2x32xf32>
    %119 = vector.extract_strided_slice %116 {offsets = [0, 32], sizes = [2, 32], strides = [1, 1]} : vector<2x128xf32> to vector<2x32xf32>
    %120 = vector.extract_strided_slice %117 {offsets = [0, 64], sizes = [2, 32], strides = [1, 1]} : vector<2x128xf32> to vector<2x32xf32>
    %121 = vector.extract_strided_slice %116 {offsets = [0, 96], sizes = [2, 32], strides = [1, 1]} : vector<2x128xf32> to vector<2x32xf32>
    %122 = arith.mulf %119, %62 : vector<2x32xf32>
    %123 = arith.mulf %118, %120 : vector<2x32xf32>
    %124 = arith.addf %122, %123 : vector<2x32xf32>
    %125 = math.tanh %124 : vector<2x32xf32>
    %126 = arith.mulf %121, %125 : vector<2x32xf32>
    %cst_44 = arith.constant dense<0.000000e+00> : vector<2x128xf32>
    %127 = tpu.matmul %126, %21, %cst_44 {dimension_numbers = #tpu.dot_dimension_numbers<[1], [0], [0], [1], [0, 0, 1, 1], [], []>} : vector<2x32xf32>, vector<32x128xf32>, vector<2x128xf32> -> vector<2x128xf32>
    %cst_45 = arith.constant dense<0.000000e+00> : vector<2x128xf32>
    %128 = tpu.matmul %106, %22, %cst_45 {dimension_numbers = #tpu.dot_dimension_numbers<[1], [0], [0], [1], [0, 0, 1, 1], [], []>} : vector<2x32xf32>, vector<32x128xf32>, vector<2x128xf32> -> vector<2x128xf32>
    %129 = arith.addf %127, %128 : vector<2x128xf32>
    %130 = vector.broadcast %23 : vector<1x128xf32> to vector<2x128xf32>
    %131 = arith.addf %129, %130 : vector<2x128xf32>
    %cst_46 = arith.constant dense<0.000000e+00> : vector<2x128xf32>
    %132 = tpu.matmul %86, %20, %cst_46 {dimension_numbers = #tpu.dot_dimension_numbers<[1], [0], [0], [1], [0, 0, 1, 1], [], []>} : vector<2x32xf32>, vector<32x128xf32>, vector<2x128xf32> -> vector<2x128xf32>
    %133 = arith.addf %131, %132 : vector<2x128xf32>
    %134 = arith.negf %133 : vector<2x128xf32>
    %135 = math.exp %134 : vector<2x128xf32>
    %cst_47 = arith.constant 1.000000e+00 : f32
    %136 = vector.broadcast %cst_47 : f32 to vector<2x128xf32>
    %137 = arith.addf %136, %135 : vector<2x128xf32>
    %138 = arith.divf %136, %137 : vector<2x128xf32>
    %139 = math.tanh %133 : vector<2x128xf32>
    %140 = vector.extract_strided_slice %138 {offsets = [0, 0], sizes = [2, 32], strides = [1, 1]} : vector<2x128xf32> to vector<2x32xf32>
    %141 = vector.extract_strided_slice %138 {offsets = [0, 32], sizes = [2, 32], strides = [1, 1]} : vector<2x128xf32> to vector<2x32xf32>
    %142 = vector.extract_strided_slice %139 {offsets = [0, 64], sizes = [2, 32], strides = [1, 1]} : vector<2x128xf32> to vector<2x32xf32>
    %143 = vector.extract_strided_slice %138 {offsets = [0, 96], sizes = [2, 32], strides = [1, 1]} : vector<2x128xf32> to vector<2x32xf32>
    %144 = arith.mulf %141, %84 : vector<2x32xf32>
    %145 = arith.mulf %140, %142 : vector<2x32xf32>
    %146 = arith.addf %144, %145 : vector<2x32xf32>
    %147 = math.tanh %146 : vector<2x32xf32>
    %148 = arith.mulf %143, %147 : vector<2x32xf32>
    %149 = vector.extract_strided_slice %5 {offsets = [2, 0], sizes = [1, 128], strides = [1, 1]} : vector<8x128xf32> to vector<1x128xf32>
    %150 = vector.extract_strided_slice %5 {offsets = [6, 0], sizes = [1, 128], strides = [1, 1]} : vector<8x128xf32> to vector<1x128xf32>
    %151 = tpu.concatenate %149, %150 in 0 : vector<1x128xf32>, vector<1x128xf32> -> vector<2x128xf32>
    %cst_48 = arith.constant dense<0.000000e+00> : vector<2x128xf32>
    %152 = tpu.matmul %106, %18, %cst_48 {dimension_numbers = #tpu.dot_dimension_numbers<[1], [0], [0], [1], [0, 0, 1, 1], [], []>} : vector<2x32xf32>, vector<32x128xf32>, vector<2x128xf32> -> vector<2x128xf32>
    %153 = arith.addf %151, %152 : vector<2x128xf32>
    %154 = arith.negf %153 : vector<2x128xf32>
    %155 = math.exp %154 : vector<2x128xf32>
    %cst_49 = arith.constant 1.000000e+00 : f32
    %156 = vector.broadcast %cst_49 : f32 to vector<2x128xf32>
    %157 = arith.addf %156, %155 : vector<2x128xf32>
    %158 = arith.divf %156, %157 : vector<2x128xf32>
    %159 = math.tanh %153 : vector<2x128xf32>
    %160 = vector.extract_strided_slice %158 {offsets = [0, 0], sizes = [2, 32], strides = [1, 1]} : vector<2x128xf32> to vector<2x32xf32>
    %161 = vector.extract_strided_slice %158 {offsets = [0, 32], sizes = [2, 32], strides = [1, 1]} : vector<2x128xf32> to vector<2x32xf32>
    %162 = vector.extract_strided_slice %159 {offsets = [0, 64], sizes = [2, 32], strides = [1, 1]} : vector<2x128xf32> to vector<2x32xf32>
    %163 = vector.extract_strided_slice %158 {offsets = [0, 96], sizes = [2, 32], strides = [1, 1]} : vector<2x128xf32> to vector<2x32xf32>
    %164 = arith.mulf %161, %104 : vector<2x32xf32>
    %165 = arith.mulf %160, %162 : vector<2x32xf32>
    %166 = arith.addf %164, %165 : vector<2x32xf32>
    %167 = math.tanh %166 : vector<2x32xf32>
    %168 = arith.mulf %163, %167 : vector<2x32xf32>
    %169 = vector.extract_strided_slice %11 {offsets = [2, 0], sizes = [1, 128], strides = [1, 1]} : vector<8x128xf32> to vector<1x128xf32>
    %170 = vector.extract_strided_slice %11 {offsets = [6, 0], sizes = [1, 128], strides = [1, 1]} : vector<8x128xf32> to vector<1x128xf32>
    %171 = tpu.concatenate %169, %170 in 0 : vector<1x128xf32>, vector<1x128xf32> -> vector<2x128xf32>
    %cst_50 = arith.constant dense<0.000000e+00> : vector<2x128xf32>
    %172 = tpu.matmul %126, %19, %cst_50 {dimension_numbers = #tpu.dot_dimension_numbers<[1], [0], [0], [1], [0, 0, 1, 1], [], []>} : vector<2x32xf32>, vector<32x128xf32>, vector<2x128xf32> -> vector<2x128xf32>
    %173 = arith.addf %171, %172 : vector<2x128xf32>
    %174 = arith.negf %173 : vector<2x128xf32>
    %175 = math.exp %174 : vector<2x128xf32>
    %cst_51 = arith.constant 1.000000e+00 : f32
    %176 = vector.broadcast %cst_51 : f32 to vector<2x128xf32>
    %177 = arith.addf %176, %175 : vector<2x128xf32>
    %178 = arith.divf %176, %177 : vector<2x128xf32>
    %179 = math.tanh %173 : vector<2x128xf32>
    %180 = vector.extract_strided_slice %178 {offsets = [0, 0], sizes = [2, 32], strides = [1, 1]} : vector<2x128xf32> to vector<2x32xf32>
    %181 = vector.extract_strided_slice %178 {offsets = [0, 32], sizes = [2, 32], strides = [1, 1]} : vector<2x128xf32> to vector<2x32xf32>
    %182 = vector.extract_strided_slice %179 {offsets = [0, 64], sizes = [2, 32], strides = [1, 1]} : vector<2x128xf32> to vector<2x32xf32>
    %183 = vector.extract_strided_slice %178 {offsets = [0, 96], sizes = [2, 32], strides = [1, 1]} : vector<2x128xf32> to vector<2x32xf32>
    %184 = arith.mulf %181, %124 : vector<2x32xf32>
    %185 = arith.mulf %180, %182 : vector<2x32xf32>
    %186 = arith.addf %184, %185 : vector<2x32xf32>
    %187 = math.tanh %186 : vector<2x32xf32>
    %188 = arith.mulf %183, %187 : vector<2x32xf32>
    %cst_52 = arith.constant dense<0.000000e+00> : vector<2x128xf32>
    %189 = tpu.matmul %188, %21, %cst_52 {dimension_numbers = #tpu.dot_dimension_numbers<[1], [0], [0], [1], [0, 0, 1, 1], [], []>} : vector<2x32xf32>, vector<32x128xf32>, vector<2x128xf32> -> vector<2x128xf32>
    %cst_53 = arith.constant dense<0.000000e+00> : vector<2x128xf32>
    %190 = tpu.matmul %168, %22, %cst_53 {dimension_numbers = #tpu.dot_dimension_numbers<[1], [0], [0], [1], [0, 0, 1, 1], [], []>} : vector<2x32xf32>, vector<32x128xf32>, vector<2x128xf32> -> vector<2x128xf32>
    %191 = arith.addf %189, %190 : vector<2x128xf32>
    %192 = vector.broadcast %23 : vector<1x128xf32> to vector<2x128xf32>
    %193 = arith.addf %191, %192 : vector<2x128xf32>
    %cst_54 = arith.constant dense<0.000000e+00> : vector<2x128xf32>
    %194 = tpu.matmul %148, %20, %cst_54 {dimension_numbers = #tpu.dot_dimension_numbers<[1], [0], [0], [1], [0, 0, 1, 1], [], []>} : vector<2x32xf32>, vector<32x128xf32>, vector<2x128xf32> -> vector<2x128xf32>
    %195 = arith.addf %193, %194 : vector<2x128xf32>
    %196 = arith.negf %195 : vector<2x128xf32>
    %197 = math.exp %196 : vector<2x128xf32>
    %cst_55 = arith.constant 1.000000e+00 : f32
    %198 = vector.broadcast %cst_55 : f32 to vector<2x128xf32>
    %199 = arith.addf %198, %197 : vector<2x128xf32>
    %200 = arith.divf %198, %199 : vector<2x128xf32>
    %201 = math.tanh %195 : vector<2x128xf32>
    %202 = vector.extract_strided_slice %200 {offsets = [0, 0], sizes = [2, 32], strides = [1, 1]} : vector<2x128xf32> to vector<2x32xf32>
    %203 = vector.extract_strided_slice %200 {offsets = [0, 32], sizes = [2, 32], strides = [1, 1]} : vector<2x128xf32> to vector<2x32xf32>
    %204 = vector.extract_strided_slice %201 {offsets = [0, 64], sizes = [2, 32], strides = [1, 1]} : vector<2x128xf32> to vector<2x32xf32>
    %205 = vector.extract_strided_slice %200 {offsets = [0, 96], sizes = [2, 32], strides = [1, 1]} : vector<2x128xf32> to vector<2x32xf32>
    %206 = arith.mulf %203, %146 : vector<2x32xf32>
    %207 = arith.mulf %202, %204 : vector<2x32xf32>
    %208 = arith.addf %206, %207 : vector<2x32xf32>
    %209 = math.tanh %208 : vector<2x32xf32>
    %210 = arith.mulf %205, %209 : vector<2x32xf32>
    %211 = vector.extract_strided_slice %5 {offsets = [3, 0], sizes = [1, 128], strides = [1, 1]} : vector<8x128xf32> to vector<1x128xf32>
    %212 = vector.extract_strided_slice %5 {offsets = [7, 0], sizes = [1, 128], strides = [1, 1]} : vector<8x128xf32> to vector<1x128xf32>
    %213 = tpu.concatenate %211, %212 in 0 : vector<1x128xf32>, vector<1x128xf32> -> vector<2x128xf32>
    %cst_56 = arith.constant dense<0.000000e+00> : vector<2x128xf32>
    %214 = tpu.matmul %168, %18, %cst_56 {dimension_numbers = #tpu.dot_dimension_numbers<[1], [0], [0], [1], [0, 0, 1, 1], [], []>} : vector<2x32xf32>, vector<32x128xf32>, vector<2x128xf32> -> vector<2x128xf32>
    %215 = arith.addf %213, %214 : vector<2x128xf32>
    %216 = arith.negf %215 : vector<2x128xf32>
    %217 = math.exp %216 : vector<2x128xf32>
    %cst_57 = arith.constant 1.000000e+00 : f32
    %218 = vector.broadcast %cst_57 : f32 to vector<2x128xf32>
    %219 = arith.addf %218, %217 : vector<2x128xf32>
    %220 = arith.divf %218, %219 : vector<2x128xf32>
    %221 = math.tanh %215 : vector<2x128xf32>
    %222 = vector.extract_strided_slice %220 {offsets = [0, 0], sizes = [2, 32], strides = [1, 1]} : vector<2x128xf32> to vector<2x32xf32>
    %223 = vector.extract_strided_slice %220 {offsets = [0, 32], sizes = [2, 32], strides = [1, 1]} : vector<2x128xf32> to vector<2x32xf32>
    %224 = vector.extract_strided_slice %221 {offsets = [0, 64], sizes = [2, 32], strides = [1, 1]} : vector<2x128xf32> to vector<2x32xf32>
    %225 = vector.extract_strided_slice %220 {offsets = [0, 96], sizes = [2, 32], strides = [1, 1]} : vector<2x128xf32> to vector<2x32xf32>
    %226 = arith.mulf %223, %166 : vector<2x32xf32>
    %227 = arith.mulf %222, %224 : vector<2x32xf32>
    %228 = arith.addf %226, %227 : vector<2x32xf32>
    %229 = math.tanh %228 : vector<2x32xf32>
    %230 = arith.mulf %225, %229 : vector<2x32xf32>
    %231 = vector.extract_strided_slice %11 {offsets = [3, 0], sizes = [1, 128], strides = [1, 1]} : vector<8x128xf32> to vector<1x128xf32>
    %232 = vector.extract_strided_slice %11 {offsets = [7, 0], sizes = [1, 128], strides = [1, 1]} : vector<8x128xf32> to vector<1x128xf32>
    %233 = tpu.concatenate %231, %232 in 0 : vector<1x128xf32>, vector<1x128xf32> -> vector<2x128xf32>
    %cst_58 = arith.constant dense<0.000000e+00> : vector<2x128xf32>
    %234 = tpu.matmul %188, %19, %cst_58 {dimension_numbers = #tpu.dot_dimension_numbers<[1], [0], [0], [1], [0, 0, 1, 1], [], []>} : vector<2x32xf32>, vector<32x128xf32>, vector<2x128xf32> -> vector<2x128xf32>
    %235 = arith.addf %233, %234 : vector<2x128xf32>
    %236 = arith.negf %235 : vector<2x128xf32>
    %237 = math.exp %236 : vector<2x128xf32>
    %cst_59 = arith.constant 1.000000e+00 : f32
    %238 = vector.broadcast %cst_59 : f32 to vector<2x128xf32>
    %239 = arith.addf %238, %237 : vector<2x128xf32>
    %240 = arith.divf %238, %239 : vector<2x128xf32>
    %241 = math.tanh %235 : vector<2x128xf32>
    %242 = vector.extract_strided_slice %240 {offsets = [0, 0], sizes = [2, 32], strides = [1, 1]} : vector<2x128xf32> to vector<2x32xf32>
    %243 = vector.extract_strided_slice %240 {offsets = [0, 32], sizes = [2, 32], strides = [1, 1]} : vector<2x128xf32> to vector<2x32xf32>
    %244 = vector.extract_strided_slice %241 {offsets = [0, 64], sizes = [2, 32], strides = [1, 1]} : vector<2x128xf32> to vector<2x32xf32>
    %245 = vector.extract_strided_slice %240 {offsets = [0, 96], sizes = [2, 32], strides = [1, 1]} : vector<2x128xf32> to vector<2x32xf32>
    %246 = arith.mulf %243, %186 : vector<2x32xf32>
    %247 = arith.mulf %242, %244 : vector<2x32xf32>
    %248 = arith.addf %246, %247 : vector<2x32xf32>
    %249 = math.tanh %248 : vector<2x32xf32>
    %250 = arith.mulf %245, %249 : vector<2x32xf32>
    %cst_60 = arith.constant dense<0.000000e+00> : vector<2x128xf32>
    %251 = tpu.matmul %250, %21, %cst_60 {dimension_numbers = #tpu.dot_dimension_numbers<[1], [0], [0], [1], [0, 0, 1, 1], [], []>} : vector<2x32xf32>, vector<32x128xf32>, vector<2x128xf32> -> vector<2x128xf32>
    %cst_61 = arith.constant dense<0.000000e+00> : vector<2x128xf32>
    %252 = tpu.matmul %230, %22, %cst_61 {dimension_numbers = #tpu.dot_dimension_numbers<[1], [0], [0], [1], [0, 0, 1, 1], [], []>} : vector<2x32xf32>, vector<32x128xf32>, vector<2x128xf32> -> vector<2x128xf32>
    %253 = arith.addf %251, %252 : vector<2x128xf32>
    %254 = vector.broadcast %23 : vector<1x128xf32> to vector<2x128xf32>
    %255 = arith.addf %253, %254 : vector<2x128xf32>
    %cst_62 = arith.constant dense<0.000000e+00> : vector<2x128xf32>
    %256 = tpu.matmul %210, %20, %cst_62 {dimension_numbers = #tpu.dot_dimension_numbers<[1], [0], [0], [1], [0, 0, 1, 1], [], []>} : vector<2x32xf32>, vector<32x128xf32>, vector<2x128xf32> -> vector<2x128xf32>
    %257 = arith.addf %255, %256 : vector<2x128xf32>
    %258 = arith.negf %257 : vector<2x128xf32>
    %259 = math.exp %258 : vector<2x128xf32>
    %cst_63 = arith.constant 1.000000e+00 : f32
    %260 = vector.broadcast %cst_63 : f32 to vector<2x128xf32>
    %261 = arith.addf %260, %259 : vector<2x128xf32>
    %262 = arith.divf %260, %261 : vector<2x128xf32>
    %263 = math.tanh %257 : vector<2x128xf32>
    %264 = vector.extract_strided_slice %262 {offsets = [0, 0], sizes = [2, 32], strides = [1, 1]} : vector<2x128xf32> to vector<2x32xf32>
    %265 = vector.extract_strided_slice %262 {offsets = [0, 32], sizes = [2, 32], strides = [1, 1]} : vector<2x128xf32> to vector<2x32xf32>
    %266 = vector.extract_strided_slice %263 {offsets = [0, 64], sizes = [2, 32], strides = [1, 1]} : vector<2x128xf32> to vector<2x32xf32>
    %267 = vector.extract_strided_slice %262 {offsets = [0, 96], sizes = [2, 32], strides = [1, 1]} : vector<2x128xf32> to vector<2x32xf32>
    %268 = arith.mulf %265, %208 : vector<2x32xf32>
    %269 = arith.mulf %264, %266 : vector<2x32xf32>
    %270 = arith.addf %268, %269 : vector<2x32xf32>
    %271 = math.tanh %270 : vector<2x32xf32>
    %272 = arith.mulf %267, %271 : vector<2x32xf32>
    %c0_64 = arith.constant 0 : index
    %c0_65 = arith.constant 0 : index
    %273 = vector.load %arg18[%c0_64, %c0_65] : memref<32x128xf32, #tpu.memory_space<vmem>>, vector<32x128xf32>
    %c0_66 = arith.constant 0 : index
    %c0_67 = arith.constant 0 : index
    %274 = vector.load %arg20[%c0_66, %c0_67] : memref<32x128xf32, #tpu.memory_space<vmem>>, vector<32x128xf32>
    %c0_68 = arith.constant 0 : index
    %c0_69 = arith.constant 0 : index
    %275 = vector.load %arg23[%c0_68, %c0_69] : memref<1x128xf32, #tpu.memory_space<vmem>>, vector<1x128xf32>
    %276 = vector.extract_strided_slice %17 {offsets = [0, 0], sizes = [1, 128], strides = [1, 1]} : vector<8x128xf32> to vector<1x128xf32>
    %277 = vector.extract_strided_slice %17 {offsets = [4, 0], sizes = [1, 128], strides = [1, 1]} : vector<8x128xf32> to vector<1x128xf32>
    %278 = tpu.concatenate %276, %277 in 0 : vector<1x128xf32>, vector<1x128xf32> -> vector<2x128xf32>
    %cst_70 = arith.constant dense<0.000000e+00> : vector<2x128xf32>
    %279 = tpu.matmul %250, %273, %cst_70 {dimension_numbers = #tpu.dot_dimension_numbers<[1], [0], [0], [1], [0, 0, 1, 1], [], []>} : vector<2x32xf32>, vector<32x128xf32>, vector<2x128xf32> -> vector<2x128xf32>
    %280 = arith.addf %278, %279 : vector<2x128xf32>
    %281 = arith.negf %280 : vector<2x128xf32>
    %282 = math.exp %281 : vector<2x128xf32>
    %cst_71 = arith.constant 1.000000e+00 : f32
    %283 = vector.broadcast %cst_71 : f32 to vector<2x128xf32>
    %284 = arith.addf %283, %282 : vector<2x128xf32>
    %285 = arith.divf %283, %284 : vector<2x128xf32>
    %286 = math.tanh %280 : vector<2x128xf32>
    %287 = vector.extract_strided_slice %285 {offsets = [0, 0], sizes = [2, 32], strides = [1, 1]} : vector<2x128xf32> to vector<2x32xf32>
    %288 = vector.extract_strided_slice %285 {offsets = [0, 32], sizes = [2, 32], strides = [1, 1]} : vector<2x128xf32> to vector<2x32xf32>
    %289 = vector.extract_strided_slice %286 {offsets = [0, 64], sizes = [2, 32], strides = [1, 1]} : vector<2x128xf32> to vector<2x32xf32>
    %290 = vector.extract_strided_slice %285 {offsets = [0, 96], sizes = [2, 32], strides = [1, 1]} : vector<2x128xf32> to vector<2x32xf32>
    %291 = arith.mulf %288, %248 : vector<2x32xf32>
    %292 = arith.mulf %287, %289 : vector<2x32xf32>
    %293 = arith.addf %291, %292 : vector<2x32xf32>
    %294 = math.tanh %293 : vector<2x32xf32>
    %295 = arith.mulf %290, %294 : vector<2x32xf32>
    %cst_72 = arith.constant dense<0.000000e+00> : vector<2x128xf32>
    %296 = tpu.matmul %295, %274, %cst_72 {dimension_numbers = #tpu.dot_dimension_numbers<[1], [0], [0], [1], [0, 0, 1, 1], [], []>} : vector<2x32xf32>, vector<32x128xf32>, vector<2x128xf32> -> vector<2x128xf32>
    %297 = vector.broadcast %275 : vector<1x128xf32> to vector<2x128xf32>
    %298 = arith.addf %296, %297 : vector<2x128xf32>
    %299 = vector.extract_strided_slice %17 {offsets = [1, 0], sizes = [1, 128], strides = [1, 1]} : vector<8x128xf32> to vector<1x128xf32>
    %300 = vector.extract_strided_slice %17 {offsets = [5, 0], sizes = [1, 128], strides = [1, 1]} : vector<8x128xf32> to vector<1x128xf32>
    %301 = tpu.concatenate %299, %300 in 0 : vector<1x128xf32>, vector<1x128xf32> -> vector<2x128xf32>
    %cst_73 = arith.constant dense<0.000000e+00> : vector<2x128xf32>
    %302 = tpu.matmul %295, %273, %cst_73 {dimension_numbers = #tpu.dot_dimension_numbers<[1], [0], [0], [1], [0, 0, 1, 1], [], []>} : vector<2x32xf32>, vector<32x128xf32>, vector<2x128xf32> -> vector<2x128xf32>
    %303 = arith.addf %301, %302 : vector<2x128xf32>
    %304 = arith.negf %303 : vector<2x128xf32>
    %305 = math.exp %304 : vector<2x128xf32>
    %cst_74 = arith.constant 1.000000e+00 : f32
    %306 = vector.broadcast %cst_74 : f32 to vector<2x128xf32>
    %307 = arith.addf %306, %305 : vector<2x128xf32>
    %308 = arith.divf %306, %307 : vector<2x128xf32>
    %309 = math.tanh %303 : vector<2x128xf32>
    %310 = vector.extract_strided_slice %308 {offsets = [0, 0], sizes = [2, 32], strides = [1, 1]} : vector<2x128xf32> to vector<2x32xf32>
    %311 = vector.extract_strided_slice %308 {offsets = [0, 32], sizes = [2, 32], strides = [1, 1]} : vector<2x128xf32> to vector<2x32xf32>
    %312 = vector.extract_strided_slice %309 {offsets = [0, 64], sizes = [2, 32], strides = [1, 1]} : vector<2x128xf32> to vector<2x32xf32>
    %313 = vector.extract_strided_slice %308 {offsets = [0, 96], sizes = [2, 32], strides = [1, 1]} : vector<2x128xf32> to vector<2x32xf32>
    %314 = arith.mulf %311, %293 : vector<2x32xf32>
    %315 = arith.mulf %310, %312 : vector<2x32xf32>
    %316 = arith.addf %314, %315 : vector<2x32xf32>
    %317 = math.tanh %316 : vector<2x32xf32>
    %318 = arith.mulf %313, %317 : vector<2x32xf32>
    %cst_75 = arith.constant dense<0.000000e+00> : vector<2x128xf32>
    %319 = tpu.matmul %318, %274, %cst_75 {dimension_numbers = #tpu.dot_dimension_numbers<[1], [0], [0], [1], [0, 0, 1, 1], [], []>} : vector<2x32xf32>, vector<32x128xf32>, vector<2x128xf32> -> vector<2x128xf32>
    %320 = vector.broadcast %275 : vector<1x128xf32> to vector<2x128xf32>
    %321 = arith.addf %319, %320 : vector<2x128xf32>
    %322 = vector.extract_strided_slice %17 {offsets = [2, 0], sizes = [1, 128], strides = [1, 1]} : vector<8x128xf32> to vector<1x128xf32>
    %323 = vector.extract_strided_slice %17 {offsets = [6, 0], sizes = [1, 128], strides = [1, 1]} : vector<8x128xf32> to vector<1x128xf32>
    %324 = tpu.concatenate %322, %323 in 0 : vector<1x128xf32>, vector<1x128xf32> -> vector<2x128xf32>
    %cst_76 = arith.constant dense<0.000000e+00> : vector<2x128xf32>
    %325 = tpu.matmul %318, %273, %cst_76 {dimension_numbers = #tpu.dot_dimension_numbers<[1], [0], [0], [1], [0, 0, 1, 1], [], []>} : vector<2x32xf32>, vector<32x128xf32>, vector<2x128xf32> -> vector<2x128xf32>
    %326 = arith.addf %324, %325 : vector<2x128xf32>
    %327 = arith.negf %326 : vector<2x128xf32>
    %328 = math.exp %327 : vector<2x128xf32>
    %cst_77 = arith.constant 1.000000e+00 : f32
    %329 = vector.broadcast %cst_77 : f32 to vector<2x128xf32>
    %330 = arith.addf %329, %328 : vector<2x128xf32>
    %331 = arith.divf %329, %330 : vector<2x128xf32>
    %332 = math.tanh %326 : vector<2x128xf32>
    %333 = vector.extract_strided_slice %331 {offsets = [0, 0], sizes = [2, 32], strides = [1, 1]} : vector<2x128xf32> to vector<2x32xf32>
    %334 = vector.extract_strided_slice %331 {offsets = [0, 32], sizes = [2, 32], strides = [1, 1]} : vector<2x128xf32> to vector<2x32xf32>
    %335 = vector.extract_strided_slice %332 {offsets = [0, 64], sizes = [2, 32], strides = [1, 1]} : vector<2x128xf32> to vector<2x32xf32>
    %336 = vector.extract_strided_slice %331 {offsets = [0, 96], sizes = [2, 32], strides = [1, 1]} : vector<2x128xf32> to vector<2x32xf32>
    %337 = arith.mulf %334, %316 : vector<2x32xf32>
    %338 = arith.mulf %333, %335 : vector<2x32xf32>
    %339 = arith.addf %337, %338 : vector<2x32xf32>
    %340 = math.tanh %339 : vector<2x32xf32>
    %341 = arith.mulf %336, %340 : vector<2x32xf32>
    %cst_78 = arith.constant dense<0.000000e+00> : vector<2x128xf32>
    %342 = tpu.matmul %341, %274, %cst_78 {dimension_numbers = #tpu.dot_dimension_numbers<[1], [0], [0], [1], [0, 0, 1, 1], [], []>} : vector<2x32xf32>, vector<32x128xf32>, vector<2x128xf32> -> vector<2x128xf32>
    %343 = vector.broadcast %275 : vector<1x128xf32> to vector<2x128xf32>
    %344 = arith.addf %342, %343 : vector<2x128xf32>
    %345 = vector.extract_strided_slice %17 {offsets = [3, 0], sizes = [1, 128], strides = [1, 1]} : vector<8x128xf32> to vector<1x128xf32>
    %346 = vector.extract_strided_slice %17 {offsets = [7, 0], sizes = [1, 128], strides = [1, 1]} : vector<8x128xf32> to vector<1x128xf32>
    %347 = tpu.concatenate %345, %346 in 0 : vector<1x128xf32>, vector<1x128xf32> -> vector<2x128xf32>
    %cst_79 = arith.constant dense<0.000000e+00> : vector<2x128xf32>
    %348 = tpu.matmul %341, %273, %cst_79 {dimension_numbers = #tpu.dot_dimension_numbers<[1], [0], [0], [1], [0, 0, 1, 1], [], []>} : vector<2x32xf32>, vector<32x128xf32>, vector<2x128xf32> -> vector<2x128xf32>
    %349 = arith.addf %347, %348 : vector<2x128xf32>
    %350 = arith.negf %349 : vector<2x128xf32>
    %351 = math.exp %350 : vector<2x128xf32>
    %cst_80 = arith.constant 1.000000e+00 : f32
    %352 = vector.broadcast %cst_80 : f32 to vector<2x128xf32>
    %353 = arith.addf %352, %351 : vector<2x128xf32>
    %354 = arith.divf %352, %353 : vector<2x128xf32>
    %355 = math.tanh %349 : vector<2x128xf32>
    %356 = vector.extract_strided_slice %354 {offsets = [0, 0], sizes = [2, 32], strides = [1, 1]} : vector<2x128xf32> to vector<2x32xf32>
    %357 = vector.extract_strided_slice %354 {offsets = [0, 32], sizes = [2, 32], strides = [1, 1]} : vector<2x128xf32> to vector<2x32xf32>
    %358 = vector.extract_strided_slice %355 {offsets = [0, 64], sizes = [2, 32], strides = [1, 1]} : vector<2x128xf32> to vector<2x32xf32>
    %359 = vector.extract_strided_slice %354 {offsets = [0, 96], sizes = [2, 32], strides = [1, 1]} : vector<2x128xf32> to vector<2x32xf32>
    %360 = arith.mulf %357, %339 : vector<2x32xf32>
    %361 = arith.mulf %356, %358 : vector<2x32xf32>
    %362 = arith.addf %360, %361 : vector<2x32xf32>
    %363 = math.tanh %362 : vector<2x32xf32>
    %364 = arith.mulf %359, %363 : vector<2x32xf32>
    %cst_81 = arith.constant dense<0.000000e+00> : vector<2x128xf32>
    %365 = tpu.matmul %364, %274, %cst_81 {dimension_numbers = #tpu.dot_dimension_numbers<[1], [0], [0], [1], [0, 0, 1, 1], [], []>} : vector<2x32xf32>, vector<32x128xf32>, vector<2x128xf32> -> vector<2x128xf32>
    %366 = vector.broadcast %275 : vector<1x128xf32> to vector<2x128xf32>
    %367 = arith.addf %365, %366 : vector<2x128xf32>
    %c0_82 = arith.constant 0 : index
    %c0_83 = arith.constant 0 : index
    %368 = vector.load %arg14[%c0_82, %c0_83] : memref<3x128xf32, #tpu.memory_space<vmem>>, vector<3x128xf32>
    %c0_84 = arith.constant 0 : index
    %c0_85 = arith.constant 0 : index
    %369 = vector.load %arg15[%c0_84, %c0_85] : memref<32x128xf32, #tpu.memory_space<vmem>>, vector<32x128xf32>
    %c0_86 = arith.constant 0 : index
    %c0_87 = arith.constant 0 : index
    %370 = vector.load %arg16[%c0_86, %c0_87] : memref<1x128xf32, #tpu.memory_space<vmem>>, vector<1x128xf32>
    %c0_88 = arith.constant 0 : index
    %c0_89 = arith.constant 0 : index
    %371 = vector.load %arg21[%c0_88, %c0_89] : memref<32x128xf32, #tpu.memory_space<vmem>>, vector<32x128xf32>
    %c0_90 = arith.constant 0 : index
    %c0_91 = arith.constant 0 : index
    %372 = vector.load %arg22[%c0_90, %c0_91] : memref<32x128xf32, #tpu.memory_space<vmem>>, vector<32x128xf32>
    %c0_92 = arith.constant 0 : index
    %c0_93 = arith.constant 0 : index
    %373 = vector.load %arg24[%c0_92, %c0_93] : memref<32x3xf32, #tpu.memory_space<vmem>>, vector<32x3xf32>
    %c0_94 = arith.constant 0 : index
    %c0_95 = arith.constant 0 : index
    %374 = vector.load %arg25[%c0_94, %c0_95] : memref<32x3xf32, #tpu.memory_space<vmem>>, vector<32x3xf32>
    %c0_96 = arith.constant 0 : index
    %c0_97 = arith.constant 0 : index
    %375 = vector.load %arg26[%c0_96, %c0_97] : memref<1x3xf32, #tpu.memory_space<vmem>>, vector<1x3xf32>
    %c0_98 = arith.constant 0 : index
    %c0_99 = arith.constant 0 : index
    %376 = vector.load %arg2[%c0_98, %c0_99] : memref<2x3xf32, #tpu.memory_space<vmem>>, vector<2x3xf32>
    %cst_100 = arith.constant dense<0.000000e+00> : vector<2x128xf32>
    %377 = tpu.matmul %376, %368, %cst_100 {dimension_numbers = #tpu.dot_dimension_numbers<[1], [0], [0], [1], [0, 0, 1, 1], [], []>} : vector<2x3xf32>, vector<3x128xf32>, vector<2x128xf32> -> vector<2x128xf32>
    %378 = vector.broadcast %370 : vector<1x128xf32> to vector<2x128xf32>
    %379 = arith.addf %377, %378 : vector<2x128xf32>
    %cst_101 = arith.constant dense<0.000000e+00> : vector<2x128xf32>
    %380 = tpu.matmul %230, %369, %cst_101 {dimension_numbers = #tpu.dot_dimension_numbers<[1], [0], [0], [1], [0, 0, 1, 1], [], []>} : vector<2x32xf32>, vector<32x128xf32>, vector<2x128xf32> -> vector<2x128xf32>
    %381 = arith.addf %379, %380 : vector<2x128xf32>
    %382 = arith.negf %381 : vector<2x128xf32>
    %383 = math.exp %382 : vector<2x128xf32>
    %cst_102 = arith.constant 1.000000e+00 : f32
    %384 = vector.broadcast %cst_102 : f32 to vector<2x128xf32>
    %385 = arith.addf %384, %383 : vector<2x128xf32>
    %386 = arith.divf %384, %385 : vector<2x128xf32>
    %387 = math.tanh %381 : vector<2x128xf32>
    %388 = vector.extract_strided_slice %386 {offsets = [0, 0], sizes = [2, 32], strides = [1, 1]} : vector<2x128xf32> to vector<2x32xf32>
    %389 = vector.extract_strided_slice %386 {offsets = [0, 32], sizes = [2, 32], strides = [1, 1]} : vector<2x128xf32> to vector<2x32xf32>
    %390 = vector.extract_strided_slice %387 {offsets = [0, 64], sizes = [2, 32], strides = [1, 1]} : vector<2x128xf32> to vector<2x32xf32>
    %391 = vector.extract_strided_slice %386 {offsets = [0, 96], sizes = [2, 32], strides = [1, 1]} : vector<2x128xf32> to vector<2x32xf32>
    %392 = arith.mulf %389, %228 : vector<2x32xf32>
    %393 = arith.mulf %388, %390 : vector<2x32xf32>
    %394 = arith.addf %392, %393 : vector<2x32xf32>
    %395 = math.tanh %394 : vector<2x32xf32>
    %396 = arith.mulf %391, %395 : vector<2x32xf32>
    %cst_103 = arith.constant dense<0.000000e+00> : vector<2x128xf32>
    %397 = tpu.matmul %396, %371, %cst_103 {dimension_numbers = #tpu.dot_dimension_numbers<[1], [0], [0], [1], [0, 0, 1, 1], [], []>} : vector<2x32xf32>, vector<32x128xf32>, vector<2x128xf32> -> vector<2x128xf32>
    %398 = arith.addf %298, %397 : vector<2x128xf32>
    %cst_104 = arith.constant dense<0.000000e+00> : vector<2x128xf32>
    %399 = tpu.matmul %272, %372, %cst_104 {dimension_numbers = #tpu.dot_dimension_numbers<[1], [0], [0], [1], [0, 0, 1, 1], [], []>} : vector<2x32xf32>, vector<32x128xf32>, vector<2x128xf32> -> vector<2x128xf32>
    %400 = arith.addf %398, %399 : vector<2x128xf32>
    %401 = arith.negf %400 : vector<2x128xf32>
    %402 = math.exp %401 : vector<2x128xf32>
    %cst_105 = arith.constant 1.000000e+00 : f32
    %403 = vector.broadcast %cst_105 : f32 to vector<2x128xf32>
    %404 = arith.addf %403, %402 : vector<2x128xf32>
    %405 = arith.divf %403, %404 : vector<2x128xf32>
    %406 = math.tanh %400 : vector<2x128xf32>
    %407 = vector.extract_strided_slice %405 {offsets = [0, 0], sizes = [2, 32], strides = [1, 1]} : vector<2x128xf32> to vector<2x32xf32>
    %408 = vector.extract_strided_slice %405 {offsets = [0, 32], sizes = [2, 32], strides = [1, 1]} : vector<2x128xf32> to vector<2x32xf32>
    %409 = vector.extract_strided_slice %406 {offsets = [0, 64], sizes = [2, 32], strides = [1, 1]} : vector<2x128xf32> to vector<2x32xf32>
    %410 = vector.extract_strided_slice %405 {offsets = [0, 96], sizes = [2, 32], strides = [1, 1]} : vector<2x128xf32> to vector<2x32xf32>
    %411 = arith.mulf %408, %270 : vector<2x32xf32>
    %412 = arith.mulf %407, %409 : vector<2x32xf32>
    %413 = arith.addf %411, %412 : vector<2x32xf32>
    %414 = math.tanh %413 : vector<2x32xf32>
    %415 = arith.mulf %410, %414 : vector<2x32xf32>
    %cst_106 = arith.constant dense<0.000000e+00> : vector<2x3xf32>
    %416 = tpu.matmul %396, %373, %cst_106 {dimension_numbers = #tpu.dot_dimension_numbers<[1], [0], [0], [1], [0, 0, 1, 1], [], []>} : vector<2x32xf32>, vector<32x3xf32>, vector<2x3xf32> -> vector<2x3xf32>
    %417 = arith.addf %376, %416 : vector<2x3xf32>
    %cst_107 = arith.constant dense<0.000000e+00> : vector<2x3xf32>
    %418 = tpu.matmul %415, %374, %cst_107 {dimension_numbers = #tpu.dot_dimension_numbers<[1], [0], [0], [1], [0, 0, 1, 1], [], []>} : vector<2x32xf32>, vector<32x3xf32>, vector<2x3xf32> -> vector<2x3xf32>
    %419 = arith.addf %417, %418 : vector<2x3xf32>
    %420 = vector.broadcast %375 : vector<1x3xf32> to vector<2x3xf32>
    %421 = arith.addf %419, %420 : vector<2x3xf32>
    %c0_108 = arith.constant 0 : index
    %c0_109 = arith.constant 0 : index
    %422 = vector.load %arg27[%c0_108, %c0_109] : memref<2x12xf32, #tpu.memory_space<vmem>>, vector<2x3xf32>
    tpu.vector_store %arg27[%c0_108, %c0_109], %421 {strides = array<i32>} : memref<2x12xf32, #tpu.memory_space<vmem>>, vector<2x3xf32>,
    %cst_110 = arith.constant dense<0.000000e+00> : vector<2x128xf32>
    %423 = tpu.matmul %421, %368, %cst_110 {dimension_numbers = #tpu.dot_dimension_numbers<[1], [0], [0], [1], [0, 0, 1, 1], [], []>} : vector<2x3xf32>, vector<3x128xf32>, vector<2x128xf32> -> vector<2x128xf32>
    %424 = vector.broadcast %370 : vector<1x128xf32> to vector<2x128xf32>
    %425 = arith.addf %423, %424 : vector<2x128xf32>
    %cst_111 = arith.constant dense<0.000000e+00> : vector<2x128xf32>
    %426 = tpu.matmul %396, %369, %cst_111 {dimension_numbers = #tpu.dot_dimension_numbers<[1], [0], [0], [1], [0, 0, 1, 1], [], []>} : vector<2x32xf32>, vector<32x128xf32>, vector<2x128xf32> -> vector<2x128xf32>
    %427 = arith.addf %425, %426 : vector<2x128xf32>
    %428 = arith.negf %427 : vector<2x128xf32>
    %429 = math.exp %428 : vector<2x128xf32>
    %cst_112 = arith.constant 1.000000e+00 : f32
    %430 = vector.broadcast %cst_112 : f32 to vector<2x128xf32>
    %431 = arith.addf %430, %429 : vector<2x128xf32>
    %432 = arith.divf %430, %431 : vector<2x128xf32>
    %433 = math.tanh %427 : vector<2x128xf32>
    %434 = vector.extract_strided_slice %432 {offsets = [0, 0], sizes = [2, 32], strides = [1, 1]} : vector<2x128xf32> to vector<2x32xf32>
    %435 = vector.extract_strided_slice %432 {offsets = [0, 32], sizes = [2, 32], strides = [1, 1]} : vector<2x128xf32> to vector<2x32xf32>
    %436 = vector.extract_strided_slice %433 {offsets = [0, 64], sizes = [2, 32], strides = [1, 1]} : vector<2x128xf32> to vector<2x32xf32>
    %437 = vector.extract_strided_slice %432 {offsets = [0, 96], sizes = [2, 32], strides = [1, 1]} : vector<2x128xf32> to vector<2x32xf32>
    %438 = arith.mulf %435, %394 : vector<2x32xf32>
    %439 = arith.mulf %434, %436 : vector<2x32xf32>
    %440 = arith.addf %438, %439 : vector<2x32xf32>
    %441 = math.tanh %440 : vector<2x32xf32>
    %442 = arith.mulf %437, %441 : vector<2x32xf32>
    %cst_113 = arith.constant dense<0.000000e+00> : vector<2x128xf32>
    %443 = tpu.matmul %442, %371, %cst_113 {dimension_numbers = #tpu.dot_dimension_numbers<[1], [0], [0], [1], [0, 0, 1, 1], [], []>} : vector<2x32xf32>, vector<32x128xf32>, vector<2x128xf32> -> vector<2x128xf32>
    %444 = arith.addf %321, %443 : vector<2x128xf32>
    %cst_114 = arith.constant dense<0.000000e+00> : vector<2x128xf32>
    %445 = tpu.matmul %415, %372, %cst_114 {dimension_numbers = #tpu.dot_dimension_numbers<[1], [0], [0], [1], [0, 0, 1, 1], [], []>} : vector<2x32xf32>, vector<32x128xf32>, vector<2x128xf32> -> vector<2x128xf32>
    %446 = arith.addf %444, %445 : vector<2x128xf32>
    %447 = arith.negf %446 : vector<2x128xf32>
    %448 = math.exp %447 : vector<2x128xf32>
    %cst_115 = arith.constant 1.000000e+00 : f32
    %449 = vector.broadcast %cst_115 : f32 to vector<2x128xf32>
    %450 = arith.addf %449, %448 : vector<2x128xf32>
    %451 = arith.divf %449, %450 : vector<2x128xf32>
    %452 = math.tanh %446 : vector<2x128xf32>
    %453 = vector.extract_strided_slice %451 {offsets = [0, 0], sizes = [2, 32], strides = [1, 1]} : vector<2x128xf32> to vector<2x32xf32>
    %454 = vector.extract_strided_slice %451 {offsets = [0, 32], sizes = [2, 32], strides = [1, 1]} : vector<2x128xf32> to vector<2x32xf32>
    %455 = vector.extract_strided_slice %452 {offsets = [0, 64], sizes = [2, 32], strides = [1, 1]} : vector<2x128xf32> to vector<2x32xf32>
    %456 = vector.extract_strided_slice %451 {offsets = [0, 96], sizes = [2, 32], strides = [1, 1]} : vector<2x128xf32> to vector<2x32xf32>
    %457 = arith.mulf %454, %413 : vector<2x32xf32>
    %458 = arith.mulf %453, %455 : vector<2x32xf32>
    %459 = arith.addf %457, %458 : vector<2x32xf32>
    %460 = math.tanh %459 : vector<2x32xf32>
    %461 = arith.mulf %456, %460 : vector<2x32xf32>
    %cst_116 = arith.constant dense<0.000000e+00> : vector<2x3xf32>
    %462 = tpu.matmul %442, %373, %cst_116 {dimension_numbers = #tpu.dot_dimension_numbers<[1], [0], [0], [1], [0, 0, 1, 1], [], []>} : vector<2x32xf32>, vector<32x3xf32>, vector<2x3xf32> -> vector<2x3xf32>
    %463 = arith.addf %421, %462 : vector<2x3xf32>
    %cst_117 = arith.constant dense<0.000000e+00> : vector<2x3xf32>
    %464 = tpu.matmul %461, %374, %cst_117 {dimension_numbers = #tpu.dot_dimension_numbers<[1], [0], [0], [1], [0, 0, 1, 1], [], []>} : vector<2x32xf32>, vector<32x3xf32>, vector<2x3xf32> -> vector<2x3xf32>
    %465 = arith.addf %463, %464 : vector<2x3xf32>
    %466 = vector.broadcast %375 : vector<1x3xf32> to vector<2x3xf32>
    %467 = arith.addf %465, %466 : vector<2x3xf32>
    %c0_118 = arith.constant 0 : index
    %c3 = arith.constant 3 : index
    %468 = vector.load %arg27[%c0_118, %c3] : memref<2x12xf32, #tpu.memory_space<vmem>>, vector<2x3xf32>
    tpu.vector_store %arg27[%c0_118, %c3], %467 {strides = array<i32>} : memref<2x12xf32, #tpu.memory_space<vmem>>, vector<2x3xf32>,
    %cst_119 = arith.constant dense<0.000000e+00> : vector<2x128xf32>
    %469 = tpu.matmul %467, %368, %cst_119 {dimension_numbers = #tpu.dot_dimension_numbers<[1], [0], [0], [1], [0, 0, 1, 1], [], []>} : vector<2x3xf32>, vector<3x128xf32>, vector<2x128xf32> -> vector<2x128xf32>
    %470 = vector.broadcast %370 : vector<1x128xf32> to vector<2x128xf32>
    %471 = arith.addf %469, %470 : vector<2x128xf32>
    %cst_120 = arith.constant dense<0.000000e+00> : vector<2x128xf32>
    %472 = tpu.matmul %442, %369, %cst_120 {dimension_numbers = #tpu.dot_dimension_numbers<[1], [0], [0], [1], [0, 0, 1, 1], [], []>} : vector<2x32xf32>, vector<32x128xf32>, vector<2x128xf32> -> vector<2x128xf32>
    %473 = arith.addf %471, %472 : vector<2x128xf32>
    %474 = arith.negf %473 : vector<2x128xf32>
    %475 = math.exp %474 : vector<2x128xf32>
    %cst_121 = arith.constant 1.000000e+00 : f32
    %476 = vector.broadcast %cst_121 : f32 to vector<2x128xf32>
    %477 = arith.addf %476, %475 : vector<2x128xf32>
    %478 = arith.divf %476, %477 : vector<2x128xf32>
    %479 = math.tanh %473 : vector<2x128xf32>
    %480 = vector.extract_strided_slice %478 {offsets = [0, 0], sizes = [2, 32], strides = [1, 1]} : vector<2x128xf32> to vector<2x32xf32>
    %481 = vector.extract_strided_slice %478 {offsets = [0, 32], sizes = [2, 32], strides = [1, 1]} : vector<2x128xf32> to vector<2x32xf32>
    %482 = vector.extract_strided_slice %479 {offsets = [0, 64], sizes = [2, 32], strides = [1, 1]} : vector<2x128xf32> to vector<2x32xf32>
    %483 = vector.extract_strided_slice %478 {offsets = [0, 96], sizes = [2, 32], strides = [1, 1]} : vector<2x128xf32> to vector<2x32xf32>
    %484 = arith.mulf %481, %440 : vector<2x32xf32>
    %485 = arith.mulf %480, %482 : vector<2x32xf32>
    %486 = arith.addf %484, %485 : vector<2x32xf32>
    %487 = math.tanh %486 : vector<2x32xf32>
    %488 = arith.mulf %483, %487 : vector<2x32xf32>
    %cst_122 = arith.constant dense<0.000000e+00> : vector<2x128xf32>
    %489 = tpu.matmul %488, %371, %cst_122 {dimension_numbers = #tpu.dot_dimension_numbers<[1], [0], [0], [1], [0, 0, 1, 1], [], []>} : vector<2x32xf32>, vector<32x128xf32>, vector<2x128xf32> -> vector<2x128xf32>
    %490 = arith.addf %344, %489 : vector<2x128xf32>
    %cst_123 = arith.constant dense<0.000000e+00> : vector<2x128xf32>
    %491 = tpu.matmul %461, %372, %cst_123 {dimension_numbers = #tpu.dot_dimension_numbers<[1], [0], [0], [1], [0, 0, 1, 1], [], []>} : vector<2x32xf32>, vector<32x128xf32>, vector<2x128xf32> -> vector<2x128xf32>
    %492 = arith.addf %490, %491 : vector<2x128xf32>
    %493 = arith.negf %492 : vector<2x128xf32>
    %494 = math.exp %493 : vector<2x128xf32>
    %cst_124 = arith.constant 1.000000e+00 : f32
    %495 = vector.broadcast %cst_124 : f32 to vector<2x128xf32>
    %496 = arith.addf %495, %494 : vector<2x128xf32>
    %497 = arith.divf %495, %496 : vector<2x128xf32>
    %498 = math.tanh %492 : vector<2x128xf32>
    %499 = vector.extract_strided_slice %497 {offsets = [0, 0], sizes = [2, 32], strides = [1, 1]} : vector<2x128xf32> to vector<2x32xf32>
    %500 = vector.extract_strided_slice %497 {offsets = [0, 32], sizes = [2, 32], strides = [1, 1]} : vector<2x128xf32> to vector<2x32xf32>
    %501 = vector.extract_strided_slice %498 {offsets = [0, 64], sizes = [2, 32], strides = [1, 1]} : vector<2x128xf32> to vector<2x32xf32>
    %502 = vector.extract_strided_slice %497 {offsets = [0, 96], sizes = [2, 32], strides = [1, 1]} : vector<2x128xf32> to vector<2x32xf32>
    %503 = arith.mulf %500, %459 : vector<2x32xf32>
    %504 = arith.mulf %499, %501 : vector<2x32xf32>
    %505 = arith.addf %503, %504 : vector<2x32xf32>
    %506 = math.tanh %505 : vector<2x32xf32>
    %507 = arith.mulf %502, %506 : vector<2x32xf32>
    %cst_125 = arith.constant dense<0.000000e+00> : vector<2x3xf32>
    %508 = tpu.matmul %488, %373, %cst_125 {dimension_numbers = #tpu.dot_dimension_numbers<[1], [0], [0], [1], [0, 0, 1, 1], [], []>} : vector<2x32xf32>, vector<32x3xf32>, vector<2x3xf32> -> vector<2x3xf32>
    %509 = arith.addf %467, %508 : vector<2x3xf32>
    %cst_126 = arith.constant dense<0.000000e+00> : vector<2x3xf32>
    %510 = tpu.matmul %507, %374, %cst_126 {dimension_numbers = #tpu.dot_dimension_numbers<[1], [0], [0], [1], [0, 0, 1, 1], [], []>} : vector<2x32xf32>, vector<32x3xf32>, vector<2x3xf32> -> vector<2x3xf32>
    %511 = arith.addf %509, %510 : vector<2x3xf32>
    %512 = vector.broadcast %375 : vector<1x3xf32> to vector<2x3xf32>
    %513 = arith.addf %511, %512 : vector<2x3xf32>
    %c0_127 = arith.constant 0 : index
    %c6 = arith.constant 6 : index
    %514 = vector.load %arg27[%c0_127, %c6] : memref<2x12xf32, #tpu.memory_space<vmem>>, vector<2x3xf32>
    tpu.vector_store %arg27[%c0_127, %c6], %513 {strides = array<i32>} : memref<2x12xf32, #tpu.memory_space<vmem>>, vector<2x3xf32>,
    %cst_128 = arith.constant dense<0.000000e+00> : vector<2x128xf32>
    %515 = tpu.matmul %513, %368, %cst_128 {dimension_numbers = #tpu.dot_dimension_numbers<[1], [0], [0], [1], [0, 0, 1, 1], [], []>} : vector<2x3xf32>, vector<3x128xf32>, vector<2x128xf32> -> vector<2x128xf32>
    %516 = vector.broadcast %370 : vector<1x128xf32> to vector<2x128xf32>
    %517 = arith.addf %515, %516 : vector<2x128xf32>
    %cst_129 = arith.constant dense<0.000000e+00> : vector<2x128xf32>
    %518 = tpu.matmul %488, %369, %cst_129 {dimension_numbers = #tpu.dot_dimension_numbers<[1], [0], [0], [1], [0, 0, 1, 1], [], []>} : vector<2x32xf32>, vector<32x128xf32>, vector<2x128xf32> -> vector<2x128xf32>
    %519 = arith.addf %517, %518 : vector<2x128xf32>
    %520 = arith.negf %519 : vector<2x128xf32>
    %521 = math.exp %520 : vector<2x128xf32>
    %cst_130 = arith.constant 1.000000e+00 : f32
    %522 = vector.broadcast %cst_130 : f32 to vector<2x128xf32>
    %523 = arith.addf %522, %521 : vector<2x128xf32>
    %524 = arith.divf %522, %523 : vector<2x128xf32>
    %525 = math.tanh %519 : vector<2x128xf32>
    %526 = vector.extract_strided_slice %524 {offsets = [0, 0], sizes = [2, 32], strides = [1, 1]} : vector<2x128xf32> to vector<2x32xf32>
    %527 = vector.extract_strided_slice %524 {offsets = [0, 32], sizes = [2, 32], strides = [1, 1]} : vector<2x128xf32> to vector<2x32xf32>
    %528 = vector.extract_strided_slice %525 {offsets = [0, 64], sizes = [2, 32], strides = [1, 1]} : vector<2x128xf32> to vector<2x32xf32>
    %529 = vector.extract_strided_slice %524 {offsets = [0, 96], sizes = [2, 32], strides = [1, 1]} : vector<2x128xf32> to vector<2x32xf32>
    %530 = arith.mulf %527, %486 : vector<2x32xf32>
    %531 = arith.mulf %526, %528 : vector<2x32xf32>
    %532 = arith.addf %530, %531 : vector<2x32xf32>
    %533 = math.tanh %532 : vector<2x32xf32>
    %534 = arith.mulf %529, %533 : vector<2x32xf32>
    %cst_131 = arith.constant dense<0.000000e+00> : vector<2x128xf32>
    %535 = tpu.matmul %534, %371, %cst_131 {dimension_numbers = #tpu.dot_dimension_numbers<[1], [0], [0], [1], [0, 0, 1, 1], [], []>} : vector<2x32xf32>, vector<32x128xf32>, vector<2x128xf32> -> vector<2x128xf32>
    %536 = arith.addf %367, %535 : vector<2x128xf32>
    %cst_132 = arith.constant dense<0.000000e+00> : vector<2x128xf32>
    %537 = tpu.matmul %507, %372, %cst_132 {dimension_numbers = #tpu.dot_dimension_numbers<[1], [0], [0], [1], [0, 0, 1, 1], [], []>} : vector<2x32xf32>, vector<32x128xf32>, vector<2x128xf32> -> vector<2x128xf32>
    %538 = arith.addf %536, %537 : vector<2x128xf32>
    %539 = arith.negf %538 : vector<2x128xf32>
    %540 = math.exp %539 : vector<2x128xf32>
    %cst_133 = arith.constant 1.000000e+00 : f32
    %541 = vector.broadcast %cst_133 : f32 to vector<2x128xf32>
    %542 = arith.addf %541, %540 : vector<2x128xf32>
    %543 = arith.divf %541, %542 : vector<2x128xf32>
    %544 = math.tanh %538 : vector<2x128xf32>
    %545 = vector.extract_strided_slice %543 {offsets = [0, 0], sizes = [2, 32], strides = [1, 1]} : vector<2x128xf32> to vector<2x32xf32>
    %546 = vector.extract_strided_slice %543 {offsets = [0, 32], sizes = [2, 32], strides = [1, 1]} : vector<2x128xf32> to vector<2x32xf32>
    %547 = vector.extract_strided_slice %544 {offsets = [0, 64], sizes = [2, 32], strides = [1, 1]} : vector<2x128xf32> to vector<2x32xf32>
    %548 = vector.extract_strided_slice %543 {offsets = [0, 96], sizes = [2, 32], strides = [1, 1]} : vector<2x128xf32> to vector<2x32xf32>
    %549 = arith.mulf %546, %505 : vector<2x32xf32>
    %550 = arith.mulf %545, %547 : vector<2x32xf32>
    %551 = arith.addf %549, %550 : vector<2x32xf32>
    %552 = math.tanh %551 : vector<2x32xf32>
    %553 = arith.mulf %548, %552 : vector<2x32xf32>
    %cst_134 = arith.constant dense<0.000000e+00> : vector<2x3xf32>
    %554 = tpu.matmul %534, %373, %cst_134 {dimension_numbers = #tpu.dot_dimension_numbers<[1], [0], [0], [1], [0, 0, 1, 1], [], []>} : vector<2x32xf32>, vector<32x3xf32>, vector<2x3xf32> -> vector<2x3xf32>
    %555 = arith.addf %513, %554 : vector<2x3xf32>
    %cst_135 = arith.constant dense<0.000000e+00> : vector<2x3xf32>
    %556 = tpu.matmul %553, %374, %cst_135 {dimension_numbers = #tpu.dot_dimension_numbers<[1], [0], [0], [1], [0, 0, 1, 1], [], []>} : vector<2x32xf32>, vector<32x3xf32>, vector<2x3xf32> -> vector<2x3xf32>
    %557 = arith.addf %555, %556 : vector<2x3xf32>
    %558 = vector.broadcast %375 : vector<1x3xf32> to vector<2x3xf32>
    %559 = arith.addf %557, %558 : vector<2x3xf32>
    %c0_136 = arith.constant 0 : index
    %c9 = arith.constant 9 : index
    %560 = vector.load %arg27[%c0_136, %c9] : memref<2x12xf32, #tpu.memory_space<vmem>>, vector<2x3xf32>
    tpu.vector_store %arg27[%c0_136, %c9], %559 {strides = array<i32>} : memref<2x12xf32, #tpu.memory_space<vmem>>, vector<2x3xf32>,
    return
  }
}

</mosaic_0001>

<llo_original>
// kernel: track_res_forward.1
$region0: #{track_res_forward.1}
  #allocation0 [shape = 'u32[]', space=smem, size = 0x4, offset = 0x4, fixed_abs, tag = 'smem constant byte address 0x4 - core index']
  #allocation1 [shape = 'u32[144,128]{1,0:T(1,128)}', space=vmem, size = 0x12000, scoped, tag = 'internal scratch']
  %s0 = inlined_call_operand.vmem [shape: f32[8,3], index: 0, kind: input, shape index: {}]
  %s1 = inlined_call_operand.vmem [shape: f32[8,64], index: 1, kind: input, shape index: {}]
  %s2 = inlined_call_operand.vmem [shape: f32[2,3], index: 2, kind: input, shape index: {}]
  %s3 = inlined_call_operand.vmem [shape: f32[8,64], index: 3, kind: input, shape index: {}]
  %s4 = inlined_call_operand.hbm [shape: f32[3,128], index: 4, kind: input, shape index: {}]
  %s5 = inlined_call_operand.vmem [shape: f32[32,128], index: 5, kind: input, shape index: {}]
  %s6 = inlined_call_operand.hbm [shape: f32[1,128], index: 6, kind: input, shape index: {}]
  %s7 = inlined_call_operand.vmem [shape: f32[64,128], index: 7, kind: input, shape index: {}]
  %s8 = inlined_call_operand.vmem [shape: f32[32,128], index: 8, kind: input, shape index: {}]
  %s9 = inlined_call_operand.hbm [shape: f32[1,128], index: 9, kind: input, shape index: {}]
  %s10 = inlined_call_operand.hbm [shape: f32[32,128], index: 10, kind: input, shape index: {}]
  %s11 = inlined_call_operand.hbm [shape: f32[32,128], index: 11, kind: input, shape index: {}]
  %s12 = inlined_call_operand.hbm [shape: f32[32,128], index: 12, kind: input, shape index: {}]
  %s13 = inlined_call_operand.hbm [shape: f32[1,128], index: 13, kind: input, shape index: {}]
  %s14 = inlined_call_operand.hbm [shape: f32[3,128], index: 14, kind: input, shape index: {}]
  %s15 = inlined_call_operand.hbm [shape: f32[32,128], index: 15, kind: input, shape index: {}]
  %s16 = inlined_call_operand.hbm [shape: f32[1,128], index: 16, kind: input, shape index: {}]
  %s17 = inlined_call_operand.vmem [shape: f32[64,128], index: 17, kind: input, shape index: {}]
  %s18 = inlined_call_operand.hbm [shape: f32[32,128], index: 18, kind: input, shape index: {}]
  %s19 = inlined_call_operand.hbm [shape: f32[1,128], index: 19, kind: input, shape index: {}]
  %s20 = inlined_call_operand.hbm [shape: f32[32,128], index: 20, kind: input, shape index: {}]
  %s21 = inlined_call_operand.hbm [shape: f32[32,128], index: 21, kind: input, shape index: {}]
  %s22 = inlined_call_operand.hbm [shape: f32[32,128], index: 22, kind: input, shape index: {}]
  %s23 = inlined_call_operand.hbm [shape: f32[1,128], index: 23, kind: input, shape index: {}]
  %s24 = inlined_call_operand.vmem [shape: f32[32,3], index: 24, kind: input, shape index: {}]
  %s25 = inlined_call_operand.vmem [shape: f32[32,3], index: 25, kind: input, shape index: {}]
  %s26 = inlined_call_operand.vmem [shape: f32[1,3], index: 26, kind: input, shape index: {}]
  %s27 = inlined_call_operand.vmem [shape: f32[2,12], index: 27, kind: output, shape index: {}]
  %s28 = sld [smem:[#allocation0]]
  $region182: #{track_res_forward.1} parent=0
    _
  %s30 = ssub.s32 1, %s28
  %s31 = scalar_select 0, %s30, %s28
  $region1: #{track_res_forward.1} parent=0
    #allocation2 [shape = 'u8[2048]{0}', space=vmem, size = 0x800, scoped, tag = 'input window, operand 4, single buffered']
    #allocation3 [shape = 's32[1]{0}', space=sflag, size = 0x4, scoped, tag = 'scoped memory for track_res_forward.1']
    #allocation4 [shape = 'u8[512]{0}', space=vmem, size = 0x400, scoped, tag = 'input window, operand 6, single buffered']
    #allocation5 [shape = 's32[1]{0}', space=sflag, size = 0x4, scoped, tag = 'scoped memory for track_res_forward.1']
    #allocation6 [shape = 'u8[512]{0}', space=vmem, size = 0x400, scoped, tag = 'input window, operand 9, single buffered']
    #allocation7 [shape = 'u8[16384]{0}', space=vmem, size = 0x4000, scoped, tag = 'input window, operand 10, single buffered']
    #allocation8 [shape = 's32[1]{0}', space=sflag, size = 0x4, scoped, tag = 'scoped memory for track_res_forward.1']
    #allocation9 [shape = 'u8[16384]{0}', space=vmem, size = 0x4000, scoped, tag = 'input window, operand 11, single buffered']
    #allocation10 [shape = 'u8[16384]{0}', space=vmem, size = 0x4000, scoped, tag = 'input window, operand 12, single buffered']
    #allocation11 [shape = 's32[1]{0}', space=sflag, size = 0x4, scoped, tag = 'scoped memory for track_res_forward.1']
    #allocation12 [shape = 'u8[512]{0}', space=vmem, size = 0x400, scoped, tag = 'input window, operand 13, single buffered']
    #allocation13 [shape = 'u8[2048]{0}', space=vmem, size = 0x800, scoped, tag = 'input window, operand 14, single buffered']
    #allocation14 [shape = 's32[1]{0}', space=sflag, size = 0x4, scoped, tag = 'scoped memory for track_res_forward.1']
    #allocation15 [shape = 'u8[16384]{0}', space=vmem, size = 0x4000, scoped, tag = 'input window, operand 15, single buffered']
    #allocation16 [shape = 'u8[512]{0}', space=vmem, size = 0x400, scoped, tag = 'input window, operand 16, single buffered']
    #allocation17 [shape = 's32[1]{0}', space=sflag, size = 0x4, scoped, tag = 'scoped memory for track_res_forward.1']
    #allocation18 [shape = 'u8[16384]{0}', space=vmem, size = 0x4000, scoped, tag = 'input window, operand 18, single buffered']
    #allocation19 [shape = 'u8[512]{0}', space=vmem, size = 0x400, scoped, tag = 'input window, operand 19, single buffered']
    #allocation20 [shape = 's32[1]{0}', space=sflag, size = 0x4, scoped, tag = 'scoped memory for track_res_forward.1']
    #allocation21 [shape = 'u8[16384]{0}', space=vmem, size = 0x4000, scoped, tag = 'input window, operand 20, single buffered']
    #allocation22 [shape = 'u8[16384]{0}', space=vmem, size = 0x4000, scoped, tag = 'input window, operand 21, single buffered']
    #allocation23 [shape = 's32[1]{0}', space=sflag, size = 0x4, scoped, tag = 'scoped memory for track_res_forward.1']
    #allocation24 [shape = 'u8[16384]{0}', space=vmem, size = 0x4000, scoped, tag = 'input window, operand 22, single buffered']
    #allocation25 [shape = 'u8[512]{0}', space=vmem, size = 0x400, scoped, tag = 'input window, operand 23, single buffered']
    #allocation26 [shape = 's32[1]{0}', space=sflag, size = 0x4, scoped, tag = 'scoped memory for track_res_forward.1']
    %32 = vsyncpa [#allocation3], 0
    %33 = vsyncpa [#allocation5], 0
    %34 = vsyncpa [#allocation8], 0
    %35 = vsyncpa [#allocation11], 0
    %36 = vsyncpa [#allocation14], 0
    %37 = vsyncpa [#allocation17], 0
    %38 = vsyncpa [#allocation20], 0
    %39 = vsyncpa [#allocation23], 0
    %40 = vsyncpa [#allocation26], 0
    // Predicated region
    $region2: #{track_res_forward.1} parent=1 // pred_check
      _
    $region3: #{track_res_forward.1} parent=1 // pred_check_branch
      %42 = sbr.rel (0) target = $region5
    $region4: #{track_res_forward.1} parent=1 // pred_region
      _
    $region5: #{track_res_forward.1} parent=1 // pred_fallthru
      _
    // Predicated region
    $region6: #{track_res_forward.1} parent=1 // pred_check
      _
    $region7: #{track_res_forward.1} parent=1 // pred_check_branch
      %44 = sbr.rel (0) target = $region9
    $region8: #{track_res_forward.1} parent=1 // pred_region
      _
    $region9: #{track_res_forward.1} parent=1 // pred_fallthru
      _
    // Predicated region
    $region10: #{track_res_forward.1} parent=1 // pred_check
      _
    $region11: #{track_res_forward.1} parent=1 // pred_check_branch
      %46 = sbr.rel (0) target = $region13
    $region12: #{track_res_forward.1} parent=1 // pred_region
      _
    $region13: #{track_res_forward.1} parent=1 // pred_fallthru
      _
    // Predicated region
    $region14: #{track_res_forward.1} parent=1 // pred_check
      _
    $region15: #{track_res_forward.1} parent=1 // pred_check_branch
      %48 = sbr.rel (0) target = $region17
    $region16: #{track_res_forward.1} parent=1 // pred_region
      _
    $region17: #{track_res_forward.1} parent=1 // pred_fallthru
      _
    // Predicated region
    $region18: #{track_res_forward.1} parent=1 // pred_check
      _
    $region19: #{track_res_forward.1} parent=1 // pred_check_branch
      %50 = sbr.rel (0) target = $region21
    $region20: #{track_res_forward.1} parent=1 // pred_region
      %s52 = ssub.s32 64, 64
      %53 = vsyncadd [#allocation3], %s52
      %s55 = sshll.u32 [#allocation2], 4
      %s56 = int_to_ptr.vmem [resolvable:$true] %s55
      %58 = dma.hbm_to_vmem [thread:$0]  %s4, 64, %s56, [#allocation3]
    $region21: #{track_res_forward.1} parent=1 // pred_fallthru
      _
    // Predicated region
    $region22: #{track_res_forward.1} parent=1 // pred_check
      _
    $region23: #{track_res_forward.1} parent=1 // pred_check_branch
      %60 = sbr.rel (0) target = $region25
    $region24: #{track_res_forward.1} parent=1 // pred_region
      _
    $region25: #{track_res_forward.1} parent=1 // pred_fallthru
      _
    // Predicated region
    $region26: #{track_res_forward.1} parent=1 // pred_check
      _
    $region27: #{track_res_forward.1} parent=1 // pred_check_branch
      %62 = sbr.rel (0) target = $region29
    $region28: #{track_res_forward.1} parent=1 // pred_region
      %s64 = ssub.s32 16, 16
      %65 = vsyncadd [#allocation5], %s64
      %s67 = sshll.u32 [#allocation4], 4
      %s68 = int_to_ptr.vmem [resolvable:$true] %s67
      %70 = dma.hbm_to_vmem [thread:$0]  %s6, 16, %s68, [#allocation5]
    $region29: #{track_res_forward.1} parent=1 // pred_fallthru
      _
    // Predicated region
    $region30: #{track_res_forward.1} parent=1 // pred_check
      _
    $region31: #{track_res_forward.1} parent=1 // pred_check_branch
      %72 = sbr.rel (0) target = $region33
    $region32: #{track_res_forward.1} parent=1 // pred_region
      _
    $region33: #{track_res_forward.1} parent=1 // pred_fallthru
      _
    // Predicated region
    $region34: #{track_res_forward.1} parent=1 // pred_check
      _
    $region35: #{track_res_forward.1} parent=1 // pred_check_branch
      %74 = sbr.rel (0) target = $region37
    $region36: #{track_res_forward.1} parent=1 // pred_region
      _
    $region37: #{track_res_forward.1} parent=1 // pred_fallthru
      _
    // Predicated region
    $region38: #{track_res_forward.1} parent=1 // pred_check
      _
    $region39: #{track_res_forward.1} parent=1 // pred_check_branch
      %76 = sbr.rel (0) target = $region41
    $region40: #{track_res_forward.1} parent=1 // pred_region
      %s78 = ssub.s32 16, 16
      %79 = vsyncadd [#allocation5], %s78
      %s81 = sshll.u32 [#allocation6], 4
      %s82 = int_to_ptr.vmem [resolvable:$true] %s81
      %84 = dma.hbm_to_vmem [thread:$0]  %s9, 16, %s82, [#allocation5]
    $region41: #{track_res_forward.1} parent=1 // pred_fallthru
      _
    // Predicated region
    $region42: #{track_res_forward.1} parent=1 // pred_check
      _
    $region43: #{track_res_forward.1} parent=1 // pred_check_branch
      %86 = sbr.rel (0) target = $region45
    $region44: #{track_res_forward.1} parent=1 // pred_region
      %s88 = ssub.s32 512, 512
      %89 = vsyncadd [#allocation8], %s88
      %s90 = sshll.u32 [#allocation7], 4
      %s91 = int_to_ptr.vmem [resolvable:$true] %s90
      %96 = dma.hbm_to_vmem [thread:$0]  %s10, 512, %s91, [#allocation8], 128, 128, 8
    $region45: #{track_res_forward.1} parent=1 // pred_fallthru
      _
    // Predicated region
    $region46: #{track_res_forward.1} parent=1 // pred_check
      _
    $region47: #{track_res_forward.1} parent=1 // pred_check_branch
      %98 = sbr.rel (0) target = $region49
    $region48: #{track_res_forward.1} parent=1 // pred_region
      %s100 = ssub.s32 512, 512
      %101 = vsyncadd [#allocation8], %s100
      %s102 = sshll.u32 [#allocation9], 4
      %s103 = int_to_ptr.vmem [resolvable:$true] %s102
      %108 = dma.hbm_to_vmem [thread:$0]  %s11, 512, %s103, [#allocation8], 128, 128, 8
    $region49: #{track_res_forward.1} parent=1 // pred_fallthru
      _
    // Predicated region
    $region50: #{track_res_forward.1} parent=1 // pred_check
      _
    $region51: #{track_res_forward.1} parent=1 // pred_check_branch
      %110 = sbr.rel (0) target = $region53
    $region52: #{track_res_forward.1} parent=1 // pred_region
      %s112 = ssub.s32 512, 512
      %113 = vsyncadd [#allocation11], %s112
      %s114 = sshll.u32 [#allocation10], 4
      %s115 = int_to_ptr.vmem [resolvable:$true] %s114
      %120 = dma.hbm_to_vmem [thread:$0]  %s12, 512, %s115, [#allocation11], 128, 128, 8
    $region53: #{track_res_forward.1} parent=1 // pred_fallthru
      _
    // Predicated region
    $region54: #{track_res_forward.1} parent=1 // pred_check
      _
    $region55: #{track_res_forward.1} parent=1 // pred_check_branch
      %122 = sbr.rel (0) target = $region57
    $region56: #{track_res_forward.1} parent=1 // pred_region
      %s124 = ssub.s32 16, 16
      %125 = vsyncadd [#allocation11], %s124
      %s127 = sshll.u32 [#allocation12], 4
      %s128 = int_to_ptr.vmem [resolvable:$true] %s127
      %130 = dma.hbm_to_vmem [thread:$0]  %s13, 16, %s128, [#allocation11]
    $region57: #{track_res_forward.1} parent=1 // pred_fallthru
      _
    // Predicated region
    $region58: #{track_res_forward.1} parent=1 // pred_check
      _
    $region59: #{track_res_forward.1} parent=1 // pred_check_branch
      %132 = sbr.rel (0) target = $region61
    $region60: #{track_res_forward.1} parent=1 // pred_region
      %s134 = ssub.s32 64, 64
      %135 = vsyncadd [#allocation14], %s134
      %s137 = sshll.u32 [#allocation13], 4
      %s138 = int_to_ptr.vmem [resolvable:$true] %s137
      %140 = dma.hbm_to_vmem [thread:$0]  %s14, 64, %s138, [#allocation14]
    $region61: #{track_res_forward.1} parent=1 // pred_fallthru
      _
    // Predicated region
    $region62: #{track_res_forward.1} parent=1 // pred_check
      _
    $region63: #{track_res_forward.1} parent=1 // pred_check_branch
      %142 = sbr.rel (0) target = $region65
    $region64: #{track_res_forward.1} parent=1 // pred_region
      %s144 = ssub.s32 512, 512
      %145 = vsyncadd [#allocation14], %s144
      %s146 = sshll.u32 [#allocation15], 4
      %s147 = int_to_ptr.vmem [resolvable:$true] %s146
      %152 = dma.hbm_to_vmem [thread:$0]  %s15, 512, %s147, [#allocation14], 128, 128, 8
    $region65: #{track_res_forward.1} parent=1 // pred_fallthru
      _
    // Predicated region
    $region66: #{track_res_forward.1} parent=1 // pred_check
      _
    $region67: #{track_res_forward.1} parent=1 // pred_check_branch
      %154 = sbr.rel (0) target = $region69
    $region68: #{track_res_forward.1} parent=1 // pred_region
      %s156 = ssub.s32 16, 16
      %157 = vsyncadd [#allocation17], %s156
      %s159 = sshll.u32 [#allocation16], 4
      %s160 = int_to_ptr.vmem [resolvable:$true] %s159
      %162 = dma.hbm_to_vmem [thread:$0]  %s16, 16, %s160, [#allocation17]
    $region69: #{track_res_forward.1} parent=1 // pred_fallthru
      _
    // Predicated region
    $region70: #{track_res_forward.1} parent=1 // pred_check
      _
    $region71: #{track_res_forward.1} parent=1 // pred_check_branch
      %164 = sbr.rel (0) target = $region73
    $region72: #{track_res_forward.1} parent=1 // pred_region
      _
    $region73: #{track_res_forward.1} parent=1 // pred_fallthru
      _
    // Predicated region
    $region74: #{track_res_forward.1} parent=1 // pred_check
      _
    $region75: #{track_res_forward.1} parent=1 // pred_check_branch
      %166 = sbr.rel (0) target = $region77
    $region76: #{track_res_forward.1} parent=1 // pred_region
      %s168 = ssub.s32 512, 512
      %169 = vsyncadd [#allocation17], %s168
      %s170 = sshll.u32 [#allocation18], 4
      %s171 = int_to_ptr.vmem [resolvable:$true] %s170
      %176 = dma.hbm_to_vmem [thread:$0]  %s18, 512, %s171, [#allocation17], 128, 128, 8
    $region77: #{track_res_forward.1} parent=1 // pred_fallthru
      _
    // Predicated region
    $region78: #{track_res_forward.1} parent=1 // pred_check
      _
    $region79: #{track_res_forward.1} parent=1 // pred_check_branch
      %178 = sbr.rel (0) target = $region81
    $region80: #{track_res_forward.1} parent=1 // pred_region
      %s180 = ssub.s32 16, 16
      %181 = vsyncadd [#allocation20], %s180
      %s183 = sshll.u32 [#allocation19], 4
      %s184 = int_to_ptr.vmem [resolvable:$true] %s183
      %186 = dma.hbm_to_vmem [thread:$0]  %s19, 16, %s184, [#allocation20]
    $region81: #{track_res_forward.1} parent=1 // pred_fallthru
      _
    // Predicated region
    $region82: #{track_res_forward.1} parent=1 // pred_check
      _
    $region83: #{track_res_forward.1} parent=1 // pred_check_branch
      %188 = sbr.rel (0) target = $region85
    $region84: #{track_res_forward.1} parent=1 // pred_region
      %s190 = ssub.s32 512, 512
      %191 = vsyncadd [#allocation20], %s190
      %s192 = sshll.u32 [#allocation21], 4
      %s193 = int_to_ptr.vmem [resolvable:$true] %s192
      %198 = dma.hbm_to_vmem [thread:$0]  %s20, 512, %s193, [#allocation20], 128, 128, 8
    $region85: #{track_res_forward.1} parent=1 // pred_fallthru
      _
    // Predicated region
    $region86: #{track_res_forward.1} parent=1 // pred_check
      _
    $region87: #{track_res_forward.1} parent=1 // pred_check_branch
      %200 = sbr.rel (0) target = $region89
    $region88: #{track_res_forward.1} parent=1 // pred_region
      %s202 = ssub.s32 512, 512
      %203 = vsyncadd [#allocation23], %s202
      %s204 = sshll.u32 [#allocation22], 4
      %s205 = int_to_ptr.vmem [resolvable:$true] %s204
      %210 = dma.hbm_to_vmem [thread:$0]  %s21, 512, %s205, [#allocation23], 128, 128, 8
    $region89: #{track_res_forward.1} parent=1 // pred_fallthru
      _
    // Predicated region
    $region90: #{track_res_forward.1} parent=1 // pred_check
      _
    $region91: #{track_res_forward.1} parent=1 // pred_check_branch
      %212 = sbr.rel (0) target = $region93
    $region92: #{track_res_forward.1} parent=1 // pred_region
      %s214 = ssub.s32 512, 512
      %215 = vsyncadd [#allocation23], %s214
      %s216 = sshll.u32 [#allocation24], 4
      %s217 = int_to_ptr.vmem [resolvable:$true] %s216
      %222 = dma.hbm_to_vmem [thread:$0]  %s22, 512, %s217, [#allocation23], 128, 128, 8
    $region93: #{track_res_forward.1} parent=1 // pred_fallthru
      _
    // Predicated region
    $region94: #{track_res_forward.1} parent=1 // pred_check
      _
    $region95: #{track_res_forward.1} parent=1 // pred_check_branch
      %224 = sbr.rel (0) target = $region97
    $region96: #{track_res_forward.1} parent=1 // pred_region
      %s226 = ssub.s32 16, 16
      %227 = vsyncadd [#allocation26], %s226
      %s229 = sshll.u32 [#allocation25], 4
      %s230 = int_to_ptr.vmem [resolvable:$true] %s229
      %232 = dma.hbm_to_vmem [thread:$0]  %s23, 16, %s230, [#allocation26]
    $region97: #{track_res_forward.1} parent=1 // pred_fallthru
      _
    // Predicated region
    $region98: #{track_res_forward.1} parent=1 // pred_check
      _
    $region99: #{track_res_forward.1} parent=1 // pred_check_branch
      %234 = sbr.rel (0) target = $region101
    $region100: #{track_res_forward.1} parent=1 // pred_region
      _
    $region101: #{track_res_forward.1} parent=1 // pred_fallthru
      _
    // Predicated region
    $region102: #{track_res_forward.1} parent=1 // pred_check
      _
    $region103: #{track_res_forward.1} parent=1 // pred_check_branch
      %236 = sbr.rel (0) target = $region105
    $region104: #{track_res_forward.1} parent=1 // pred_region
      _
    $region105: #{track_res_forward.1} parent=1 // pred_fallthru
      _
    // Predicated region
    $region106: #{track_res_forward.1} parent=1 // pred_check
      _
    $region107: #{track_res_forward.1} parent=1 // pred_check_branch
      %238 = sbr.rel (0) target = $region109
    $region108: #{track_res_forward.1} parent=1 // pred_region
      _
    $region109: #{track_res_forward.1} parent=1 // pred_fallthru
      _
    // Predicated region
    $region110: #{track_res_forward.1} parent=1 // pred_check
      _
    $region111: #{track_res_forward.1} parent=1 // pred_check_branch
      %240 = sbr.rel (0) target = $region113
    $region112: #{track_res_forward.1} parent=1 // pred_region
      %241 = dma.done [#allocation3], 64
    $region113: #{track_res_forward.1} parent=1 // pred_fallthru
      _
    // Predicated region
    $region114: #{track_res_forward.1} parent=1 // pred_check
      _
    $region115: #{track_res_forward.1} parent=1 // pred_check_branch
      %243 = sbr.rel (0) target = $region117
    $region116: #{track_res_forward.1} parent=1 // pred_region
      %244 = dma.done [#allocation5], 16
    $region117: #{track_res_forward.1} parent=1 // pred_fallthru
      _
    // Predicated region
    $region118: #{track_res_forward.1} parent=1 // pred_check
      _
    $region119: #{track_res_forward.1} parent=1 // pred_check_branch
      %246 = sbr.rel (0) target = $region121
    $region120: #{track_res_forward.1} parent=1 // pred_region
      %247 = dma.done [#allocation5], 16
    $region121: #{track_res_forward.1} parent=1 // pred_fallthru
      _
    // Predicated region
    $region122: #{track_res_forward.1} parent=1 // pred_check
      _
    $region123: #{track_res_forward.1} parent=1 // pred_check_branch
      %249 = sbr.rel (0) target = $region125
    $region124: #{track_res_forward.1} parent=1 // pred_region
      %250 = dma.done [#allocation8], 512
    $region125: #{track_res_forward.1} parent=1 // pred_fallthru
      _
    // Predicated region
    $region126: #{track_res_forward.1} parent=1 // pred_check
      _
    $region127: #{track_res_forward.1} parent=1 // pred_check_branch
      %252 = sbr.rel (0) target = $region129
    $region128: #{track_res_forward.1} parent=1 // pred_region
      %253 = dma.done [#allocation8], 512
    $region129: #{track_res_forward.1} parent=1 // pred_fallthru
      _
    // Predicated region
    $region130: #{track_res_forward.1} parent=1 // pred_check
      _
    $region131: #{track_res_forward.1} parent=1 // pred_check_branch
      %255 = sbr.rel (0) target = $region133
    $region132: #{track_res_forward.1} parent=1 // pred_region
      %256 = dma.done [#allocation11], 512
    $region133: #{track_res_forward.1} parent=1 // pred_fallthru
      _
    // Predicated region
    $region134: #{track_res_forward.1} parent=1 // pred_check
      _
    $region135: #{track_res_forward.1} parent=1 // pred_check_branch
      %258 = sbr.rel (0) target = $region137
    $region136: #{track_res_forward.1} parent=1 // pred_region
      %259 = dma.done [#allocation11], 16
    $region137: #{track_res_forward.1} parent=1 // pred_fallthru
      _
    // Predicated region
    $region138: #{track_res_forward.1} parent=1 // pred_check
      _
    $region139: #{track_res_forward.1} parent=1 // pred_check_branch
      %261 = sbr.rel (0) target = $region141
    $region140: #{track_res_forward.1} parent=1 // pred_region
      %262 = dma.done [#allocation14], 64
    $region141: #{track_res_forward.1} parent=1 // pred_fallthru
      _
    // Predicated region
    $region142: #{track_res_forward.1} parent=1 // pred_check
      _
    $region143: #{track_res_forward.1} parent=1 // pred_check_branch
      %264 = sbr.rel (0) target = $region145
    $region144: #{track_res_forward.1} parent=1 // pred_region
      %265 = dma.done [#allocation14], 512
    $region145: #{track_res_forward.1} parent=1 // pred_fallthru
      _
    // Predicated region
    $region146: #{track_res_forward.1} parent=1 // pred_check
      _
    $region147: #{track_res_forward.1} parent=1 // pred_check_branch
      %267 = sbr.rel (0) target = $region149
    $region148: #{track_res_forward.1} parent=1 // pred_region
      %268 = dma.done [#allocation17], 16
    $region149: #{track_res_forward.1} parent=1 // pred_fallthru
      _
    // Predicated region
    $region150: #{track_res_forward.1} parent=1 // pred_check
      _
    $region151: #{track_res_forward.1} parent=1 // pred_check_branch
      %270 = sbr.rel (0) target = $region153
    $region152: #{track_res_forward.1} parent=1 // pred_region
      %271 = dma.done [#allocation17], 512
    $region153: #{track_res_forward.1} parent=1 // pred_fallthru
      _
    // Predicated region
    $region154: #{track_res_forward.1} parent=1 // pred_check
      _
    $region155: #{track_res_forward.1} parent=1 // pred_check_branch
      %273 = sbr.rel (0) target = $region157
    $region156: #{track_res_forward.1} parent=1 // pred_region
      %274 = dma.done [#allocation20], 16
    $region157: #{track_res_forward.1} parent=1 // pred_fallthru
      _
    // Predicated region
    $region158: #{track_res_forward.1} parent=1 // pred_check
      _
    $region159: #{track_res_forward.1} parent=1 // pred_check_branch
      %276 = sbr.rel (0) target = $region161
    $region160: #{track_res_forward.1} parent=1 // pred_region
      %277 = dma.done [#allocation20], 512
    $region161: #{track_res_forward.1} parent=1 // pred_fallthru
      _
    // Predicated region
    $region162: #{track_res_forward.1} parent=1 // pred_check
      _
    $region163: #{track_res_forward.1} parent=1 // pred_check_branch
      %279 = sbr.rel (0) target = $region165
    $region164: #{track_res_forward.1} parent=1 // pred_region
      %280 = dma.done [#allocation23], 512
    $region165: #{track_res_forward.1} parent=1 // pred_fallthru
      _
    // Predicated region
    $region166: #{track_res_forward.1} parent=1 // pred_check
      _
    $region167: #{track_res_forward.1} parent=1 // pred_check_branch
      %282 = sbr.rel (0) target = $region169
    $region168: #{track_res_forward.1} parent=1 // pred_region
      %283 = dma.done [#allocation23], 512
    $region169: #{track_res_forward.1} parent=1 // pred_fallthru
      _
    // Predicated region
    $region170: #{track_res_forward.1} parent=1 // pred_check
      _
    $region171: #{track_res_forward.1} parent=1 // pred_check_branch
      %285 = sbr.rel (0) target = $region173
    $region172: #{track_res_forward.1} parent=1 // pred_region
      %286 = dma.done [#allocation26], 16
    $region173: #{track_res_forward.1} parent=1 // pred_fallthru
      _
    %v287 = vld [vmem:[%s0] sm:$0xff]
    %v288 = vld [vmem:[#allocation2] sm:$0x7]
    %v289 = vld [vmem:[#allocation4] sm:$0x1]
    %v291 = vlaneseq
    %v292 = vshrl.u32 %v291, 7
    %v293 = vsub.s32 0, %v292
    %v294 = vrot.slane %v289, %v293
    %vm296 = vcmask 23552
    %v298 = vsel %vm296, %v287, 0
    %vm300 = vcmask 1042432
    %v302 = vsel %vm300, %v288, 0
    %304 = vmatprep.subr.mxu0 0.0
    %305 = vmatpush1.msra.mxu0 0.0
    %306 = vmatprep.subr.mxu0 0.0
    %307 = vmatpush1.msra.mxu0 0.0
    %308 = vmatprep.subr.mxu0 0.0
    %309 = vmatpush1.msra.mxu0 0.0
    %310 = vmatprep.subr.mxu0 0.0
    %311 = vmatpush1.msra.mxu0 0.0
    %312 = vmatprep.subr.mxu0 0.0
    %313 = vmatpush1.msra.mxu0 0.0
    %314 = vmatprep.subr.mxu0 0.0
    %315 = vmatpush1.msra.mxu0 0.0
    %316 = vmatprep.subr.mxu0 0.0
    %317 = vmatpush1.msra.mxu0 0.0
    %318 = vmatprep.subr.mxu0 0.0
    %319 = vmatpush1.msra.mxu0 0.0
    %320 = vmatprep.subr.mxu0 0.0
    %321 = vmatpush1.msra.mxu0 0.0
    %322 = vmatprep.subr.mxu0 0.0
    %323 = vmatpush1.msra.mxu0 0.0
    %324 = vmatprep.subr.mxu0 0.0
    %325 = vmatpush1.msra.mxu0 0.0
    %326 = vmatprep.subr.mxu0 0.0
    %327 = vmatpush1.msra.mxu0 0.0
    %328 = vmatprep.subr.mxu0 0.0
    %329 = vmatpush1.msra.mxu0 0.0
    %330 = vmatprep.subr.mxu0 0.0
    %331 = vmatpush1.msra.mxu0 0.0
    %332 = vmatprep.subr.mxu0 0.0
    %333 = vmatpush1.msra.mxu0 0.0
    %334 = vmatprep.subr.mxu0 0.0
    %335 = vmatpush1.msra.mxu0 %v302
    %336 = vmatprep.subr.mxu0 0.0
    %337 = vmatpush2.msra.mxu0 0.0
    %338 = vmatprep.subr.mxu0 0.0
    %339 = vmatpush2.msra.mxu0 0.0
    %340 = vmatprep.subr.mxu0 0.0
    %341 = vmatpush2.msra.mxu0 0.0
    %342 = vmatprep.subr.mxu0 0.0
    %343 = vmatpush2.msra.mxu0 0.0
    %344 = vmatprep.subr.mxu0 0.0
    %345 = vmatpush2.msra.mxu0 0.0
    %346 = vmatprep.subr.mxu0 0.0
    %347 = vmatpush2.msra.mxu0 0.0
    %348 = vmatprep.subr.mxu0 0.0
    %349 = vmatpush2.msra.mxu0 0.0
    %350 = vmatprep.subr.mxu0 0.0
    %351 = vmatpush2.msra.mxu0 0.0
    %352 = vmatprep.subr.mxu0 0.0
    %353 = vmatpush2.msra.mxu0 0.0
    %354 = vmatprep.subr.mxu0 0.0
    %355 = vmatpush2.msra.mxu0 0.0
    %356 = vmatprep.subr.mxu0 0.0
    %357 = vmatpush2.msra.mxu0 0.0
    %358 = vmatprep.subr.mxu0 0.0
    %359 = vmatpush2.msra.mxu0 0.0
    %360 = vmatprep.subr.mxu0 0.0
    %361 = vmatpush2.msra.mxu0 0.0
    %362 = vmatprep.subr.mxu0 0.0
    %363 = vmatpush2.msra.mxu0 0.0
    %364 = vmatprep.subr.mxu0 0.0
    %365 = vmatpush2.msra.mxu0 0.0
    %366 = vmatprep.subr.mxu0 0.0
    %367 = vmatpush2.msra.mxu0 0.0
    %368 = vmatprep.mubr.f32.mxu0 0.0
    %369 = vmatmul.mubr.f32.gmra.mxu0 %v298
    %v370 = vpop.f32.mrf.mxu0
    %v371 = vadd.f32 %v294, %v370
    %v372 = vpop.f32.mrf.mxu0
    %373 = vdwg.mxu0
    %v374 = vld [vmem:[%s1] sm:$0xff]
    %v375 = vld [vmem:[%s7] sm:$0xff]
    %v376 = vld [vmem:[%s7 + $0x8] sm:$0xff]
    %v377 = vld [vmem:[%s7 + $0x10] sm:$0xff]
    %v378 = vld [vmem:[%s7 + $0x18] sm:$0xff]
    %v379 = vld [vmem:[%s7 + $0x20] sm:$0xff]
    %v380 = vld [vmem:[%s7 + $0x28] sm:$0xff]
    %v381 = vld [vmem:[%s7 + $0x30] sm:$0xff]
    %v382 = vld [vmem:[%s7 + $0x38] sm:$0xff]
    %v383 = vld [vmem:[#allocation6] sm:$0x1]
    %v385 = vlaneseq
    %v386 = vshrl.u32 %v385, 7
    %v387 = vsub.s32 0, %v386
    %v388 = vrot.slane %v383, %v387
    %vm390 = vcmask 523264
    %v392 = vsel %vm390, %v374, 0
    %394 = vmatprep.subr.mxu0 0.0
    %395 = vmatpush1.msra.mxu0 0.0
    %396 = vmatprep.subr.mxu0 0.0
    %397 = vmatpush1.msra.mxu0 0.0
    %398 = vmatprep.subr.mxu0 0.0
    %399 = vmatpush1.msra.mxu0 0.0
    %400 = vmatprep.subr.mxu0 0.0
    %401 = vmatpush1.msra.mxu0 0.0
    %402 = vmatprep.subr.mxu0 0.0
    %403 = vmatpush1.msra.mxu0 0.0
    %404 = vmatprep.subr.mxu0 0.0
    %405 = vmatpush1.msra.mxu0 0.0
    %406 = vmatprep.subr.mxu0 0.0
    %407 = vmatpush1.msra.mxu0 0.0
    %408 = vmatprep.subr.mxu0 0.0
    %409 = vmatpush1.msra.mxu0 0.0
    %410 = vmatprep.subr.mxu0 0.0
    %411 = vmatpush1.msra.mxu0 %v382
    %412 = vmatprep.subr.mxu0 0.0
    %413 = vmatpush1.msra.mxu0 %v381
    %414 = vmatprep.subr.mxu0 0.0
    %415 = vmatpush1.msra.mxu0 %v380
    %416 = vmatprep.subr.mxu0 0.0
    %417 = vmatpush1.msra.mxu0 %v379
    %418 = vmatprep.subr.mxu0 0.0
    %419 = vmatpush1.msra.mxu0 %v378
    %420 = vmatprep.subr.mxu0 0.0
    %421 = vmatpush1.msra.mxu0 %v377
    %422 = vmatprep.subr.mxu0 0.0
    %423 = vmatpush1.msra.mxu0 %v376
    %424 = vmatprep.subr.mxu0 0.0
    %425 = vmatpush1.msra.mxu0 %v375
    %426 = vmatprep.subr.mxu0 0.0
    %427 = vmatpush2.msra.mxu0 0.0
    %428 = vmatprep.subr.mxu0 0.0
    %429 = vmatpush2.msra.mxu0 0.0
    %430 = vmatprep.subr.mxu0 0.0
    %431 = vmatpush2.msra.mxu0 0.0
    %432 = vmatprep.subr.mxu0 0.0
    %433 = vmatpush2.msra.mxu0 0.0
    %434 = vmatprep.subr.mxu0 0.0
    %435 = vmatpush2.msra.mxu0 0.0
    %436 = vmatprep.subr.mxu0 0.0
    %437 = vmatpush2.msra.mxu0 0.0
    %438 = vmatprep.subr.mxu0 0.0
    %439 = vmatpush2.msra.mxu0 0.0
    %440 = vmatprep.subr.mxu0 0.0
    %441 = vmatpush2.msra.mxu0 0.0
    %442 = vmatprep.subr.mxu0 0.0
    %443 = vmatpush2.msra.mxu0 0.0
    %444 = vmatprep.subr.mxu0 0.0
    %445 = vmatpush2.msra.mxu0 0.0
    %446 = vmatprep.subr.mxu0 0.0
    %447 = vmatpush2.msra.mxu0 0.0
    %448 = vmatprep.subr.mxu0 0.0
    %449 = vmatpush2.msra.mxu0 0.0
    %450 = vmatprep.subr.mxu0 0.0
    %451 = vmatpush2.msra.mxu0 0.0
    %452 = vmatprep.subr.mxu0 0.0
    %453 = vmatpush2.msra.mxu0 0.0
    %454 = vmatprep.subr.mxu0 0.0
    %455 = vmatpush2.msra.mxu0 0.0
    %456 = vmatprep.subr.mxu0 0.0
    %457 = vmatpush2.msra.mxu0 0.0
    %458 = vmatprep.mubr.f32.mxu0 0.0
    %459 = vmatmul.mubr.f32.gmra.mxu0 %v392
    %v460 = vpop.f32.mrf.mxu0
    %v461 = vadd.f32 %v388, %v460
    %v462 = vpop.f32.mrf.mxu0
    %463 = vdwg.mxu0
    %v464 = vld [vmem:[%s3] sm:$0xff]
    %v465 = vld [vmem:[%s17] sm:$0xff]
    %v466 = vld [vmem:[%s17 + $0x8] sm:$0xff]
    %v467 = vld [vmem:[%s17 + $0x10] sm:$0xff]
    %v468 = vld [vmem:[%s17 + $0x18] sm:$0xff]
    %v469 = vld [vmem:[%s17 + $0x20] sm:$0xff]
    %v470 = vld [vmem:[%s17 + $0x28] sm:$0xff]
    %v471 = vld [vmem:[%s17 + $0x30] sm:$0xff]
    %v472 = vld [vmem:[%s17 + $0x38] sm:$0xff]
    %v473 = vld [vmem:[#allocation19] sm:$0x1]
    %v475 = vlaneseq
    %v476 = vshrl.u32 %v475, 7
    %v477 = vsub.s32 0, %v476
    %v478 = vrot.slane %v473, %v477
    %v481 = vsel %vm390, %v464, 0
    %483 = vmatprep.subr.mxu0 0.0
    %484 = vmatpush1.msra.mxu0 0.0
    %485 = vmatprep.subr.mxu0 0.0
    %486 = vmatpush1.msra.mxu0 0.0
    %487 = vmatprep.subr.mxu0 0.0
    %488 = vmatpush1.msra.mxu0 0.0
    %489 = vmatprep.subr.mxu0 0.0
    %490 = vmatpush1.msra.mxu0 0.0
    %491 = vmatprep.subr.mxu0 0.0
    %492 = vmatpush1.msra.mxu0 0.0
    %493 = vmatprep.subr.mxu0 0.0
    %494 = vmatpush1.msra.mxu0 0.0
    %495 = vmatprep.subr.mxu0 0.0
    %496 = vmatpush1.msra.mxu0 0.0
    %497 = vmatprep.subr.mxu0 0.0
    %498 = vmatpush1.msra.mxu0 0.0
    %499 = vmatprep.subr.mxu0 0.0
    %500 = vmatpush1.msra.mxu0 %v472
    %501 = vmatprep.subr.mxu0 0.0
    %502 = vmatpush1.msra.mxu0 %v471
    %503 = vmatprep.subr.mxu0 0.0
    %504 = vmatpush1.msra.mxu0 %v470
    %505 = vmatprep.subr.mxu0 0.0
    %506 = vmatpush1.msra.mxu0 %v469
    %507 = vmatprep.subr.mxu0 0.0
    %508 = vmatpush1.msra.mxu0 %v468
    %509 = vmatprep.subr.mxu0 0.0
    %510 = vmatpush1.msra.mxu0 %v467
    %511 = vmatprep.subr.mxu0 0.0
    %512 = vmatpush1.msra.mxu0 %v466
    %513 = vmatprep.subr.mxu0 0.0
    %514 = vmatpush1.msra.mxu0 %v465
    %515 = vmatprep.subr.mxu0 0.0
    %516 = vmatpush2.msra.mxu0 0.0
    %517 = vmatprep.subr.mxu0 0.0
    %518 = vmatpush2.msra.mxu0 0.0
    %519 = vmatprep.subr.mxu0 0.0
    %520 = vmatpush2.msra.mxu0 0.0
    %521 = vmatprep.subr.mxu0 0.0
    %522 = vmatpush2.msra.mxu0 0.0
    %523 = vmatprep.subr.mxu0 0.0
    %524 = vmatpush2.msra.mxu0 0.0
    %525 = vmatprep.subr.mxu0 0.0
    %526 = vmatpush2.msra.mxu0 0.0
    %527 = vmatprep.subr.mxu0 0.0
    %528 = vmatpush2.msra.mxu0 0.0
    %529 = vmatprep.subr.mxu0 0.0
    %530 = vmatpush2.msra.mxu0 0.0
    %531 = vmatprep.subr.mxu0 0.0
    %532 = vmatpush2.msra.mxu0 0.0
    %533 = vmatprep.subr.mxu0 0.0
    %534 = vmatpush2.msra.mxu0 0.0
    %535 = vmatprep.subr.mxu0 0.0
    %536 = vmatpush2.msra.mxu0 0.0
    %537 = vmatprep.subr.mxu0 0.0
    %538 = vmatpush2.msra.mxu0 0.0
    %539 = vmatprep.subr.mxu0 0.0
    %540 = vmatpush2.msra.mxu0 0.0
    %541 = vmatprep.subr.mxu0 0.0
    %542 = vmatpush2.msra.mxu0 0.0
    %543 = vmatprep.subr.mxu0 0.0
    %544 = vmatpush2.msra.mxu0 0.0
    %545 = vmatprep.subr.mxu0 0.0
    %546 = vmatpush2.msra.mxu0 0.0
    %547 = vmatprep.mubr.f32.mxu0 0.0
    %548 = vmatmul.mubr.f32.gmra.mxu0 %v481
    %v549 = vpop.f32.mrf.mxu0
    %v550 = vadd.f32 %v478, %v549
    %v551 = vpop.f32.mrf.mxu0
    %552 = vdwg.mxu0
    %v553 = vld [vmem:[%s5] sm:$0xff]
    %v554 = vld [vmem:[%s5 + $0x8] sm:$0xff]
    %v555 = vld [vmem:[%s5 + $0x10] sm:$0xff]
    %v556 = vld [vmem:[%s5 + $0x18] sm:$0xff]
    %v557 = vld [vmem:[%s8] sm:$0xff]
    %v558 = vld [vmem:[%s8 + $0x8] sm:$0xff]
    %v559 = vld [vmem:[%s8 + $0x10] sm:$0xff]
    %v560 = vld [vmem:[%s8 + $0x18] sm:$0xff]
    %v561 = vld [vmem:[#allocation10] sm:$0xff]
    %v562 = vld [vmem:[#allocation10 + $0x8] sm:$0xff]
    %v563 = vld [vmem:[#allocation10 + $0x10] sm:$0xff]
    %v564 = vld [vmem:[#allocation10 + $0x18] sm:$0xff]
    %v565 = vld [vmem:[#allocation7] sm:$0xff]
    %v566 = vld [vmem:[#allocation7 + $0x8] sm:$0xff]
    %v567 = vld [vmem:[#allocation7 + $0x10] sm:$0xff]
    %v568 = vld [vmem:[#allocation7 + $0x18] sm:$0xff]
    %v569 = vld [vmem:[#allocation9] sm:$0xff]
    %v570 = vld [vmem:[#allocation9 + $0x8] sm:$0xff]
    %v571 = vld [vmem:[#allocation9 + $0x10] sm:$0xff]
    %v572 = vld [vmem:[#allocation9 + $0x18] sm:$0xff]
    %v573 = vld [vmem:[#allocation12] sm:$0x1]
    %v575 = vrot.slane %v371, 3
    %vm577 = vcmask 1040384
    %v578 = vsel %vm577, %v371, %v575
    %vm579 = vcmask 261120
    %v581 = vsel %vm579, 0.0, 0
    %583 = vmatprep.subr.mxu0 0.0
    %584 = vmatpush1.msra.mxu0 0.0
    %585 = vmatprep.subr.mxu0 0.0
    %586 = vmatpush1.msra.mxu0 0.0
    %587 = vmatprep.subr.mxu0 0.0
    %588 = vmatpush1.msra.mxu0 0.0
    %589 = vmatprep.subr.mxu0 0.0
    %590 = vmatpush1.msra.mxu0 0.0
    %591 = vmatprep.subr.mxu0 0.0
    %592 = vmatpush1.msra.mxu0 0.0
    %593 = vmatprep.subr.mxu0 0.0
    %594 = vmatpush1.msra.mxu0 0.0
    %595 = vmatprep.subr.mxu0 0.0
    %596 = vmatpush1.msra.mxu0 0.0
    %597 = vmatprep.subr.mxu0 0.0
    %598 = vmatpush1.msra.mxu0 0.0
    %599 = vmatprep.subr.mxu0 0.0
    %600 = vmatpush1.msra.mxu0 0.0
    %601 = vmatprep.subr.mxu0 0.0
    %602 = vmatpush1.msra.mxu0 0.0
    %603 = vmatprep.subr.mxu0 0.0
    %604 = vmatpush1.msra.mxu0 0.0
    %605 = vmatprep.subr.mxu0 0.0
    %606 = vmatpush1.msra.mxu0 0.0
    %607 = vmatprep.subr.mxu0 0.0
    %608 = vmatpush1.msra.mxu0 %v556
    %609 = vmatprep.subr.mxu0 0.0
    %610 = vmatpush1.msra.mxu0 %v555
    %611 = vmatprep.subr.mxu0 0.0
    %612 = vmatpush1.msra.mxu0 %v554
    %613 = vmatprep.subr.mxu0 0.0
    %614 = vmatpush1.msra.mxu0 %v553
    %615 = vmatprep.subr.mxu0 0.0
    %616 = vmatpush2.msra.mxu0 0.0
    %617 = vmatprep.subr.mxu0 0.0
    %618 = vmatpush2.msra.mxu0 0.0
    %619 = vmatprep.subr.mxu0 0.0
    %620 = vmatpush2.msra.mxu0 0.0
    %621 = vmatprep.subr.mxu0 0.0
    %622 = vmatpush2.msra.mxu0 0.0
    %623 = vmatprep.subr.mxu0 0.0
    %624 = vmatpush2.msra.mxu0 0.0
    %625 = vmatprep.subr.mxu0 0.0
    %626 = vmatpush2.msra.mxu0 0.0
    %627 = vmatprep.subr.mxu0 0.0
    %628 = vmatpush2.msra.mxu0 0.0
    %629 = vmatprep.subr.mxu0 0.0
    %630 = vmatpush2.msra.mxu0 0.0
    %631 = vmatprep.subr.mxu0 0.0
    %632 = vmatpush2.msra.mxu0 0.0
    %633 = vmatprep.subr.mxu0 0.0
    %634 = vmatpush2.msra.mxu0 0.0
    %635 = vmatprep.subr.mxu0 0.0
    %636 = vmatpush2.msra.mxu0 0.0
    %637 = vmatprep.subr.mxu0 0.0
    %638 = vmatpush2.msra.mxu0 0.0
    %639 = vmatprep.subr.mxu0 0.0
    %640 = vmatpush2.msra.mxu0 0.0
    %641 = vmatprep.subr.mxu0 0.0
    %642 = vmatpush2.msra.mxu0 0.0
    %643 = vmatprep.subr.mxu0 0.0
    %644 = vmatpush2.msra.mxu0 0.0
    %645 = vmatprep.subr.mxu0 0.0
    %646 = vmatpush2.msra.mxu0 0.0
    %647 = vmatprep.mubr.f32.mxu0 0.0
    %648 = vmatmul.mubr.f32.gmra.mxu0 %v581
    %v649 = vpop.f32.mrf.mxu0
    %v650 = vadd.f32 0.0, %v649
    %v651 = vpop.f32.mrf.mxu0
    %652 = vdwg.mxu0
    %v653 = vadd.f32 %v578, %v650
    %v654 = vxor.u32 %v653, 2147483648
    %v655 = vmul.f32 %v654, 1.442695
    %v656 = vpow.pop %v655
    %v657 = vadd.f32 %v656, 1.0
    %v658 = vrcp.pop %v657
    %v659 = vmul.f32 1.0, %v658
    %v660 = vtanh.pop %v653
    %v661 = vmul.f32 %v659, 0.0
    %663 = vrot.lane.b32.xlu0 %v660, 64
    %v664 = vpop.permute.xlu0 %663
    %v666 = vmul.f32 %v659, %v664
    %668 = vrot.lane.b32.xlu0 %v666, 32
    %v669 = vpop.permute.xlu0 %668
    %v671 = vadd.f32 %v661, %v669
    %v672 = vtanh.pop %v671
    %674 = vrot.lane.b32.xlu0 %v672, 64
    %v675 = vpop.permute.xlu0 %674
    %v677 = vmul.f32 %v659, %v675
    %v679 = vrot.slane %v461, 3
    %v681 = vsel %vm577, %v461, %v679
    %682 = vmatprep.subr.mxu0 0.0
    %683 = vmatpush1.msra.mxu0 0.0
    %684 = vmatprep.subr.mxu0 0.0
    %685 = vmatpush1.msra.mxu0 0.0
    %686 = vmatprep.subr.mxu0 0.0
    %687 = vmatpush1.msra.mxu0 0.0
    %688 = vmatprep.subr.mxu0 0.0
    %689 = vmatpush1.msra.mxu0 0.0
    %690 = vmatprep.subr.mxu0 0.0
    %691 = vmatpush1.msra.mxu0 0.0
    %692 = vmatprep.subr.mxu0 0.0
    %693 = vmatpush1.msra.mxu0 0.0
    %694 = vmatprep.subr.mxu0 0.0
    %695 = vmatpush1.msra.mxu0 0.0
    %696 = vmatprep.subr.mxu0 0.0
    %697 = vmatpush1.msra.mxu0 0.0
    %698 = vmatprep.subr.mxu0 0.0
    %699 = vmatpush1.msra.mxu0 0.0
    %700 = vmatprep.subr.mxu0 0.0
    %701 = vmatpush1.msra.mxu0 0.0
    %702 = vmatprep.subr.mxu0 0.0
    %703 = vmatpush1.msra.mxu0 0.0
    %704 = vmatprep.subr.mxu0 0.0
    %705 = vmatpush1.msra.mxu0 0.0
    %706 = vmatprep.subr.mxu0 0.0
    %707 = vmatpush1.msra.mxu0 %v560
    %708 = vmatprep.subr.mxu0 0.0
    %709 = vmatpush1.msra.mxu0 %v559
    %710 = vmatprep.subr.mxu0 0.0
    %711 = vmatpush1.msra.mxu0 %v558
    %712 = vmatprep.subr.mxu0 0.0
    %713 = vmatpush1.msra.mxu0 %v557
    %714 = vmatprep.subr.mxu0 0.0
    %715 = vmatpush2.msra.mxu0 0.0
    %716 = vmatprep.subr.mxu0 0.0
    %717 = vmatpush2.msra.mxu0 0.0
    %718 = vmatprep.subr.mxu0 0.0
    %719 = vmatpush2.msra.mxu0 0.0
    %720 = vmatprep.subr.mxu0 0.0
    %721 = vmatpush2.msra.mxu0 0.0
    %722 = vmatprep.subr.mxu0 0.0
    %723 = vmatpush2.msra.mxu0 0.0
    %724 = vmatprep.subr.mxu0 0.0
    %725 = vmatpush2.msra.mxu0 0.0
    %726 = vmatprep.subr.mxu0 0.0
    %727 = vmatpush2.msra.mxu0 0.0
    %728 = vmatprep.subr.mxu0 0.0
    %729 = vmatpush2.msra.mxu0 0.0
    %730 = vmatprep.subr.mxu0 0.0
    %731 = vmatpush2.msra.mxu0 0.0
    %732 = vmatprep.subr.mxu0 0.0
    %733 = vmatpush2.msra.mxu0 0.0
    %734 = vmatprep.subr.mxu0 0.0
    %735 = vmatpush2.msra.mxu0 0.0
    %736 = vmatprep.subr.mxu0 0.0
    %737 = vmatpush2.msra.mxu0 0.0
    %738 = vmatprep.subr.mxu0 0.0
    %739 = vmatpush2.msra.mxu0 0.0
    %740 = vmatprep.subr.mxu0 0.0
    %741 = vmatpush2.msra.mxu0 0.0
    %742 = vmatprep.subr.mxu0 0.0
    %743 = vmatpush2.msra.mxu0 0.0
    %744 = vmatprep.subr.mxu0 0.0
    %745 = vmatpush2.msra.mxu0 0.0
    %746 = vmatprep.mubr.f32.mxu0 0.0
    %747 = vmatmul.mubr.f32.gmra.mxu0 %v581
    %v748 = vpop.f32.mrf.mxu0
    %v749 = vadd.f32 0.0, %v748
    %v750 = vpop.f32.mrf.mxu0
    %751 = vdwg.mxu0
    %v752 = vadd.f32 %v681, %v749
    %v753 = vxor.u32 %v752, 2147483648
    %v754 = vmul.f32 %v753, 1.442695
    %v755 = vpow.pop %v754
    %v756 = vadd.f32 %v755, 1.0
    %v757 = vrcp.pop %v756
    %v758 = vmul.f32 1.0, %v757
    %v759 = vtanh.pop %v752
    %v760 = vmul.f32 %v758, 0.0
    %762 = vrot.lane.b32.xlu0 %v759, 64
    %v763 = vpop.permute.xlu0 %762
    %v765 = vmul.f32 %v758, %v763
    %767 = vrot.lane.b32.xlu0 %v765, 32
    %v768 = vpop.permute.xlu0 %767
    %v770 = vadd.f32 %v760, %v768
    %v771 = vtanh.pop %v770
    %773 = vrot.lane.b32.xlu0 %v771, 64
    %v774 = vpop.permute.xlu0 %773
    %v776 = vmul.f32 %v758, %v774
    %778 = vrot.lane.b32.xlu0 %v677, 32
    %v779 = vpop.permute.xlu0 %778
    %v780 = vsel %vm579, %v779, 0
    %782 = vmatprep.subr.mxu0 0.0
    %783 = vmatpush1.msra.mxu0 0.0
    %784 = vmatprep.subr.mxu0 0.0
    %785 = vmatpush1.msra.mxu0 0.0
    %786 = vmatprep.subr.mxu0 0.0
    %787 = vmatpush1.msra.mxu0 0.0
    %788 = vmatprep.subr.mxu0 0.0
    %789 = vmatpush1.msra.mxu0 0.0
    %790 = vmatprep.subr.mxu0 0.0
    %791 = vmatpush1.msra.mxu0 0.0
    %792 = vmatprep.subr.mxu0 0.0
    %793 = vmatpush1.msra.mxu0 0.0
    %794 = vmatprep.subr.mxu0 0.0
    %795 = vmatpush1.msra.mxu0 0.0
    %796 = vmatprep.subr.mxu0 0.0
    %797 = vmatpush1.msra.mxu0 0.0
    %798 = vmatprep.subr.mxu0 0.0
    %799 = vmatpush1.msra.mxu0 0.0
    %800 = vmatprep.subr.mxu0 0.0
    %801 = vmatpush1.msra.mxu0 0.0
    %802 = vmatprep.subr.mxu0 0.0
    %803 = vmatpush1.msra.mxu0 0.0
    %804 = vmatprep.subr.mxu0 0.0
    %805 = vmatpush1.msra.mxu0 0.0
    %806 = vmatprep.subr.mxu0 0.0
    %807 = vmatpush1.msra.mxu0 %v572
    %808 = vmatprep.subr.mxu0 0.0
    %809 = vmatpush1.msra.mxu0 %v571
    %810 = vmatprep.subr.mxu0 0.0
    %811 = vmatpush1.msra.mxu0 %v570
    %812 = vmatprep.subr.mxu0 0.0
    %813 = vmatpush1.msra.mxu0 %v569
    %814 = vmatprep.subr.mxu0 0.0
    %815 = vmatpush2.msra.mxu0 0.0
    %816 = vmatprep.subr.mxu0 0.0
    %817 = vmatpush2.msra.mxu0 0.0
    %818 = vmatprep.subr.mxu0 0.0
    %819 = vmatpush2.msra.mxu0 0.0
    %820 = vmatprep.subr.mxu0 0.0
    %821 = vmatpush2.msra.mxu0 0.0
    %822 = vmatprep.subr.mxu0 0.0
    %823 = vmatpush2.msra.mxu0 0.0
    %824 = vmatprep.subr.mxu0 0.0
    %825 = vmatpush2.msra.mxu0 0.0
    %826 = vmatprep.subr.mxu0 0.0
    %827 = vmatpush2.msra.mxu0 0.0
    %828 = vmatprep.subr.mxu0 0.0
    %829 = vmatpush2.msra.mxu0 0.0
    %830 = vmatprep.subr.mxu0 0.0
    %831 = vmatpush2.msra.mxu0 0.0
    %832 = vmatprep.subr.mxu0 0.0
    %833 = vmatpush2.msra.mxu0 0.0
    %834 = vmatprep.subr.mxu0 0.0
    %835 = vmatpush2.msra.mxu0 0.0
    %836 = vmatprep.subr.mxu0 0.0
    %837 = vmatpush2.msra.mxu0 0.0
    %838 = vmatprep.subr.mxu0 0.0
    %839 = vmatpush2.msra.mxu0 0.0
    %840 = vmatprep.subr.mxu0 0.0
    %841 = vmatpush2.msra.mxu0 0.0
    %842 = vmatprep.subr.mxu0 0.0
    %843 = vmatpush2.msra.mxu0 0.0
    %844 = vmatprep.subr.mxu0 0.0
    %845 = vmatpush2.msra.mxu0 0.0
    %846 = vmatprep.mubr.f32.mxu0 0.0
    %847 = vmatmul.mubr.f32.gmra.mxu0 %v780
    %v848 = vpop.f32.mrf.mxu0
    %v849 = vadd.f32 0.0, %v848
    %v850 = vpop.f32.mrf.mxu0
    %851 = vdwg.mxu0
    %853 = vrot.lane.b32.xlu0 %v776, 32
    %v854 = vpop.permute.xlu0 %853
    %v855 = vsel %vm579, %v854, 0
    %857 = vmatprep.subr.mxu0 0.0
    %858 = vmatpush1.msra.mxu0 0.0
    %859 = vmatprep.subr.mxu0 0.0
    %860 = vmatpush1.msra.mxu0 0.0
    %861 = vmatprep.subr.mxu0 0.0
    %862 = vmatpush1.msra.mxu0 0.0
    %863 = vmatprep.subr.mxu0 0.0
    %864 = vmatpush1.msra.mxu0 0.0
    %865 = vmatprep.subr.mxu0 0.0
    %866 = vmatpush1.msra.mxu0 0.0
    %867 = vmatprep.subr.mxu0 0.0
    %868 = vmatpush1.msra.mxu0 0.0
    %869 = vmatprep.subr.mxu0 0.0
    %870 = vmatpush1.msra.mxu0 0.0
    %871 = vmatprep.subr.mxu0 0.0
    %872 = vmatpush1.msra.mxu0 0.0
    %873 = vmatprep.subr.mxu0 0.0
    %874 = vmatpush1.msra.mxu0 0.0
    %875 = vmatprep.subr.mxu0 0.0
    %876 = vmatpush1.msra.mxu0 0.0
    %877 = vmatprep.subr.mxu0 0.0
    %878 = vmatpush1.msra.mxu0 0.0
    %879 = vmatprep.subr.mxu0 0.0
    %880 = vmatpush1.msra.mxu0 0.0
    %881 = vmatprep.subr.mxu0 0.0
    %882 = vmatpush1.msra.mxu0 %v568
    %883 = vmatprep.subr.mxu0 0.0
    %884 = vmatpush1.msra.mxu0 %v567
    %885 = vmatprep.subr.mxu0 0.0
    %886 = vmatpush1.msra.mxu0 %v566
    %887 = vmatprep.subr.mxu0 0.0
    %888 = vmatpush1.msra.mxu0 %v565
    %889 = vmatprep.subr.mxu0 0.0
    %890 = vmatpush2.msra.mxu0 0.0
    %891 = vmatprep.subr.mxu0 0.0
    %892 = vmatpush2.msra.mxu0 0.0
    %893 = vmatprep.subr.mxu0 0.0
    %894 = vmatpush2.msra.mxu0 0.0
    %895 = vmatprep.subr.mxu0 0.0
    %896 = vmatpush2.msra.mxu0 0.0
    %897 = vmatprep.subr.mxu0 0.0
    %898 = vmatpush2.msra.mxu0 0.0
    %899 = vmatprep.subr.mxu0 0.0
    %900 = vmatpush2.msra.mxu0 0.0
    %901 = vmatprep.subr.mxu0 0.0
    %902 = vmatpush2.msra.mxu0 0.0
    %903 = vmatprep.subr.mxu0 0.0
    %904 = vmatpush2.msra.mxu0 0.0
    %905 = vmatprep.subr.mxu0 0.0
    %906 = vmatpush2.msra.mxu0 0.0
    %907 = vmatprep.subr.mxu0 0.0
    %908 = vmatpush2.msra.mxu0 0.0
    %909 = vmatprep.subr.mxu0 0.0
    %910 = vmatpush2.msra.mxu0 0.0
    %911 = vmatprep.subr.mxu0 0.0
    %912 = vmatpush2.msra.mxu0 0.0
    %913 = vmatprep.subr.mxu0 0.0
    %914 = vmatpush2.msra.mxu0 0.0
    %915 = vmatprep.subr.mxu0 0.0
    %916 = vmatpush2.msra.mxu0 0.0
    %917 = vmatprep.subr.mxu0 0.0
    %918 = vmatpush2.msra.mxu0 0.0
    %919 = vmatprep.subr.mxu0 0.0
    %920 = vmatpush2.msra.mxu0 0.0
    %921 = vmatprep.mubr.f32.mxu0 0.0
    %922 = vmatmul.mubr.f32.gmra.mxu0 %v855
    %v923 = vpop.f32.mrf.mxu0
    %v924 = vadd.f32 %v849, %v923
    %v925 = vpop.f32.mrf.mxu0
    %926 = vdwg.mxu0
    %v928 = vlaneseq
    %v929 = vshrl.u32 %v928, 7
    %v930 = vsub.s32 0, %v929
    %v931 = vrot.slane %v573, %v930
    %v933 = vadd.f32 %v924, %v931
    %934 = vmatprep.subr.mxu0 0.0
    %935 = vmatpush1.msra.mxu0 0.0
    %936 = vmatprep.subr.mxu0 0.0
    %937 = vmatpush1.msra.mxu0 0.0
    %938 = vmatprep.subr.mxu0 0.0
    %939 = vmatpush1.msra.mxu0 0.0
    %940 = vmatprep.subr.mxu0 0.0
    %941 = vmatpush1.msra.mxu0 0.0
    %942 = vmatprep.subr.mxu0 0.0
    %943 = vmatpush1.msra.mxu0 0.0
    %944 = vmatprep.subr.mxu0 0.0
    %945 = vmatpush1.msra.mxu0 0.0
    %946 = vmatprep.subr.mxu0 0.0
    %947 = vmatpush1.msra.mxu0 0.0
    %948 = vmatprep.subr.mxu0 0.0
    %949 = vmatpush1.msra.mxu0 0.0
    %950 = vmatprep.subr.mxu0 0.0
    %951 = vmatpush1.msra.mxu0 0.0
    %952 = vmatprep.subr.mxu0 0.0
    %953 = vmatpush1.msra.mxu0 0.0
    %954 = vmatprep.subr.mxu0 0.0
    %955 = vmatpush1.msra.mxu0 0.0
    %956 = vmatprep.subr.mxu0 0.0
    %957 = vmatpush1.msra.mxu0 0.0
    %958 = vmatprep.subr.mxu0 0.0
    %959 = vmatpush1.msra.mxu0 %v564
    %960 = vmatprep.subr.mxu0 0.0
    %961 = vmatpush1.msra.mxu0 %v563
    %962 = vmatprep.subr.mxu0 0.0
    %963 = vmatpush1.msra.mxu0 %v562
    %964 = vmatprep.subr.mxu0 0.0
    %965 = vmatpush1.msra.mxu0 %v561
    %966 = vmatprep.subr.mxu0 0.0
    %967 = vmatpush2.msra.mxu0 0.0
    %968 = vmatprep.subr.mxu0 0.0
    %969 = vmatpush2.msra.mxu0 0.0
    %970 = vmatprep.subr.mxu0 0.0
    %971 = vmatpush2.msra.mxu0 0.0
    %972 = vmatprep.subr.mxu0 0.0
    %973 = vmatpush2.msra.mxu0 0.0
    %974 = vmatprep.subr.mxu0 0.0
    %975 = vmatpush2.msra.mxu0 0.0
    %976 = vmatprep.subr.mxu0 0.0
    %977 = vmatpush2.msra.mxu0 0.0
    %978 = vmatprep.subr.mxu0 0.0
    %979 = vmatpush2.msra.mxu0 0.0
    %980 = vmatprep.subr.mxu0 0.0
    %981 = vmatpush2.msra.mxu0 0.0
    %982 = vmatprep.subr.mxu0 0.0
    %983 = vmatpush2.msra.mxu0 0.0
    %984 = vmatprep.subr.mxu0 0.0
    %985 = vmatpush2.msra.mxu0 0.0
    %986 = vmatprep.subr.mxu0 0.0
    %987 = vmatpush2.msra.mxu0 0.0
    %988 = vmatprep.subr.mxu0 0.0
    %989 = vmatpush2.msra.mxu0 0.0
    %990 = vmatprep.subr.mxu0 0.0
    %991 = vmatpush2.msra.mxu0 0.0
    %992 = vmatprep.subr.mxu0 0.0
    %993 = vmatpush2.msra.mxu0 0.0
    %994 = vmatprep.subr.mxu0 0.0
    %995 = vmatpush2.msra.mxu0 0.0
    %996 = vmatprep.subr.mxu0 0.0
    %997 = vmatpush2.msra.mxu0 0.0
    %998 = vmatprep.mubr.f32.mxu0 0.0
    %999 = vmatmul.mubr.f32.gmra.mxu0 %v581
    %v1000 = vpop.f32.mrf.mxu0
    %v1001 = vadd.f32 0.0, %v1000
    %v1002 = vpop.f32.mrf.mxu0
    %1003 = vdwg.mxu0
    %v1004 = vadd.f32 %v933, %v1001
    %v1005 = vxor.u32 %v1004, 2147483648
    %v1006 = vmul.f32 %v1005, 1.442695
    %v1007 = vpow.pop %v1006
    %v1008 = vadd.f32 %v1007, 1.0
    %v1009 = vrcp.pop %v1008
    %v1010 = vmul.f32 1.0, %v1009
    %v1011 = vtanh.pop %v1004
    %v1012 = vmul.f32 %v1010, 0.0
    %1014 = vrot.lane.b32.xlu0 %v1011, 64
    %v1015 = vpop.permute.xlu0 %1014
    %v1017 = vmul.f32 %v1010, %v1015
    %1019 = vrot.lane.b32.xlu0 %v1017, 32
    %v1020 = vpop.permute.xlu0 %1019
    %v1022 = vadd.f32 %v1012, %v1020
    %v1023 = vtanh.pop %v1022
    %1025 = vrot.lane.b32.xlu0 %v1023, 64
    %v1026 = vpop.permute.xlu0 %1025
    %v1028 = vmul.f32 %v1010, %v1026
    %v1029 = vrot.slane %v371, 1
    %v1031 = vrot.slane %v371, 4
    %v1033 = vsel %vm577, %v1029, %v1031
    %1034 = vmatprep.subr.mxu0 0.0
    %1035 = vmatpush1.msra.mxu0 0.0
    %1036 = vmatprep.subr.mxu0 0.0
    %1037 = vmatpush1.msra.mxu0 0.0
    %1038 = vmatprep.subr.mxu0 0.0
    %1039 = vmatpush1.msra.mxu0 0.0
    %1040 = vmatprep.subr.mxu0 0.0
    %1041 = vmatpush1.msra.mxu0 0.0
    %1042 = vmatprep.subr.mxu0 0.0
    %1043 = vmatpush1.msra.mxu0 0.0
    %1044 = vmatprep.subr.mxu0 0.0
    %1045 = vmatpush1.msra.mxu0 0.0
    %1046 = vmatprep.subr.mxu0 0.0
    %1047 = vmatpush1.msra.mxu0 0.0
    %1048 = vmatprep.subr.mxu0 0.0
    %1049 = vmatpush1.msra.mxu0 0.0
    %1050 = vmatprep.subr.mxu0 0.0
    %1051 = vmatpush1.msra.mxu0 0.0
    %1052 = vmatprep.subr.mxu0 0.0
    %1053 = vmatpush1.msra.mxu0 0.0
    %1054 = vmatprep.subr.mxu0 0.0
    %1055 = vmatpush1.msra.mxu0 0.0
    %1056 = vmatprep.subr.mxu0 0.0
    %1057 = vmatpush1.msra.mxu0 0.0
    %1058 = vmatprep.subr.mxu0 0.0
    %1059 = vmatpush1.msra.mxu0 %v556
    %1060 = vmatprep.subr.mxu0 0.0
    %1061 = vmatpush1.msra.mxu0 %v555
    %1062 = vmatprep.subr.mxu0 0.0
    %1063 = vmatpush1.msra.mxu0 %v554
    %1064 = vmatprep.subr.mxu0 0.0
    %1065 = vmatpush1.msra.mxu0 %v553
    %1066 = vmatprep.subr.mxu0 0.0
    %1067 = vmatpush2.msra.mxu0 0.0
    %1068 = vmatprep.subr.mxu0 0.0
    %1069 = vmatpush2.msra.mxu0 0.0
    %1070 = vmatprep.subr.mxu0 0.0
    %1071 = vmatpush2.msra.mxu0 0.0
    %1072 = vmatprep.subr.mxu0 0.0
    %1073 = vmatpush2.msra.mxu0 0.0
    %1074 = vmatprep.subr.mxu0 0.0
    %1075 = vmatpush2.msra.mxu0 0.0
    %1076 = vmatprep.subr.mxu0 0.0
    %1077 = vmatpush2.msra.mxu0 0.0
    %1078 = vmatprep.subr.mxu0 0.0
    %1079 = vmatpush2.msra.mxu0 0.0
    %1080 = vmatprep.subr.mxu0 0.0
    %1081 = vmatpush2.msra.mxu0 0.0
    %1082 = vmatprep.subr.mxu0 0.0
    %1083 = vmatpush2.msra.mxu0 0.0
    %1084 = vmatprep.subr.mxu0 0.0
    %1085 = vmatpush2.msra.mxu0 0.0
    %1086 = vmatprep.subr.mxu0 0.0
    %1087 = vmatpush2.msra.mxu0 0.0
    %1088 = vmatprep.subr.mxu0 0.0
    %1089 = vmatpush2.msra.mxu0 0.0
    %1090 = vmatprep.subr.mxu0 0.0
    %1091 = vmatpush2.msra.mxu0 0.0
    %1092 = vmatprep.subr.mxu0 0.0
    %1093 = vmatpush2.msra.mxu0 0.0
    %1094 = vmatprep.subr.mxu0 0.0
    %1095 = vmatpush2.msra.mxu0 0.0
    %1096 = vmatprep.subr.mxu0 0.0
    %1097 = vmatpush2.msra.mxu0 0.0
    %1098 = vmatprep.mubr.f32.mxu0 0.0
    %1099 = vmatmul.mubr.f32.gmra.mxu0 %v780
    %v1100 = vpop.f32.mrf.mxu0
    %v1101 = vadd.f32 0.0, %v1100
    %v1102 = vpop.f32.mrf.mxu0
    %1103 = vdwg.mxu0
    %v1104 = vadd.f32 %v1033, %v1101
    %v1105 = vxor.u32 %v1104, 2147483648
    %v1106 = vmul.f32 %v1105, 1.442695
    %v1107 = vpow.pop %v1106
    %v1108 = vadd.f32 %v1107, 1.0
    %v1109 = vrcp.pop %v1108
    %v1110 = vmul.f32 1.0, %v1109
    %v1111 = vtanh.pop %v1104
    %v1112 = vmul.f32 %v1110, %v671
    %1114 = vrot.lane.b32.xlu0 %v1111, 64
    %v1115 = vpop.permute.xlu0 %1114
    %v1117 = vmul.f32 %v1110, %v1115
    %1119 = vrot.lane.b32.xlu0 %v1117, 32
    %v1120 = vpop.permute.xlu0 %1119
    %v1122 = vadd.f32 %v1112, %v1120
    %v1123 = vtanh.pop %v1122
    %1125 = vrot.lane.b32.xlu0 %v1123, 64
    %v1126 = vpop.permute.xlu0 %1125
    %v1128 = vmul.f32 %v1110, %v1126
    %v1129 = vrot.slane %v461, 1
    %v1131 = vrot.slane %v461, 4
    %v1133 = vsel %vm577, %v1129, %v1131
    %1134 = vmatprep.subr.mxu0 0.0
    %1135 = vmatpush1.msra.mxu0 0.0
    %1136 = vmatprep.subr.mxu0 0.0
    %1137 = vmatpush1.msra.mxu0 0.0
    %1138 = vmatprep.subr.mxu0 0.0
    %1139 = vmatpush1.msra.mxu0 0.0
    %1140 = vmatprep.subr.mxu0 0.0
    %1141 = vmatpush1.msra.mxu0 0.0
    %1142 = vmatprep.subr.mxu0 0.0
    %1143 = vmatpush1.msra.mxu0 0.0
    %1144 = vmatprep.subr.mxu0 0.0
    %1145 = vmatpush1.msra.mxu0 0.0
    %1146 = vmatprep.subr.mxu0 0.0
    %1147 = vmatpush1.msra.mxu0 0.0
    %1148 = vmatprep.subr.mxu0 0.0
    %1149 = vmatpush1.msra.mxu0 0.0
    %1150 = vmatprep.subr.mxu0 0.0
    %1151 = vmatpush1.msra.mxu0 0.0
    %1152 = vmatprep.subr.mxu0 0.0
    %1153 = vmatpush1.msra.mxu0 0.0
    %1154 = vmatprep.subr.mxu0 0.0
    %1155 = vmatpush1.msra.mxu0 0.0
    %1156 = vmatprep.subr.mxu0 0.0
    %1157 = vmatpush1.msra.mxu0 0.0
    %1158 = vmatprep.subr.mxu0 0.0
    %1159 = vmatpush1.msra.mxu0 %v560
    %1160 = vmatprep.subr.mxu0 0.0
    %1161 = vmatpush1.msra.mxu0 %v559
    %1162 = vmatprep.subr.mxu0 0.0
    %1163 = vmatpush1.msra.mxu0 %v558
    %1164 = vmatprep.subr.mxu0 0.0
    %1165 = vmatpush1.msra.mxu0 %v557
    %1166 = vmatprep.subr.mxu0 0.0
    %1167 = vmatpush2.msra.mxu0 0.0
    %1168 = vmatprep.subr.mxu0 0.0
    %1169 = vmatpush2.msra.mxu0 0.0
    %1170 = vmatprep.subr.mxu0 0.0
    %1171 = vmatpush2.msra.mxu0 0.0
    %1172 = vmatprep.subr.mxu0 0.0
    %1173 = vmatpush2.msra.mxu0 0.0
    %1174 = vmatprep.subr.mxu0 0.0
    %1175 = vmatpush2.msra.mxu0 0.0
    %1176 = vmatprep.subr.mxu0 0.0
    %1177 = vmatpush2.msra.mxu0 0.0
    %1178 = vmatprep.subr.mxu0 0.0
    %1179 = vmatpush2.msra.mxu0 0.0
    %1180 = vmatprep.subr.mxu0 0.0
    %1181 = vmatpush2.msra.mxu0 0.0
    %1182 = vmatprep.subr.mxu0 0.0
    %1183 = vmatpush2.msra.mxu0 0.0
    %1184 = vmatprep.subr.mxu0 0.0
    %1185 = vmatpush2.msra.mxu0 0.0
    %1186 = vmatprep.subr.mxu0 0.0
    %1187 = vmatpush2.msra.mxu0 0.0
    %1188 = vmatprep.subr.mxu0 0.0
    %1189 = vmatpush2.msra.mxu0 0.0
    %1190 = vmatprep.subr.mxu0 0.0
    %1191 = vmatpush2.msra.mxu0 0.0
    %1192 = vmatprep.subr.mxu0 0.0
    %1193 = vmatpush2.msra.mxu0 0.0
    %1194 = vmatprep.subr.mxu0 0.0
    %1195 = vmatpush2.msra.mxu0 0.0
    %1196 = vmatprep.subr.mxu0 0.0
    %1197 = vmatpush2.msra.mxu0 0.0
    %1198 = vmatprep.mubr.f32.mxu0 0.0
    %1199 = vmatmul.mubr.f32.gmra.mxu0 %v855
    %v1200 = vpop.f32.mrf.mxu0
    %v1201 = vadd.f32 0.0, %v1200
    %v1202 = vpop.f32.mrf.mxu0
    %1203 = vdwg.mxu0
    %v1204 = vadd.f32 %v1133, %v1201
    %v1205 = vxor.u32 %v1204, 2147483648
    %v1206 = vmul.f32 %v1205, 1.442695
    %v1207 = vpow.pop %v1206
    %v1208 = vadd.f32 %v1207, 1.0
    %v1209 = vrcp.pop %v1208
    %v1210 = vmul.f32 1.0, %v1209
    %v1211 = vtanh.pop %v1204
    %v1212 = vmul.f32 %v1210, %v770
    %1214 = vrot.lane.b32.xlu0 %v1211, 64
    %v1215 = vpop.permute.xlu0 %1214
    %v1217 = vmul.f32 %v1210, %v1215
    %1219 = vrot.lane.b32.xlu0 %v1217, 32
    %v1220 = vpop.permute.xlu0 %1219
    %v1222 = vadd.f32 %v1212, %v1220
    %v1223 = vtanh.pop %v1222
    %1225 = vrot.lane.b32.xlu0 %v1223, 64
    %v1226 = vpop.permute.xlu0 %1225
    %v1228 = vmul.f32 %v1210, %v1226
    %1230 = vrot.lane.b32.xlu0 %v1128, 32
    %v1231 = vpop.permute.xlu0 %1230
    %v1232 = vsel %vm579, %v1231, 0
    %1234 = vmatprep.subr.mxu0 0.0
    %1235 = vmatpush1.msra.mxu0 0.0
    %1236 = vmatprep.subr.mxu0 0.0
    %1237 = vmatpush1.msra.mxu0 0.0
    %1238 = vmatprep.subr.mxu0 0.0
    %1239 = vmatpush1.msra.mxu0 0.0
    %1240 = vmatprep.subr.mxu0 0.0
    %1241 = vmatpush1.msra.mxu0 0.0
    %1242 = vmatprep.subr.mxu0 0.0
    %1243 = vmatpush1.msra.mxu0 0.0
    %1244 = vmatprep.subr.mxu0 0.0
    %1245 = vmatpush1.msra.mxu0 0.0
    %1246 = vmatprep.subr.mxu0 0.0
    %1247 = vmatpush1.msra.mxu0 0.0
    %1248 = vmatprep.subr.mxu0 0.0
    %1249 = vmatpush1.msra.mxu0 0.0
    %1250 = vmatprep.subr.mxu0 0.0
    %1251 = vmatpush1.msra.mxu0 0.0
    %1252 = vmatprep.subr.mxu0 0.0
    %1253 = vmatpush1.msra.mxu0 0.0
    %1254 = vmatprep.subr.mxu0 0.0
    %1255 = vmatpush1.msra.mxu0 0.0
    %1256 = vmatprep.subr.mxu0 0.0
    %1257 = vmatpush1.msra.mxu0 0.0
    %1258 = vmatprep.subr.mxu0 0.0
    %1259 = vmatpush1.msra.mxu0 %v572
    %1260 = vmatprep.subr.mxu0 0.0
    %1261 = vmatpush1.msra.mxu0 %v571
    %1262 = vmatprep.subr.mxu0 0.0
    %1263 = vmatpush1.msra.mxu0 %v570
    %1264 = vmatprep.subr.mxu0 0.0
    %1265 = vmatpush1.msra.mxu0 %v569
    %1266 = vmatprep.subr.mxu0 0.0
    %1267 = vmatpush2.msra.mxu0 0.0
    %1268 = vmatprep.subr.mxu0 0.0
    %1269 = vmatpush2.msra.mxu0 0.0
    %1270 = vmatprep.subr.mxu0 0.0
    %1271 = vmatpush2.msra.mxu0 0.0
    %1272 = vmatprep.subr.mxu0 0.0
    %1273 = vmatpush2.msra.mxu0 0.0
    %1274 = vmatprep.subr.mxu0 0.0
    %1275 = vmatpush2.msra.mxu0 0.0
    %1276 = vmatprep.subr.mxu0 0.0
    %1277 = vmatpush2.msra.mxu0 0.0
    %1278 = vmatprep.subr.mxu0 0.0
    %1279 = vmatpush2.msra.mxu0 0.0
    %1280 = vmatprep.subr.mxu0 0.0
    %1281 = vmatpush2.msra.mxu0 0.0
    %1282 = vmatprep.subr.mxu0 0.0
    %1283 = vmatpush2.msra.mxu0 0.0
    %1284 = vmatprep.subr.mxu0 0.0
    %1285 = vmatpush2.msra.mxu0 0.0
    %1286 = vmatprep.subr.mxu0 0.0
    %1287 = vmatpush2.msra.mxu0 0.0
    %1288 = vmatprep.subr.mxu0 0.0
    %1289 = vmatpush2.msra.mxu0 0.0
    %1290 = vmatprep.subr.mxu0 0.0
    %1291 = vmatpush2.msra.mxu0 0.0
    %1292 = vmatprep.subr.mxu0 0.0
    %1293 = vmatpush2.msra.mxu0 0.0
    %1294 = vmatprep.subr.mxu0 0.0
    %1295 = vmatpush2.msra.mxu0 0.0
    %1296 = vmatprep.subr.mxu0 0.0
    %1297 = vmatpush2.msra.mxu0 0.0
    %1298 = vmatprep.mubr.f32.mxu0 0.0
    %1299 = vmatmul.mubr.f32.gmra.mxu0 %v1232
    %v1300 = vpop.f32.mrf.mxu0
    %v1301 = vadd.f32 0.0, %v1300
    %v1302 = vpop.f32.mrf.mxu0
    %1303 = vdwg.mxu0
    %1305 = vrot.lane.b32.xlu0 %v1228, 32
    %v1306 = vpop.permute.xlu0 %1305
    %v1307 = vsel %vm579, %v1306, 0
    %1309 = vmatprep.subr.mxu0 0.0
    %1310 = vmatpush1.msra.mxu0 0.0
    %1311 = vmatprep.subr.mxu0 0.0
    %1312 = vmatpush1.msra.mxu0 0.0
    %1313 = vmatprep.subr.mxu0 0.0
    %1314 = vmatpush1.msra.mxu0 0.0
    %1315 = vmatprep.subr.mxu0 0.0
    %1316 = vmatpush1.msra.mxu0 0.0
    %1317 = vmatprep.subr.mxu0 0.0
    %1318 = vmatpush1.msra.mxu0 0.0
    %1319 = vmatprep.subr.mxu0 0.0
    %1320 = vmatpush1.msra.mxu0 0.0
    %1321 = vmatprep.subr.mxu0 0.0
    %1322 = vmatpush1.msra.mxu0 0.0
    %1323 = vmatprep.subr.mxu0 0.0
    %1324 = vmatpush1.msra.mxu0 0.0
    %1325 = vmatprep.subr.mxu0 0.0
    %1326 = vmatpush1.msra.mxu0 0.0
    %1327 = vmatprep.subr.mxu0 0.0
    %1328 = vmatpush1.msra.mxu0 0.0
    %1329 = vmatprep.subr.mxu0 0.0
    %1330 = vmatpush1.msra.mxu0 0.0
    %1331 = vmatprep.subr.mxu0 0.0
    %1332 = vmatpush1.msra.mxu0 0.0
    %1333 = vmatprep.subr.mxu0 0.0
    %1334 = vmatpush1.msra.mxu0 %v568
    %1335 = vmatprep.subr.mxu0 0.0
    %1336 = vmatpush1.msra.mxu0 %v567
    %1337 = vmatprep.subr.mxu0 0.0
    %1338 = vmatpush1.msra.mxu0 %v566
    %1339 = vmatprep.subr.mxu0 0.0
    %1340 = vmatpush1.msra.mxu0 %v565
    %1341 = vmatprep.subr.mxu0 0.0
    %1342 = vmatpush2.msra.mxu0 0.0
    %1343 = vmatprep.subr.mxu0 0.0
    %1344 = vmatpush2.msra.mxu0 0.0
    %1345 = vmatprep.subr.mxu0 0.0
    %1346 = vmatpush2.msra.mxu0 0.0
    %1347 = vmatprep.subr.mxu0 0.0
    %1348 = vmatpush2.msra.mxu0 0.0
    %1349 = vmatprep.subr.mxu0 0.0
    %1350 = vmatpush2.msra.mxu0 0.0
    %1351 = vmatprep.subr.mxu0 0.0
    %1352 = vmatpush2.msra.mxu0 0.0
    %1353 = vmatprep.subr.mxu0 0.0
    %1354 = vmatpush2.msra.mxu0 0.0
    %1355 = vmatprep.subr.mxu0 0.0
    %1356 = vmatpush2.msra.mxu0 0.0
    %1357 = vmatprep.subr.mxu0 0.0
    %1358 = vmatpush2.msra.mxu0 0.0
    %1359 = vmatprep.subr.mxu0 0.0
    %1360 = vmatpush2.msra.mxu0 0.0
    %1361 = vmatprep.subr.mxu0 0.0
    %1362 = vmatpush2.msra.mxu0 0.0
    %1363 = vmatprep.subr.mxu0 0.0
    %1364 = vmatpush2.msra.mxu0 0.0
    %1365 = vmatprep.subr.mxu0 0.0
    %1366 = vmatpush2.msra.mxu0 0.0
    %1367 = vmatprep.subr.mxu0 0.0
    %1368 = vmatpush2.msra.mxu0 0.0
    %1369 = vmatprep.subr.mxu0 0.0
    %1370 = vmatpush2.msra.mxu0 0.0
    %1371 = vmatprep.subr.mxu0 0.0
    %1372 = vmatpush2.msra.mxu0 0.0
    %1373 = vmatprep.mubr.f32.mxu0 0.0
    %1374 = vmatmul.mubr.f32.gmra.mxu0 %v1307
    %v1375 = vpop.f32.mrf.mxu0
    %v1376 = vadd.f32 %v1301, %v1375
    %v1377 = vpop.f32.mrf.mxu0
    %1378 = vdwg.mxu0
    %v1379 = vadd.f32 %v1376, %v931
    %1381 = vrot.lane.b32.xlu0 %v1028, 32
    %v1382 = vpop.permute.xlu0 %1381
    %v1383 = vsel %vm579, %v1382, 0
    %1385 = vmatprep.subr.mxu0 0.0
    %1386 = vmatpush1.msra.mxu0 0.0
    %1387 = vmatprep.subr.mxu0 0.0
    %1388 = vmatpush1.msra.mxu0 0.0
    %1389 = vmatprep.subr.mxu0 0.0
    %1390 = vmatpush1.msra.mxu0 0.0
    %1391 = vmatprep.subr.mxu0 0.0
    %1392 = vmatpush1.msra.mxu0 0.0
    %1393 = vmatprep.subr.mxu0 0.0
    %1394 = vmatpush1.msra.mxu0 0.0
    %1395 = vmatprep.subr.mxu0 0.0
    %1396 = vmatpush1.msra.mxu0 0.0
    %1397 = vmatprep.subr.mxu0 0.0
    %1398 = vmatpush1.msra.mxu0 0.0
    %1399 = vmatprep.subr.mxu0 0.0
    %1400 = vmatpush1.msra.mxu0 0.0
    %1401 = vmatprep.subr.mxu0 0.0
    %1402 = vmatpush1.msra.mxu0 0.0
    %1403 = vmatprep.subr.mxu0 0.0
    %1404 = vmatpush1.msra.mxu0 0.0
    %1405 = vmatprep.subr.mxu0 0.0
    %1406 = vmatpush1.msra.mxu0 0.0
    %1407 = vmatprep.subr.mxu0 0.0
    %1408 = vmatpush1.msra.mxu0 0.0
    %1409 = vmatprep.subr.mxu0 0.0
    %1410 = vmatpush1.msra.mxu0 %v564
    %1411 = vmatprep.subr.mxu0 0.0
    %1412 = vmatpush1.msra.mxu0 %v563
    %1413 = vmatprep.subr.mxu0 0.0
    %1414 = vmatpush1.msra.mxu0 %v562
    %1415 = vmatprep.subr.mxu0 0.0
    %1416 = vmatpush1.msra.mxu0 %v561
    %1417 = vmatprep.subr.mxu0 0.0
    %1418 = vmatpush2.msra.mxu0 0.0
    %1419 = vmatprep.subr.mxu0 0.0
    %1420 = vmatpush2.msra.mxu0 0.0
    %1421 = vmatprep.subr.mxu0 0.0
    %1422 = vmatpush2.msra.mxu0 0.0
    %1423 = vmatprep.subr.mxu0 0.0
    %1424 = vmatpush2.msra.mxu0 0.0
    %1425 = vmatprep.subr.mxu0 0.0
    %1426 = vmatpush2.msra.mxu0 0.0
    %1427 = vmatprep.subr.mxu0 0.0
    %1428 = vmatpush2.msra.mxu0 0.0
    %1429 = vmatprep.subr.mxu0 0.0
    %1430 = vmatpush2.msra.mxu0 0.0
    %1431 = vmatprep.subr.mxu0 0.0
    %1432 = vmatpush2.msra.mxu0 0.0
    %1433 = vmatprep.subr.mxu0 0.0
    %1434 = vmatpush2.msra.mxu0 0.0
    %1435 = vmatprep.subr.mxu0 0.0
    %1436 = vmatpush2.msra.mxu0 0.0
    %1437 = vmatprep.subr.mxu0 0.0
    %1438 = vmatpush2.msra.mxu0 0.0
    %1439 = vmatprep.subr.mxu0 0.0
    %1440 = vmatpush2.msra.mxu0 0.0
    %1441 = vmatprep.subr.mxu0 0.0
    %1442 = vmatpush2.msra.mxu0 0.0
    %1443 = vmatprep.subr.mxu0 0.0
    %1444 = vmatpush2.msra.mxu0 0.0
    %1445 = vmatprep.subr.mxu0 0.0
    %1446 = vmatpush2.msra.mxu0 0.0
    %1447 = vmatprep.subr.mxu0 0.0
    %1448 = vmatpush2.msra.mxu0 0.0
    %1449 = vmatprep.mubr.f32.mxu0 0.0
    %1450 = vmatmul.mubr.f32.gmra.mxu0 %v1383
    %v1451 = vpop.f32.mrf.mxu0
    %v1452 = vadd.f32 0.0, %v1451
    %v1453 = vpop.f32.mrf.mxu0
    %1454 = vdwg.mxu0
    %v1455 = vadd.f32 %v1379, %v1452
    %v1456 = vxor.u32 %v1455, 2147483648
    %v1457 = vmul.f32 %v1456, 1.442695
    %v1458 = vpow.pop %v1457
    %v1459 = vadd.f32 %v1458, 1.0
    %v1460 = vrcp.pop %v1459
    %v1461 = vmul.f32 1.0, %v1460
    %v1462 = vtanh.pop %v1455
    %v1463 = vmul.f32 %v1461, %v1022
    %1465 = vrot.lane.b32.xlu0 %v1462, 64
    %v1466 = vpop.permute.xlu0 %1465
    %v1468 = vmul.f32 %v1461, %v1466
    %1470 = vrot.lane.b32.xlu0 %v1468, 32
    %v1471 = vpop.permute.xlu0 %1470
    %v1473 = vadd.f32 %v1463, %v1471
    %v1474 = vtanh.pop %v1473
    %1476 = vrot.lane.b32.xlu0 %v1474, 64
    %v1477 = vpop.permute.xlu0 %1476
    %v1479 = vmul.f32 %v1461, %v1477
    %v1480 = vrot.slane %v371, 2
    %v1482 = vrot.slane %v371, 5
    %v1484 = vsel %vm577, %v1480, %v1482
    %1485 = vmatprep.subr.mxu0 0.0
    %1486 = vmatpush1.msra.mxu0 0.0
    %1487 = vmatprep.subr.mxu0 0.0
    %1488 = vmatpush1.msra.mxu0 0.0
    %1489 = vmatprep.subr.mxu0 0.0
    %1490 = vmatpush1.msra.mxu0 0.0
    %1491 = vmatprep.subr.mxu0 0.0
    %1492 = vmatpush1.msra.mxu0 0.0
    %1493 = vmatprep.subr.mxu0 0.0
    %1494 = vmatpush1.msra.mxu0 0.0
    %1495 = vmatprep.subr.mxu0 0.0
    %1496 = vmatpush1.msra.mxu0 0.0
    %1497 = vmatprep.subr.mxu0 0.0
    %1498 = vmatpush1.msra.mxu0 0.0
    %1499 = vmatprep.subr.mxu0 0.0
    %1500 = vmatpush1.msra.mxu0 0.0
    %1501 = vmatprep.subr.mxu0 0.0
    %1502 = vmatpush1.msra.mxu0 0.0
    %1503 = vmatprep.subr.mxu0 0.0
    %1504 = vmatpush1.msra.mxu0 0.0
    %1505 = vmatprep.subr.mxu0 0.0
    %1506 = vmatpush1.msra.mxu0 0.0
    %1507 = vmatprep.subr.mxu0 0.0
    %1508 = vmatpush1.msra.mxu0 0.0
    %1509 = vmatprep.subr.mxu0 0.0
    %1510 = vmatpush1.msra.mxu0 %v556
    %1511 = vmatprep.subr.mxu0 0.0
    %1512 = vmatpush1.msra.mxu0 %v555
    %1513 = vmatprep.subr.mxu0 0.0
    %1514 = vmatpush1.msra.mxu0 %v554
    %1515 = vmatprep.subr.mxu0 0.0
    %1516 = vmatpush1.msra.mxu0 %v553
    %1517 = vmatprep.subr.mxu0 0.0
    %1518 = vmatpush2.msra.mxu0 0.0
    %1519 = vmatprep.subr.mxu0 0.0
    %1520 = vmatpush2.msra.mxu0 0.0
    %1521 = vmatprep.subr.mxu0 0.0
    %1522 = vmatpush2.msra.mxu0 0.0
    %1523 = vmatprep.subr.mxu0 0.0
    %1524 = vmatpush2.msra.mxu0 0.0
    %1525 = vmatprep.subr.mxu0 0.0
    %1526 = vmatpush2.msra.mxu0 0.0
    %1527 = vmatprep.subr.mxu0 0.0
    %1528 = vmatpush2.msra.mxu0 0.0
    %1529 = vmatprep.subr.mxu0 0.0
    %1530 = vmatpush2.msra.mxu0 0.0
    %1531 = vmatprep.subr.mxu0 0.0
    %1532 = vmatpush2.msra.mxu0 0.0
    %1533 = vmatprep.subr.mxu0 0.0
    %1534 = vmatpush2.msra.mxu0 0.0
    %1535 = vmatprep.subr.mxu0 0.0
    %1536 = vmatpush2.msra.mxu0 0.0
    %1537 = vmatprep.subr.mxu0 0.0
    %1538 = vmatpush2.msra.mxu0 0.0
    %1539 = vmatprep.subr.mxu0 0.0
    %1540 = vmatpush2.msra.mxu0 0.0
    %1541 = vmatprep.subr.mxu0 0.0
    %1542 = vmatpush2.msra.mxu0 0.0
    %1543 = vmatprep.subr.mxu0 0.0
    %1544 = vmatpush2.msra.mxu0 0.0
    %1545 = vmatprep.subr.mxu0 0.0
    %1546 = vmatpush2.msra.mxu0 0.0
    %1547 = vmatprep.subr.mxu0 0.0
    %1548 = vmatpush2.msra.mxu0 0.0
    %1549 = vmatprep.mubr.f32.mxu0 0.0
    %1550 = vmatmul.mubr.f32.gmra.mxu0 %v1232
    %v1551 = vpop.f32.mrf.mxu0
    %v1552 = vadd.f32 0.0, %v1551
    %v1553 = vpop.f32.mrf.mxu0
    %1554 = vdwg.mxu0
    %v1555 = vadd.f32 %v1484, %v1552
    %v1556 = vxor.u32 %v1555, 2147483648
    %v1557 = vmul.f32 %v1556, 1.442695
    %v1558 = vpow.pop %v1557
    %v1559 = vadd.f32 %v1558, 1.0
    %v1560 = vrcp.pop %v1559
    %v1561 = vmul.f32 1.0, %v1560
    %v1562 = vtanh.pop %v1555
    %v1563 = vmul.f32 %v1561, %v1122
    %1565 = vrot.lane.b32.xlu0 %v1562, 64
    %v1566 = vpop.permute.xlu0 %1565
    %v1568 = vmul.f32 %v1561, %v1566
    %1570 = vrot.lane.b32.xlu0 %v1568, 32
    %v1571 = vpop.permute.xlu0 %1570
    %v1573 = vadd.f32 %v1563, %v1571
    %v1574 = vtanh.pop %v1573
    %1576 = vrot.lane.b32.xlu0 %v1574, 64
    %v1577 = vpop.permute.xlu0 %1576
    %v1579 = vmul.f32 %v1561, %v1577
    %v1580 = vrot.slane %v461, 2
    %v1582 = vrot.slane %v461, 5
    %v1584 = vsel %vm577, %v1580, %v1582
    %1585 = vmatprep.subr.mxu0 0.0
    %1586 = vmatpush1.msra.mxu0 0.0
    %1587 = vmatprep.subr.mxu0 0.0
    %1588 = vmatpush1.msra.mxu0 0.0
    %1589 = vmatprep.subr.mxu0 0.0
    %1590 = vmatpush1.msra.mxu0 0.0
    %1591 = vmatprep.subr.mxu0 0.0
    %1592 = vmatpush1.msra.mxu0 0.0
    %1593 = vmatprep.subr.mxu0 0.0
    %1594 = vmatpush1.msra.mxu0 0.0
    %1595 = vmatprep.subr.mxu0 0.0
    %1596 = vmatpush1.msra.mxu0 0.0
    %1597 = vmatprep.subr.mxu0 0.0
    %1598 = vmatpush1.msra.mxu0 0.0
    %1599 = vmatprep.subr.mxu0 0.0
    %1600 = vmatpush1.msra.mxu0 0.0
    %1601 = vmatprep.subr.mxu0 0.0
    %1602 = vmatpush1.msra.mxu0 0.0
    %1603 = vmatprep.subr.mxu0 0.0
    %1604 = vmatpush1.msra.mxu0 0.0
    %1605 = vmatprep.subr.mxu0 0.0
    %1606 = vmatpush1.msra.mxu0 0.0
    %1607 = vmatprep.subr.mxu0 0.0
    %1608 = vmatpush1.msra.mxu0 0.0
    %1609 = vmatprep.subr.mxu0 0.0
    %1610 = vmatpush1.msra.mxu0 %v560
    %1611 = vmatprep.subr.mxu0 0.0
    %1612 = vmatpush1.msra.mxu0 %v559
    %1613 = vmatprep.subr.mxu0 0.0
    %1614 = vmatpush1.msra.mxu0 %v558
    %1615 = vmatprep.subr.mxu0 0.0
    %1616 = vmatpush1.msra.mxu0 %v557
    %1617 = vmatprep.subr.mxu0 0.0
    %1618 = vmatpush2.msra.mxu0 0.0
    %1619 = vmatprep.subr.mxu0 0.0
    %1620 = vmatpush2.msra.mxu0 0.0
    %1621 = vmatprep.subr.mxu0 0.0
    %1622 = vmatpush2.msra.mxu0 0.0
    %1623 = vmatprep.subr.mxu0 0.0
    %1624 = vmatpush2.msra.mxu0 0.0
    %1625 = vmatprep.subr.mxu0 0.0
    %1626 = vmatpush2.msra.mxu0 0.0
    %1627 = vmatprep.subr.mxu0 0.0
    %1628 = vmatpush2.msra.mxu0 0.0
    %1629 = vmatprep.subr.mxu0 0.0
    %1630 = vmatpush2.msra.mxu0 0.0
    %1631 = vmatprep.subr.mxu0 0.0
    %1632 = vmatpush2.msra.mxu0 0.0
    %1633 = vmatprep.subr.mxu0 0.0
    %1634 = vmatpush2.msra.mxu0 0.0
    %1635 = vmatprep.subr.mxu0 0.0
    %1636 = vmatpush2.msra.mxu0 0.0
    %1637 = vmatprep.subr.mxu0 0.0
    %1638 = vmatpush2.msra.mxu0 0.0
    %1639 = vmatprep.subr.mxu0 0.0
    %1640 = vmatpush2.msra.mxu0 0.0
    %1641 = vmatprep.subr.mxu0 0.0
    %1642 = vmatpush2.msra.mxu0 0.0
    %1643 = vmatprep.subr.mxu0 0.0
    %1644 = vmatpush2.msra.mxu0 0.0
    %1645 = vmatprep.subr.mxu0 0.0
    %1646 = vmatpush2.msra.mxu0 0.0
    %1647 = vmatprep.subr.mxu0 0.0
    %1648 = vmatpush2.msra.mxu0 0.0
    %1649 = vmatprep.mubr.f32.mxu0 0.0
    %1650 = vmatmul.mubr.f32.gmra.mxu0 %v1307
    %v1651 = vpop.f32.mrf.mxu0
    %v1652 = vadd.f32 0.0, %v1651
    %v1653 = vpop.f32.mrf.mxu0
    %1654 = vdwg.mxu0
    %v1655 = vadd.f32 %v1584, %v1652
    %v1656 = vxor.u32 %v1655, 2147483648
    %v1657 = vmul.f32 %v1656, 1.442695
    %v1658 = vpow.pop %v1657
    %v1659 = vadd.f32 %v1658, 1.0
    %v1660 = vrcp.pop %v1659
    %v1661 = vmul.f32 1.0, %v1660
    %v1662 = vtanh.pop %v1655
    %v1663 = vmul.f32 %v1661, %v1222
    %1665 = vrot.lane.b32.xlu0 %v1662, 64
    %v1666 = vpop.permute.xlu0 %1665
    %v1668 = vmul.f32 %v1661, %v1666
    %1670 = vrot.lane.b32.xlu0 %v1668, 32
    %v1671 = vpop.permute.xlu0 %1670
    %v1673 = vadd.f32 %v1663, %v1671
    %v1674 = vtanh.pop %v1673
    %1676 = vrot.lane.b32.xlu0 %v1674, 64
    %v1677 = vpop.permute.xlu0 %1676
    %v1679 = vmul.f32 %v1661, %v1677
    %1681 = vrot.lane.b32.xlu0 %v1579, 32
    %v1682 = vpop.permute.xlu0 %1681
    %v1683 = vsel %vm579, %v1682, 0
    %1685 = vmatprep.subr.mxu0 0.0
    %1686 = vmatpush1.msra.mxu0 0.0
    %1687 = vmatprep.subr.mxu0 0.0
    %1688 = vmatpush1.msra.mxu0 0.0
    %1689 = vmatprep.subr.mxu0 0.0
    %1690 = vmatpush1.msra.mxu0 0.0
    %1691 = vmatprep.subr.mxu0 0.0
    %1692 = vmatpush1.msra.mxu0 0.0
    %1693 = vmatprep.subr.mxu0 0.0
    %1694 = vmatpush1.msra.mxu0 0.0
    %1695 = vmatprep.subr.mxu0 0.0
    %1696 = vmatpush1.msra.mxu0 0.0
    %1697 = vmatprep.subr.mxu0 0.0
    %1698 = vmatpush1.msra.mxu0 0.0
    %1699 = vmatprep.subr.mxu0 0.0
    %1700 = vmatpush1.msra.mxu0 0.0
    %1701 = vmatprep.subr.mxu0 0.0
    %1702 = vmatpush1.msra.mxu0 0.0
    %1703 = vmatprep.subr.mxu0 0.0
    %1704 = vmatpush1.msra.mxu0 0.0
    %1705 = vmatprep.subr.mxu0 0.0
    %1706 = vmatpush1.msra.mxu0 0.0
    %1707 = vmatprep.subr.mxu0 0.0
    %1708 = vmatpush1.msra.mxu0 0.0
    %1709 = vmatprep.subr.mxu0 0.0
    %1710 = vmatpush1.msra.mxu0 %v572
    %1711 = vmatprep.subr.mxu0 0.0
    %1712 = vmatpush1.msra.mxu0 %v571
    %1713 = vmatprep.subr.mxu0 0.0
    %1714 = vmatpush1.msra.mxu0 %v570
    %1715 = vmatprep.subr.mxu0 0.0
    %1716 = vmatpush1.msra.mxu0 %v569
    %1717 = vmatprep.subr.mxu0 0.0
    %1718 = vmatpush2.msra.mxu0 0.0
    %1719 = vmatprep.subr.mxu0 0.0
    %1720 = vmatpush2.msra.mxu0 0.0
    %1721 = vmatprep.subr.mxu0 0.0
    %1722 = vmatpush2.msra.mxu0 0.0
    %1723 = vmatprep.subr.mxu0 0.0
    %1724 = vmatpush2.msra.mxu0 0.0
    %1725 = vmatprep.subr.mxu0 0.0
    %1726 = vmatpush2.msra.mxu0 0.0
    %1727 = vmatprep.subr.mxu0 0.0
    %1728 = vmatpush2.msra.mxu0 0.0
    %1729 = vmatprep.subr.mxu0 0.0
    %1730 = vmatpush2.msra.mxu0 0.0
    %1731 = vmatprep.subr.mxu0 0.0
    %1732 = vmatpush2.msra.mxu0 0.0
    %1733 = vmatprep.subr.mxu0 0.0
    %1734 = vmatpush2.msra.mxu0 0.0
    %1735 = vmatprep.subr.mxu0 0.0
    %1736 = vmatpush2.msra.mxu0 0.0
    %1737 = vmatprep.subr.mxu0 0.0
    %1738 = vmatpush2.msra.mxu0 0.0
    %1739 = vmatprep.subr.mxu0 0.0
    %1740 = vmatpush2.msra.mxu0 0.0
    %1741 = vmatprep.subr.mxu0 0.0
    %1742 = vmatpush2.msra.mxu0 0.0
    %1743 = vmatprep.subr.mxu0 0.0
    %1744 = vmatpush2.msra.mxu0 0.0
    %1745 = vmatprep.subr.mxu0 0.0
    %1746 = vmatpush2.msra.mxu0 0.0
    %1747 = vmatprep.subr.mxu0 0.0
    %1748 = vmatpush2.msra.mxu0 0.0
    %1749 = vmatprep.mubr.f32.mxu0 0.0
    %1750 = vmatmul.mubr.f32.gmra.mxu0 %v1683
    %v1751 = vpop.f32.mrf.mxu0
    %v1752 = vadd.f32 0.0, %v1751
    %v1753 = vpop.f32.mrf.mxu0
    %1754 = vdwg.mxu0
    %1756 = vrot.lane.b32.xlu0 %v1679, 32
    %v1757 = vpop.permute.xlu0 %1756
    %v1758 = vsel %vm579, %v1757, 0
    %1760 = vmatprep.subr.mxu0 0.0
    %1761 = vmatpush1.msra.mxu0 0.0
    %1762 = vmatprep.subr.mxu0 0.0
    %1763 = vmatpush1.msra.mxu0 0.0
    %1764 = vmatprep.subr.mxu0 0.0
    %1765 = vmatpush1.msra.mxu0 0.0
    %1766 = vmatprep.subr.mxu0 0.0
    %1767 = vmatpush1.msra.mxu0 0.0
    %1768 = vmatprep.subr.mxu0 0.0
    %1769 = vmatpush1.msra.mxu0 0.0
    %1770 = vmatprep.subr.mxu0 0.0
    %1771 = vmatpush1.msra.mxu0 0.0
    %1772 = vmatprep.subr.mxu0 0.0
    %1773 = vmatpush1.msra.mxu0 0.0
    %1774 = vmatprep.subr.mxu0 0.0
    %1775 = vmatpush1.msra.mxu0 0.0
    %1776 = vmatprep.subr.mxu0 0.0
    %1777 = vmatpush1.msra.mxu0 0.0
    %1778 = vmatprep.subr.mxu0 0.0
    %1779 = vmatpush1.msra.mxu0 0.0
    %1780 = vmatprep.subr.mxu0 0.0
    %1781 = vmatpush1.msra.mxu0 0.0
    %1782 = vmatprep.subr.mxu0 0.0
    %1783 = vmatpush1.msra.mxu0 0.0
    %1784 = vmatprep.subr.mxu0 0.0
    %1785 = vmatpush1.msra.mxu0 %v568
    %1786 = vmatprep.subr.mxu0 0.0
    %1787 = vmatpush1.msra.mxu0 %v567
    %1788 = vmatprep.subr.mxu0 0.0
    %1789 = vmatpush1.msra.mxu0 %v566
    %1790 = vmatprep.subr.mxu0 0.0
    %1791 = vmatpush1.msra.mxu0 %v565
    %1792 = vmatprep.subr.mxu0 0.0
    %1793 = vmatpush2.msra.mxu0 0.0
    %1794 = vmatprep.subr.mxu0 0.0
    %1795 = vmatpush2.msra.mxu0 0.0
    %1796 = vmatprep.subr.mxu0 0.0
    %1797 = vmatpush2.msra.mxu0 0.0
    %1798 = vmatprep.subr.mxu0 0.0
    %1799 = vmatpush2.msra.mxu0 0.0
    %1800 = vmatprep.subr.mxu0 0.0
    %1801 = vmatpush2.msra.mxu0 0.0
    %1802 = vmatprep.subr.mxu0 0.0
    %1803 = vmatpush2.msra.mxu0 0.0
    %1804 = vmatprep.subr.mxu0 0.0
    %1805 = vmatpush2.msra.mxu0 0.0
    %1806 = vmatprep.subr.mxu0 0.0
    %1807 = vmatpush2.msra.mxu0 0.0
    %1808 = vmatprep.subr.mxu0 0.0
    %1809 = vmatpush2.msra.mxu0 0.0
    %1810 = vmatprep.subr.mxu0 0.0
    %1811 = vmatpush2.msra.mxu0 0.0
    %1812 = vmatprep.subr.mxu0 0.0
    %1813 = vmatpush2.msra.mxu0 0.0
    %1814 = vmatprep.subr.mxu0 0.0
    %1815 = vmatpush2.msra.mxu0 0.0
    %1816 = vmatprep.subr.mxu0 0.0
    %1817 = vmatpush2.msra.mxu0 0.0
    %1818 = vmatprep.subr.mxu0 0.0
    %1819 = vmatpush2.msra.mxu0 0.0
    %1820 = vmatprep.subr.mxu0 0.0
    %1821 = vmatpush2.msra.mxu0 0.0
    %1822 = vmatprep.subr.mxu0 0.0
    %1823 = vmatpush2.msra.mxu0 0.0
    %1824 = vmatprep.mubr.f32.mxu0 0.0
    %1825 = vmatmul.mubr.f32.gmra.mxu0 %v1758
    %v1826 = vpop.f32.mrf.mxu0
    %v1827 = vadd.f32 %v1752, %v1826
    %v1828 = vpop.f32.mrf.mxu0
    %1829 = vdwg.mxu0
    %v1830 = vadd.f32 %v1827, %v931
    %1832 = vrot.lane.b32.xlu0 %v1479, 32
    %v1833 = vpop.permute.xlu0 %1832
    %v1834 = vsel %vm579, %v1833, 0
    %1836 = vmatprep.subr.mxu0 0.0
    %1837 = vmatpush1.msra.mxu0 0.0
    %1838 = vmatprep.subr.mxu0 0.0
    %1839 = vmatpush1.msra.mxu0 0.0
    %1840 = vmatprep.subr.mxu0 0.0
    %1841 = vmatpush1.msra.mxu0 0.0
    %1842 = vmatprep.subr.mxu0 0.0
    %1843 = vmatpush1.msra.mxu0 0.0
    %1844 = vmatprep.subr.mxu0 0.0
    %1845 = vmatpush1.msra.mxu0 0.0
    %1846 = vmatprep.subr.mxu0 0.0
    %1847 = vmatpush1.msra.mxu0 0.0
    %1848 = vmatprep.subr.mxu0 0.0
    %1849 = vmatpush1.msra.mxu0 0.0
    %1850 = vmatprep.subr.mxu0 0.0
    %1851 = vmatpush1.msra.mxu0 0.0
    %1852 = vmatprep.subr.mxu0 0.0
    %1853 = vmatpush1.msra.mxu0 0.0
    %1854 = vmatprep.subr.mxu0 0.0
    %1855 = vmatpush1.msra.mxu0 0.0
    %1856 = vmatprep.subr.mxu0 0.0
    %1857 = vmatpush1.msra.mxu0 0.0
    %1858 = vmatprep.subr.mxu0 0.0
    %1859 = vmatpush1.msra.mxu0 0.0
    %1860 = vmatprep.subr.mxu0 0.0
    %1861 = vmatpush1.msra.mxu0 %v564
    %1862 = vmatprep.subr.mxu0 0.0
    %1863 = vmatpush1.msra.mxu0 %v563
    %1864 = vmatprep.subr.mxu0 0.0
    %1865 = vmatpush1.msra.mxu0 %v562
    %1866 = vmatprep.subr.mxu0 0.0
    %1867 = vmatpush1.msra.mxu0 %v561
    %1868 = vmatprep.subr.mxu0 0.0
    %1869 = vmatpush2.msra.mxu0 0.0
    %1870 = vmatprep.subr.mxu0 0.0
    %1871 = vmatpush2.msra.mxu0 0.0
    %1872 = vmatprep.subr.mxu0 0.0
    %1873 = vmatpush2.msra.mxu0 0.0
    %1874 = vmatprep.subr.mxu0 0.0
    %1875 = vmatpush2.msra.mxu0 0.0
    %1876 = vmatprep.subr.mxu0 0.0
    %1877 = vmatpush2.msra.mxu0 0.0
    %1878 = vmatprep.subr.mxu0 0.0
    %1879 = vmatpush2.msra.mxu0 0.0
    %1880 = vmatprep.subr.mxu0 0.0
    %1881 = vmatpush2.msra.mxu0 0.0
    %1882 = vmatprep.subr.mxu0 0.0
    %1883 = vmatpush2.msra.mxu0 0.0
    %1884 = vmatprep.subr.mxu0 0.0
    %1885 = vmatpush2.msra.mxu0 0.0
    %1886 = vmatprep.subr.mxu0 0.0
    %1887 = vmatpush2.msra.mxu0 0.0
    %1888 = vmatprep.subr.mxu0 0.0
    %1889 = vmatpush2.msra.mxu0 0.0
    %1890 = vmatprep.subr.mxu0 0.0
    %1891 = vmatpush2.msra.mxu0 0.0
    %1892 = vmatprep.subr.mxu0 0.0
    %1893 = vmatpush2.msra.mxu0 0.0
    %1894 = vmatprep.subr.mxu0 0.0
    %1895 = vmatpush2.msra.mxu0 0.0
    %1896 = vmatprep.subr.mxu0 0.0
    %1897 = vmatpush2.msra.mxu0 0.0
    %1898 = vmatprep.subr.mxu0 0.0
    %1899 = vmatpush2.msra.mxu0 0.0
    %1900 = vmatprep.mubr.f32.mxu0 0.0
    %1901 = vmatmul.mubr.f32.gmra.mxu0 %v1834
    %v1902 = vpop.f32.mrf.mxu0
    %v1903 = vadd.f32 0.0, %v1902
    %v1904 = vpop.f32.mrf.mxu0
    %1905 = vdwg.mxu0
    %v1906 = vadd.f32 %v1830, %v1903
    %v1907 = vxor.u32 %v1906, 2147483648
    %v1908 = vmul.f32 %v1907, 1.442695
    %v1909 = vpow.pop %v1908
    %v1910 = vadd.f32 %v1909, 1.0
    %v1911 = vrcp.pop %v1910
    %v1912 = vmul.f32 1.0, %v1911
    %v1913 = vtanh.pop %v1906
    %v1914 = vmul.f32 %v1912, %v1473
    %1916 = vrot.lane.b32.xlu0 %v1913, 64
    %v1917 = vpop.permute.xlu0 %1916
    %v1919 = vmul.f32 %v1912, %v1917
    %1921 = vrot.lane.b32.xlu0 %v1919, 32
    %v1922 = vpop.permute.xlu0 %1921
    %v1924 = vadd.f32 %v1914, %v1922
    %v1925 = vtanh.pop %v1924
    %1927 = vrot.lane.b32.xlu0 %v1925, 64
    %v1928 = vpop.permute.xlu0 %1927
    %v1930 = vmul.f32 %v1912, %v1928
    %v1931 = vrot.slane %v371, 6
    %v1933 = vsel %vm577, %v575, %v1931
    %1934 = vmatprep.subr.mxu0 0.0
    %1935 = vmatpush1.msra.mxu0 0.0
    %1936 = vmatprep.subr.mxu0 0.0
    %1937 = vmatpush1.msra.mxu0 0.0
    %1938 = vmatprep.subr.mxu0 0.0
    %1939 = vmatpush1.msra.mxu0 0.0
    %1940 = vmatprep.subr.mxu0 0.0
    %1941 = vmatpush1.msra.mxu0 0.0
    %1942 = vmatprep.subr.mxu0 0.0
    %1943 = vmatpush1.msra.mxu0 0.0
    %1944 = vmatprep.subr.mxu0 0.0
    %1945 = vmatpush1.msra.mxu0 0.0
    %1946 = vmatprep.subr.mxu0 0.0
    %1947 = vmatpush1.msra.mxu0 0.0
    %1948 = vmatprep.subr.mxu0 0.0
    %1949 = vmatpush1.msra.mxu0 0.0
    %1950 = vmatprep.subr.mxu0 0.0
    %1951 = vmatpush1.msra.mxu0 0.0
    %1952 = vmatprep.subr.mxu0 0.0
    %1953 = vmatpush1.msra.mxu0 0.0
    %1954 = vmatprep.subr.mxu0 0.0
    %1955 = vmatpush1.msra.mxu0 0.0
    %1956 = vmatprep.subr.mxu0 0.0
    %1957 = vmatpush1.msra.mxu0 0.0
    %1958 = vmatprep.subr.mxu0 0.0
    %1959 = vmatpush1.msra.mxu0 %v556
    %1960 = vmatprep.subr.mxu0 0.0
    %1961 = vmatpush1.msra.mxu0 %v555
    %1962 = vmatprep.subr.mxu0 0.0
    %1963 = vmatpush1.msra.mxu0 %v554
    %1964 = vmatprep.subr.mxu0 0.0
    %1965 = vmatpush1.msra.mxu0 %v553
    %1966 = vmatprep.subr.mxu0 0.0
    %1967 = vmatpush2.msra.mxu0 0.0
    %1968 = vmatprep.subr.mxu0 0.0
    %1969 = vmatpush2.msra.mxu0 0.0
    %1970 = vmatprep.subr.mxu0 0.0
    %1971 = vmatpush2.msra.mxu0 0.0
    %1972 = vmatprep.subr.mxu0 0.0
    %1973 = vmatpush2.msra.mxu0 0.0
    %1974 = vmatprep.subr.mxu0 0.0
    %1975 = vmatpush2.msra.mxu0 0.0
    %1976 = vmatprep.subr.mxu0 0.0
    %1977 = vmatpush2.msra.mxu0 0.0
    %1978 = vmatprep.subr.mxu0 0.0
    %1979 = vmatpush2.msra.mxu0 0.0
    %1980 = vmatprep.subr.mxu0 0.0
    %1981 = vmatpush2.msra.mxu0 0.0
    %1982 = vmatprep.subr.mxu0 0.0
    %1983 = vmatpush2.msra.mxu0 0.0
    %1984 = vmatprep.subr.mxu0 0.0
    %1985 = vmatpush2.msra.mxu0 0.0
    %1986 = vmatprep.subr.mxu0 0.0
    %1987 = vmatpush2.msra.mxu0 0.0
    %1988 = vmatprep.subr.mxu0 0.0
    %1989 = vmatpush2.msra.mxu0 0.0
    %1990 = vmatprep.subr.mxu0 0.0
    %1991 = vmatpush2.msra.mxu0 0.0
    %1992 = vmatprep.subr.mxu0 0.0
    %1993 = vmatpush2.msra.mxu0 0.0
    %1994 = vmatprep.subr.mxu0 0.0
    %1995 = vmatpush2.msra.mxu0 0.0
    %1996 = vmatprep.subr.mxu0 0.0
    %1997 = vmatpush2.msra.mxu0 0.0
    %1998 = vmatprep.mubr.f32.mxu0 0.0
    %1999 = vmatmul.mubr.f32.gmra.mxu0 %v1683
    %v2000 = vpop.f32.mrf.mxu0
    %v2001 = vadd.f32 0.0, %v2000
    %v2002 = vpop.f32.mrf.mxu0
    %2003 = vdwg.mxu0
    %v2004 = vadd.f32 %v1933, %v2001
    %v2005 = vxor.u32 %v2004, 2147483648
    %v2006 = vmul.f32 %v2005, 1.442695
    %v2007 = vpow.pop %v2006
    %v2008 = vadd.f32 %v2007, 1.0
    %v2009 = vrcp.pop %v2008
    %v2010 = vmul.f32 1.0, %v2009
    %v2011 = vtanh.pop %v2004
    %v2012 = vmul.f32 %v2010, %v1573
    %2014 = vrot.lane.b32.xlu0 %v2011, 64
    %v2015 = vpop.permute.xlu0 %2014
    %v2017 = vmul.f32 %v2010, %v2015
    %2019 = vrot.lane.b32.xlu0 %v2017, 32
    %v2020 = vpop.permute.xlu0 %2019
    %v2022 = vadd.f32 %v2012, %v2020
    %v2023 = vtanh.pop %v2022
    %2025 = vrot.lane.b32.xlu0 %v2023, 64
    %v2026 = vpop.permute.xlu0 %2025
    %v2028 = vmul.f32 %v2010, %v2026
    %v2029 = vrot.slane %v461, 6
    %v2031 = vsel %vm577, %v679, %v2029
    %2032 = vmatprep.subr.mxu0 0.0
    %2033 = vmatpush1.msra.mxu0 0.0
    %2034 = vmatprep.subr.mxu0 0.0
    %2035 = vmatpush1.msra.mxu0 0.0
    %2036 = vmatprep.subr.mxu0 0.0
    %2037 = vmatpush1.msra.mxu0 0.0
    %2038 = vmatprep.subr.mxu0 0.0
    %2039 = vmatpush1.msra.mxu0 0.0
    %2040 = vmatprep.subr.mxu0 0.0
    %2041 = vmatpush1.msra.mxu0 0.0
    %2042 = vmatprep.subr.mxu0 0.0
    %2043 = vmatpush1.msra.mxu0 0.0
    %2044 = vmatprep.subr.mxu0 0.0
    %2045 = vmatpush1.msra.mxu0 0.0
    %2046 = vmatprep.subr.mxu0 0.0
    %2047 = vmatpush1.msra.mxu0 0.0
    %2048 = vmatprep.subr.mxu0 0.0
    %2049 = vmatpush1.msra.mxu0 0.0
    %2050 = vmatprep.subr.mxu0 0.0
    %2051 = vmatpush1.msra.mxu0 0.0
    %2052 = vmatprep.subr.mxu0 0.0
    %2053 = vmatpush1.msra.mxu0 0.0
    %2054 = vmatprep.subr.mxu0 0.0
    %2055 = vmatpush1.msra.mxu0 0.0
    %2056 = vmatprep.subr.mxu0 0.0
    %2057 = vmatpush1.msra.mxu0 %v560
    %2058 = vmatprep.subr.mxu0 0.0
    %2059 = vmatpush1.msra.mxu0 %v559
    %2060 = vmatprep.subr.mxu0 0.0
    %2061 = vmatpush1.msra.mxu0 %v558
    %2062 = vmatprep.subr.mxu0 0.0
    %2063 = vmatpush1.msra.mxu0 %v557
    %2064 = vmatprep.subr.mxu0 0.0
    %2065 = vmatpush2.msra.mxu0 0.0
    %2066 = vmatprep.subr.mxu0 0.0
    %2067 = vmatpush2.msra.mxu0 0.0
    %2068 = vmatprep.subr.mxu0 0.0
    %2069 = vmatpush2.msra.mxu0 0.0
    %2070 = vmatprep.subr.mxu0 0.0
    %2071 = vmatpush2.msra.mxu0 0.0
    %2072 = vmatprep.subr.mxu0 0.0
    %2073 = vmatpush2.msra.mxu0 0.0
    %2074 = vmatprep.subr.mxu0 0.0
    %2075 = vmatpush2.msra.mxu0 0.0
    %2076 = vmatprep.subr.mxu0 0.0
    %2077 = vmatpush2.msra.mxu0 0.0
    %2078 = vmatprep.subr.mxu0 0.0
    %2079 = vmatpush2.msra.mxu0 0.0
    %2080 = vmatprep.subr.mxu0 0.0
    %2081 = vmatpush2.msra.mxu0 0.0
    %2082 = vmatprep.subr.mxu0 0.0
    %2083 = vmatpush2.msra.mxu0 0.0
    %2084 = vmatprep.subr.mxu0 0.0
    %2085 = vmatpush2.msra.mxu0 0.0
    %2086 = vmatprep.subr.mxu0 0.0
    %2087 = vmatpush2.msra.mxu0 0.0
    %2088 = vmatprep.subr.mxu0 0.0
    %2089 = vmatpush2.msra.mxu0 0.0
    %2090 = vmatprep.subr.mxu0 0.0
    %2091 = vmatpush2.msra.mxu0 0.0
    %2092 = vmatprep.subr.mxu0 0.0
    %2093 = vmatpush2.msra.mxu0 0.0
    %2094 = vmatprep.subr.mxu0 0.0
    %2095 = vmatpush2.msra.mxu0 0.0
    %2096 = vmatprep.mubr.f32.mxu0 0.0
    %2097 = vmatmul.mubr.f32.gmra.mxu0 %v1758
    %v2098 = vpop.f32.mrf.mxu0
    %v2099 = vadd.f32 0.0, %v2098
    %v2100 = vpop.f32.mrf.mxu0
    %2101 = vdwg.mxu0
    %v2102 = vadd.f32 %v2031, %v2099
    %v2103 = vxor.u32 %v2102, 2147483648
    %v2104 = vmul.f32 %v2103, 1.442695
    %v2105 = vpow.pop %v2104
    %v2106 = vadd.f32 %v2105, 1.0
    %v2107 = vrcp.pop %v2106
    %v2108 = vmul.f32 1.0, %v2107
    %v2109 = vtanh.pop %v2102
    %v2110 = vmul.f32 %v2108, %v1673
    %2112 = vrot.lane.b32.xlu0 %v2109, 64
    %v2113 = vpop.permute.xlu0 %2112
    %v2115 = vmul.f32 %v2108, %v2113
    %2117 = vrot.lane.b32.xlu0 %v2115, 32
    %v2118 = vpop.permute.xlu0 %2117
    %v2120 = vadd.f32 %v2110, %v2118
    %v2121 = vtanh.pop %v2120
    %2123 = vrot.lane.b32.xlu0 %v2121, 64
    %v2124 = vpop.permute.xlu0 %2123
    %v2126 = vmul.f32 %v2108, %v2124
    %2128 = vrot.lane.b32.xlu0 %v2028, 32
    %v2129 = vpop.permute.xlu0 %2128
    %v2130 = vsel %vm579, %v2129, 0
    %2132 = vmatprep.subr.mxu0 0.0
    %2133 = vmatpush1.msra.mxu0 0.0
    %2134 = vmatprep.subr.mxu0 0.0
    %2135 = vmatpush1.msra.mxu0 0.0
    %2136 = vmatprep.subr.mxu0 0.0
    %2137 = vmatpush1.msra.mxu0 0.0
    %2138 = vmatprep.subr.mxu0 0.0
    %2139 = vmatpush1.msra.mxu0 0.0
    %2140 = vmatprep.subr.mxu0 0.0
    %2141 = vmatpush1.msra.mxu0 0.0
    %2142 = vmatprep.subr.mxu0 0.0
    %2143 = vmatpush1.msra.mxu0 0.0
    %2144 = vmatprep.subr.mxu0 0.0
    %2145 = vmatpush1.msra.mxu0 0.0
    %2146 = vmatprep.subr.mxu0 0.0
    %2147 = vmatpush1.msra.mxu0 0.0
    %2148 = vmatprep.subr.mxu0 0.0
    %2149 = vmatpush1.msra.mxu0 0.0
    %2150 = vmatprep.subr.mxu0 0.0
    %2151 = vmatpush1.msra.mxu0 0.0
    %2152 = vmatprep.subr.mxu0 0.0
    %2153 = vmatpush1.msra.mxu0 0.0
    %2154 = vmatprep.subr.mxu0 0.0
    %2155 = vmatpush1.msra.mxu0 0.0
    %2156 = vmatprep.subr.mxu0 0.0
    %2157 = vmatpush1.msra.mxu0 %v572
    %2158 = vmatprep.subr.mxu0 0.0
    %2159 = vmatpush1.msra.mxu0 %v571
    %2160 = vmatprep.subr.mxu0 0.0
    %2161 = vmatpush1.msra.mxu0 %v570
    %2162 = vmatprep.subr.mxu0 0.0
    %2163 = vmatpush1.msra.mxu0 %v569
    %2164 = vmatprep.subr.mxu0 0.0
    %2165 = vmatpush2.msra.mxu0 0.0
    %2166 = vmatprep.subr.mxu0 0.0
    %2167 = vmatpush2.msra.mxu0 0.0
    %2168 = vmatprep.subr.mxu0 0.0
    %2169 = vmatpush2.msra.mxu0 0.0
    %2170 = vmatprep.subr.mxu0 0.0
    %2171 = vmatpush2.msra.mxu0 0.0
    %2172 = vmatprep.subr.mxu0 0.0
    %2173 = vmatpush2.msra.mxu0 0.0
    %2174 = vmatprep.subr.mxu0 0.0
    %2175 = vmatpush2.msra.mxu0 0.0
    %2176 = vmatprep.subr.mxu0 0.0
    %2177 = vmatpush2.msra.mxu0 0.0
    %2178 = vmatprep.subr.mxu0 0.0
    %2179 = vmatpush2.msra.mxu0 0.0
    %2180 = vmatprep.subr.mxu0 0.0
    %2181 = vmatpush2.msra.mxu0 0.0
    %2182 = vmatprep.subr.mxu0 0.0
    %2183 = vmatpush2.msra.mxu0 0.0
    %2184 = vmatprep.subr.mxu0 0.0
    %2185 = vmatpush2.msra.mxu0 0.0
    %2186 = vmatprep.subr.mxu0 0.0
    %2187 = vmatpush2.msra.mxu0 0.0
    %2188 = vmatprep.subr.mxu0 0.0
    %2189 = vmatpush2.msra.mxu0 0.0
    %2190 = vmatprep.subr.mxu0 0.0
    %2191 = vmatpush2.msra.mxu0 0.0
    %2192 = vmatprep.subr.mxu0 0.0
    %2193 = vmatpush2.msra.mxu0 0.0
    %2194 = vmatprep.subr.mxu0 0.0
    %2195 = vmatpush2.msra.mxu0 0.0
    %2196 = vmatprep.mubr.f32.mxu0 0.0
    %2197 = vmatmul.mubr.f32.gmra.mxu0 %v2130
    %v2198 = vpop.f32.mrf.mxu0
    %v2199 = vadd.f32 0.0, %v2198
    %v2200 = vpop.f32.mrf.mxu0
    %2201 = vdwg.mxu0
    %2203 = vrot.lane.b32.xlu0 %v2126, 32
    %v2204 = vpop.permute.xlu0 %2203
    %v2205 = vsel %vm579, %v2204, 0
    %2207 = vmatprep.subr.mxu0 0.0
    %2208 = vmatpush1.msra.mxu0 0.0
    %2209 = vmatprep.subr.mxu0 0.0
    %2210 = vmatpush1.msra.mxu0 0.0
    %2211 = vmatprep.subr.mxu0 0.0
    %2212 = vmatpush1.msra.mxu0 0.0
    %2213 = vmatprep.subr.mxu0 0.0
    %2214 = vmatpush1.msra.mxu0 0.0
    %2215 = vmatprep.subr.mxu0 0.0
    %2216 = vmatpush1.msra.mxu0 0.0
    %2217 = vmatprep.subr.mxu0 0.0
    %2218 = vmatpush1.msra.mxu0 0.0
    %2219 = vmatprep.subr.mxu0 0.0
    %2220 = vmatpush1.msra.mxu0 0.0
    %2221 = vmatprep.subr.mxu0 0.0
    %2222 = vmatpush1.msra.mxu0 0.0
    %2223 = vmatprep.subr.mxu0 0.0
    %2224 = vmatpush1.msra.mxu0 0.0
    %2225 = vmatprep.subr.mxu0 0.0
    %2226 = vmatpush1.msra.mxu0 0.0
    %2227 = vmatprep.subr.mxu0 0.0
    %2228 = vmatpush1.msra.mxu0 0.0
    %2229 = vmatprep.subr.mxu0 0.0
    %2230 = vmatpush1.msra.mxu0 0.0
    %2231 = vmatprep.subr.mxu0 0.0
    %2232 = vmatpush1.msra.mxu0 %v568
    %2233 = vmatprep.subr.mxu0 0.0
    %2234 = vmatpush1.msra.mxu0 %v567
    %2235 = vmatprep.subr.mxu0 0.0
    %2236 = vmatpush1.msra.mxu0 %v566
    %2237 = vmatprep.subr.mxu0 0.0
    %2238 = vmatpush1.msra.mxu0 %v565
    %2239 = vmatprep.subr.mxu0 0.0
    %2240 = vmatpush2.msra.mxu0 0.0
    %2241 = vmatprep.subr.mxu0 0.0
    %2242 = vmatpush2.msra.mxu0 0.0
    %2243 = vmatprep.subr.mxu0 0.0
    %2244 = vmatpush2.msra.mxu0 0.0
    %2245 = vmatprep.subr.mxu0 0.0
    %2246 = vmatpush2.msra.mxu0 0.0
    %2247 = vmatprep.subr.mxu0 0.0
    %2248 = vmatpush2.msra.mxu0 0.0
    %2249 = vmatprep.subr.mxu0 0.0
    %2250 = vmatpush2.msra.mxu0 0.0
    %2251 = vmatprep.subr.mxu0 0.0
    %2252 = vmatpush2.msra.mxu0 0.0
    %2253 = vmatprep.subr.mxu0 0.0
    %2254 = vmatpush2.msra.mxu0 0.0
    %2255 = vmatprep.subr.mxu0 0.0
    %2256 = vmatpush2.msra.mxu0 0.0
    %2257 = vmatprep.subr.mxu0 0.0
    %2258 = vmatpush2.msra.mxu0 0.0
    %2259 = vmatprep.subr.mxu0 0.0
    %2260 = vmatpush2.msra.mxu0 0.0
    %2261 = vmatprep.subr.mxu0 0.0
    %2262 = vmatpush2.msra.mxu0 0.0
    %2263 = vmatprep.subr.mxu0 0.0
    %2264 = vmatpush2.msra.mxu0 0.0
    %2265 = vmatprep.subr.mxu0 0.0
    %2266 = vmatpush2.msra.mxu0 0.0
    %2267 = vmatprep.subr.mxu0 0.0
    %2268 = vmatpush2.msra.mxu0 0.0
    %2269 = vmatprep.subr.mxu0 0.0
    %2270 = vmatpush2.msra.mxu0 0.0
    %2271 = vmatprep.mubr.f32.mxu0 0.0
    %2272 = vmatmul.mubr.f32.gmra.mxu0 %v2205
    %v2273 = vpop.f32.mrf.mxu0
    %v2274 = vadd.f32 %v2199, %v2273
    %v2275 = vpop.f32.mrf.mxu0
    %2276 = vdwg.mxu0
    %v2277 = vadd.f32 %v2274, %v931
    %2279 = vrot.lane.b32.xlu0 %v1930, 32
    %v2280 = vpop.permute.xlu0 %2279
    %v2281 = vsel %vm579, %v2280, 0
    %2283 = vmatprep.subr.mxu0 0.0
    %2284 = vmatpush1.msra.mxu0 0.0
    %2285 = vmatprep.subr.mxu0 0.0
    %2286 = vmatpush1.msra.mxu0 0.0
    %2287 = vmatprep.subr.mxu0 0.0
    %2288 = vmatpush1.msra.mxu0 0.0
    %2289 = vmatprep.subr.mxu0 0.0
    %2290 = vmatpush1.msra.mxu0 0.0
    %2291 = vmatprep.subr.mxu0 0.0
    %2292 = vmatpush1.msra.mxu0 0.0
    %2293 = vmatprep.subr.mxu0 0.0
    %2294 = vmatpush1.msra.mxu0 0.0
    %2295 = vmatprep.subr.mxu0 0.0
    %2296 = vmatpush1.msra.mxu0 0.0
    %2297 = vmatprep.subr.mxu0 0.0
    %2298 = vmatpush1.msra.mxu0 0.0
    %2299 = vmatprep.subr.mxu0 0.0
    %2300 = vmatpush1.msra.mxu0 0.0
    %2301 = vmatprep.subr.mxu0 0.0
    %2302 = vmatpush1.msra.mxu0 0.0
    %2303 = vmatprep.subr.mxu0 0.0
    %2304 = vmatpush1.msra.mxu0 0.0
    %2305 = vmatprep.subr.mxu0 0.0
    %2306 = vmatpush1.msra.mxu0 0.0
    %2307 = vmatprep.subr.mxu0 0.0
    %2308 = vmatpush1.msra.mxu0 %v564
    %2309 = vmatprep.subr.mxu0 0.0
    %2310 = vmatpush1.msra.mxu0 %v563
    %2311 = vmatprep.subr.mxu0 0.0
    %2312 = vmatpush1.msra.mxu0 %v562
    %2313 = vmatprep.subr.mxu0 0.0
    %2314 = vmatpush1.msra.mxu0 %v561
    %2315 = vmatprep.subr.mxu0 0.0
    %2316 = vmatpush2.msra.mxu0 0.0
    %2317 = vmatprep.subr.mxu0 0.0
    %2318 = vmatpush2.msra.mxu0 0.0
    %2319 = vmatprep.subr.mxu0 0.0
    %2320 = vmatpush2.msra.mxu0 0.0
    %2321 = vmatprep.subr.mxu0 0.0
    %2322 = vmatpush2.msra.mxu0 0.0
    %2323 = vmatprep.subr.mxu0 0.0
    %2324 = vmatpush2.msra.mxu0 0.0
    %2325 = vmatprep.subr.mxu0 0.0
    %2326 = vmatpush2.msra.mxu0 0.0
    %2327 = vmatprep.subr.mxu0 0.0
    %2328 = vmatpush2.msra.mxu0 0.0
    %2329 = vmatprep.subr.mxu0 0.0
    %2330 = vmatpush2.msra.mxu0 0.0
    %2331 = vmatprep.subr.mxu0 0.0
    %2332 = vmatpush2.msra.mxu0 0.0
    %2333 = vmatprep.subr.mxu0 0.0
    %2334 = vmatpush2.msra.mxu0 0.0
    %2335 = vmatprep.subr.mxu0 0.0
    %2336 = vmatpush2.msra.mxu0 0.0
    %2337 = vmatprep.subr.mxu0 0.0
    %2338 = vmatpush2.msra.mxu0 0.0
    %2339 = vmatprep.subr.mxu0 0.0
    %2340 = vmatpush2.msra.mxu0 0.0
    %2341 = vmatprep.subr.mxu0 0.0
    %2342 = vmatpush2.msra.mxu0 0.0
    %2343 = vmatprep.subr.mxu0 0.0
    %2344 = vmatpush2.msra.mxu0 0.0
    %2345 = vmatprep.subr.mxu0 0.0
    %2346 = vmatpush2.msra.mxu0 0.0
    %2347 = vmatprep.mubr.f32.mxu0 0.0
    %2348 = vmatmul.mubr.f32.gmra.mxu0 %v2281
    %v2349 = vpop.f32.mrf.mxu0
    %v2350 = vadd.f32 0.0, %v2349
    %v2351 = vpop.f32.mrf.mxu0
    %2352 = vdwg.mxu0
    %v2353 = vadd.f32 %v2277, %v2350
    %v2354 = vxor.u32 %v2353, 2147483648
    %v2355 = vmul.f32 %v2354, 1.442695
    %v2356 = vpow.pop %v2355
    %v2357 = vadd.f32 %v2356, 1.0
    %v2358 = vrcp.pop %v2357
    %v2359 = vmul.f32 1.0, %v2358
    %v2360 = vtanh.pop %v2353
    %v2361 = vmul.f32 %v2359, %v1924
    %2363 = vrot.lane.b32.xlu0 %v2360, 64
    %v2364 = vpop.permute.xlu0 %2363
    %v2366 = vmul.f32 %v2359, %v2364
    %2368 = vrot.lane.b32.xlu0 %v2366, 32
    %v2369 = vpop.permute.xlu0 %2368
    %v2371 = vadd.f32 %v2361, %v2369
    %v2372 = vtanh.pop %v2371
    %2374 = vrot.lane.b32.xlu0 %v2372, 64
    %v2375 = vpop.permute.xlu0 %2374
    %v2377 = vmul.f32 %v2359, %v2375
    %v2378 = vld [vmem:[#allocation18] sm:$0xff]
    %v2379 = vld [vmem:[#allocation18 + $0x8] sm:$0xff]
    %v2380 = vld [vmem:[#allocation18 + $0x10] sm:$0xff]
    %v2381 = vld [vmem:[#allocation18 + $0x18] sm:$0xff]
    %v2382 = vld [vmem:[#allocation21] sm:$0xff]
    %v2383 = vld [vmem:[#allocation21 + $0x8] sm:$0xff]
    %v2384 = vld [vmem:[#allocation21 + $0x10] sm:$0xff]
    %v2385 = vld [vmem:[#allocation21 + $0x18] sm:$0xff]
    %v2386 = vld [vmem:[#allocation25] sm:$0x1]
    %v2388 = vrot.slane %v550, 3
    %v2390 = vsel %vm577, %v550, %v2388
    %2391 = vmatprep.subr.mxu0 0.0
    %2392 = vmatpush1.msra.mxu0 0.0
    %2393 = vmatprep.subr.mxu0 0.0
    %2394 = vmatpush1.msra.mxu0 0.0
    %2395 = vmatprep.subr.mxu0 0.0
    %2396 = vmatpush1.msra.mxu0 0.0
    %2397 = vmatprep.subr.mxu0 0.0
    %2398 = vmatpush1.msra.mxu0 0.0
    %2399 = vmatprep.subr.mxu0 0.0
    %2400 = vmatpush1.msra.mxu0 0.0
    %2401 = vmatprep.subr.mxu0 0.0
    %2402 = vmatpush1.msra.mxu0 0.0
    %2403 = vmatprep.subr.mxu0 0.0
    %2404 = vmatpush1.msra.mxu0 0.0
    %2405 = vmatprep.subr.mxu0 0.0
    %2406 = vmatpush1.msra.mxu0 0.0
    %2407 = vmatprep.subr.mxu0 0.0
    %2408 = vmatpush1.msra.mxu0 0.0
    %2409 = vmatprep.subr.mxu0 0.0
    %2410 = vmatpush1.msra.mxu0 0.0
    %2411 = vmatprep.subr.mxu0 0.0
    %2412 = vmatpush1.msra.mxu0 0.0
    %2413 = vmatprep.subr.mxu0 0.0
    %2414 = vmatpush1.msra.mxu0 0.0
    %2415 = vmatprep.subr.mxu0 0.0
    %2416 = vmatpush1.msra.mxu0 %v2381
    %2417 = vmatprep.subr.mxu0 0.0
    %2418 = vmatpush1.msra.mxu0 %v2380
    %2419 = vmatprep.subr.mxu0 0.0
    %2420 = vmatpush1.msra.mxu0 %v2379
    %2421 = vmatprep.subr.mxu0 0.0
    %2422 = vmatpush1.msra.mxu0 %v2378
    %2423 = vmatprep.subr.mxu0 0.0
    %2424 = vmatpush2.msra.mxu0 0.0
    %2425 = vmatprep.subr.mxu0 0.0
    %2426 = vmatpush2.msra.mxu0 0.0
    %2427 = vmatprep.subr.mxu0 0.0
    %2428 = vmatpush2.msra.mxu0 0.0
    %2429 = vmatprep.subr.mxu0 0.0
    %2430 = vmatpush2.msra.mxu0 0.0
    %2431 = vmatprep.subr.mxu0 0.0
    %2432 = vmatpush2.msra.mxu0 0.0
    %2433 = vmatprep.subr.mxu0 0.0
    %2434 = vmatpush2.msra.mxu0 0.0
    %2435 = vmatprep.subr.mxu0 0.0
    %2436 = vmatpush2.msra.mxu0 0.0
    %2437 = vmatprep.subr.mxu0 0.0
    %2438 = vmatpush2.msra.mxu0 0.0
    %2439 = vmatprep.subr.mxu0 0.0
    %2440 = vmatpush2.msra.mxu0 0.0
    %2441 = vmatprep.subr.mxu0 0.0
    %2442 = vmatpush2.msra.mxu0 0.0
    %2443 = vmatprep.subr.mxu0 0.0
    %2444 = vmatpush2.msra.mxu0 0.0
    %2445 = vmatprep.subr.mxu0 0.0
    %2446 = vmatpush2.msra.mxu0 0.0
    %2447 = vmatprep.subr.mxu0 0.0
    %2448 = vmatpush2.msra.mxu0 0.0
    %2449 = vmatprep.subr.mxu0 0.0
    %2450 = vmatpush2.msra.mxu0 0.0
    %2451 = vmatprep.subr.mxu0 0.0
    %2452 = vmatpush2.msra.mxu0 0.0
    %2453 = vmatprep.subr.mxu0 0.0
    %2454 = vmatpush2.msra.mxu0 0.0
    %2455 = vmatprep.mubr.f32.mxu0 0.0
    %2456 = vmatmul.mubr.f32.gmra.mxu0 %v2205
    %v2457 = vpop.f32.mrf.mxu0
    %v2458 = vadd.f32 0.0, %v2457
    %v2459 = vpop.f32.mrf.mxu0
    %2460 = vdwg.mxu0
    %v2461 = vadd.f32 %v2390, %v2458
    %v2462 = vxor.u32 %v2461, 2147483648
    %v2463 = vmul.f32 %v2462, 1.442695
    %v2464 = vpow.pop %v2463
    %v2465 = vadd.f32 %v2464, 1.0
    %v2466 = vrcp.pop %v2465
    %v2467 = vmul.f32 1.0, %v2466
    %v2468 = vtanh.pop %v2461
    %v2469 = vmul.f32 %v2467, %v2120
    %2471 = vrot.lane.b32.xlu0 %v2468, 64
    %v2472 = vpop.permute.xlu0 %2471
    %v2474 = vmul.f32 %v2467, %v2472
    %2476 = vrot.lane.b32.xlu0 %v2474, 32
    %v2477 = vpop.permute.xlu0 %2476
    %v2479 = vadd.f32 %v2469, %v2477
    %v2480 = vtanh.pop %v2479
    %2482 = vrot.lane.b32.xlu0 %v2480, 64
    %v2483 = vpop.permute.xlu0 %2482
    %v2485 = vmul.f32 %v2467, %v2483
    %v2487 = vlaneseq
    %v2488 = vshrl.u32 %v2487, 7
    %v2489 = vsub.s32 0, %v2488
    %v2490 = vrot.slane %v2386, %v2489
    %2493 = vrot.lane.b32.xlu0 %v2485, 32
    %v2494 = vpop.permute.xlu0 %2493
    %v2495 = vsel %vm579, %v2494, 0
    %2497 = vmatprep.subr.mxu0 0.0
    %2498 = vmatpush1.msra.mxu0 0.0
    %2499 = vmatprep.subr.mxu0 0.0
    %2500 = vmatpush1.msra.mxu0 0.0
    %2501 = vmatprep.subr.mxu0 0.0
    %2502 = vmatpush1.msra.mxu0 0.0
    %2503 = vmatprep.subr.mxu0 0.0
    %2504 = vmatpush1.msra.mxu0 0.0
    %2505 = vmatprep.subr.mxu0 0.0
    %2506 = vmatpush1.msra.mxu0 0.0
    %2507 = vmatprep.subr.mxu0 0.0
    %2508 = vmatpush1.msra.mxu0 0.0
    %2509 = vmatprep.subr.mxu0 0.0
    %2510 = vmatpush1.msra.mxu0 0.0
    %2511 = vmatprep.subr.mxu0 0.0
    %2512 = vmatpush1.msra.mxu0 0.0
    %2513 = vmatprep.subr.mxu0 0.0
    %2514 = vmatpush1.msra.mxu0 0.0
    %2515 = vmatprep.subr.mxu0 0.0
    %2516 = vmatpush1.msra.mxu0 0.0
    %2517 = vmatprep.subr.mxu0 0.0
    %2518 = vmatpush1.msra.mxu0 0.0
    %2519 = vmatprep.subr.mxu0 0.0
    %2520 = vmatpush1.msra.mxu0 0.0
    %2521 = vmatprep.subr.mxu0 0.0
    %2522 = vmatpush1.msra.mxu0 %v2385
    %2523 = vmatprep.subr.mxu0 0.0
    %2524 = vmatpush1.msra.mxu0 %v2384
    %2525 = vmatprep.subr.mxu0 0.0
    %2526 = vmatpush1.msra.mxu0 %v2383
    %2527 = vmatprep.subr.mxu0 0.0
    %2528 = vmatpush1.msra.mxu0 %v2382
    %2529 = vmatprep.subr.mxu0 0.0
    %2530 = vmatpush2.msra.mxu0 0.0
    %2531 = vmatprep.subr.mxu0 0.0
    %2532 = vmatpush2.msra.mxu0 0.0
    %2533 = vmatprep.subr.mxu0 0.0
    %2534 = vmatpush2.msra.mxu0 0.0
    %2535 = vmatprep.subr.mxu0 0.0
    %2536 = vmatpush2.msra.mxu0 0.0
    %2537 = vmatprep.subr.mxu0 0.0
    %2538 = vmatpush2.msra.mxu0 0.0
    %2539 = vmatprep.subr.mxu0 0.0
    %2540 = vmatpush2.msra.mxu0 0.0
    %2541 = vmatprep.subr.mxu0 0.0
    %2542 = vmatpush2.msra.mxu0 0.0
    %2543 = vmatprep.subr.mxu0 0.0
    %2544 = vmatpush2.msra.mxu0 0.0
    %2545 = vmatprep.subr.mxu0 0.0
    %2546 = vmatpush2.msra.mxu0 0.0
    %2547 = vmatprep.subr.mxu0 0.0
    %2548 = vmatpush2.msra.mxu0 0.0
    %2549 = vmatprep.subr.mxu0 0.0
    %2550 = vmatpush2.msra.mxu0 0.0
    %2551 = vmatprep.subr.mxu0 0.0
    %2552 = vmatpush2.msra.mxu0 0.0
    %2553 = vmatprep.subr.mxu0 0.0
    %2554 = vmatpush2.msra.mxu0 0.0
    %2555 = vmatprep.subr.mxu0 0.0
    %2556 = vmatpush2.msra.mxu0 0.0
    %2557 = vmatprep.subr.mxu0 0.0
    %2558 = vmatpush2.msra.mxu0 0.0
    %2559 = vmatprep.subr.mxu0 0.0
    %2560 = vmatpush2.msra.mxu0 0.0
    %2561 = vmatprep.mubr.f32.mxu0 0.0
    %2562 = vmatmul.mubr.f32.gmra.mxu0 %v2495
    %v2563 = vpop.f32.mrf.mxu0
    %v2564 = vadd.f32 %v2490, %v2563
    %v2565 = vpop.f32.mrf.mxu0
    %2566 = vdwg.mxu0
    %v2567 = vrot.slane %v550, 1
    %v2569 = vrot.slane %v550, 4
    %v2571 = vsel %vm577, %v2567, %v2569
    %2572 = vmatprep.subr.mxu0 0.0
    %2573 = vmatpush1.msra.mxu0 0.0
    %2574 = vmatprep.subr.mxu0 0.0
    %2575 = vmatpush1.msra.mxu0 0.0
    %2576 = vmatprep.subr.mxu0 0.0
    %2577 = vmatpush1.msra.mxu0 0.0
    %2578 = vmatprep.subr.mxu0 0.0
    %2579 = vmatpush1.msra.mxu0 0.0
    %2580 = vmatprep.subr.mxu0 0.0
    %2581 = vmatpush1.msra.mxu0 0.0
    %2582 = vmatprep.subr.mxu0 0.0
    %2583 = vmatpush1.msra.mxu0 0.0
    %2584 = vmatprep.subr.mxu0 0.0
    %2585 = vmatpush1.msra.mxu0 0.0
    %2586 = vmatprep.subr.mxu0 0.0
    %2587 = vmatpush1.msra.mxu0 0.0
    %2588 = vmatprep.subr.mxu0 0.0
    %2589 = vmatpush1.msra.mxu0 0.0
    %2590 = vmatprep.subr.mxu0 0.0
    %2591 = vmatpush1.msra.mxu0 0.0
    %2592 = vmatprep.subr.mxu0 0.0
    %2593 = vmatpush1.msra.mxu0 0.0
    %2594 = vmatprep.subr.mxu0 0.0
    %2595 = vmatpush1.msra.mxu0 0.0
    %2596 = vmatprep.subr.mxu0 0.0
    %2597 = vmatpush1.msra.mxu0 %v2381
    %2598 = vmatprep.subr.mxu0 0.0
    %2599 = vmatpush1.msra.mxu0 %v2380
    %2600 = vmatprep.subr.mxu0 0.0
    %2601 = vmatpush1.msra.mxu0 %v2379
    %2602 = vmatprep.subr.mxu0 0.0
    %2603 = vmatpush1.msra.mxu0 %v2378
    %2604 = vmatprep.subr.mxu0 0.0
    %2605 = vmatpush2.msra.mxu0 0.0
    %2606 = vmatprep.subr.mxu0 0.0
    %2607 = vmatpush2.msra.mxu0 0.0
    %2608 = vmatprep.subr.mxu0 0.0
    %2609 = vmatpush2.msra.mxu0 0.0
    %2610 = vmatprep.subr.mxu0 0.0
    %2611 = vmatpush2.msra.mxu0 0.0
    %2612 = vmatprep.subr.mxu0 0.0
    %2613 = vmatpush2.msra.mxu0 0.0
    %2614 = vmatprep.subr.mxu0 0.0
    %2615 = vmatpush2.msra.mxu0 0.0
    %2616 = vmatprep.subr.mxu0 0.0
    %2617 = vmatpush2.msra.mxu0 0.0
    %2618 = vmatprep.subr.mxu0 0.0
    %2619 = vmatpush2.msra.mxu0 0.0
    %2620 = vmatprep.subr.mxu0 0.0
    %2621 = vmatpush2.msra.mxu0 0.0
    %2622 = vmatprep.subr.mxu0 0.0
    %2623 = vmatpush2.msra.mxu0 0.0
    %2624 = vmatprep.subr.mxu0 0.0
    %2625 = vmatpush2.msra.mxu0 0.0
    %2626 = vmatprep.subr.mxu0 0.0
    %2627 = vmatpush2.msra.mxu0 0.0
    %2628 = vmatprep.subr.mxu0 0.0
    %2629 = vmatpush2.msra.mxu0 0.0
    %2630 = vmatprep.subr.mxu0 0.0
    %2631 = vmatpush2.msra.mxu0 0.0
    %2632 = vmatprep.subr.mxu0 0.0
    %2633 = vmatpush2.msra.mxu0 0.0
    %2634 = vmatprep.subr.mxu0 0.0
    %2635 = vmatpush2.msra.mxu0 0.0
    %2636 = vmatprep.mubr.f32.mxu0 0.0
    %2637 = vmatmul.mubr.f32.gmra.mxu0 %v2495
    %v2638 = vpop.f32.mrf.mxu0
    %v2639 = vadd.f32 0.0, %v2638
    %v2640 = vpop.f32.mrf.mxu0
    %2641 = vdwg.mxu0
    %v2642 = vadd.f32 %v2571, %v2639
    %v2643 = vxor.u32 %v2642, 2147483648
    %v2644 = vmul.f32 %v2643, 1.442695
    %v2645 = vpow.pop %v2644
    %v2646 = vadd.f32 %v2645, 1.0
    %v2647 = vrcp.pop %v2646
    %v2648 = vmul.f32 1.0, %v2647
    %v2649 = vtanh.pop %v2642
    %v2650 = vmul.f32 %v2648, %v2479
    %2652 = vrot.lane.b32.xlu0 %v2649, 64
    %v2653 = vpop.permute.xlu0 %2652
    %v2655 = vmul.f32 %v2648, %v2653
    %2657 = vrot.lane.b32.xlu0 %v2655, 32
    %v2658 = vpop.permute.xlu0 %2657
    %v2660 = vadd.f32 %v2650, %v2658
    %v2661 = vtanh.pop %v2660
    %2663 = vrot.lane.b32.xlu0 %v2661, 64
    %v2664 = vpop.permute.xlu0 %2663
    %v2666 = vmul.f32 %v2648, %v2664
    %2668 = vrot.lane.b32.xlu0 %v2666, 32
    %v2669 = vpop.permute.xlu0 %2668
    %v2670 = vsel %vm579, %v2669, 0
    %2672 = vmatprep.subr.mxu0 0.0
    %2673 = vmatpush1.msra.mxu0 0.0
    %2674 = vmatprep.subr.mxu0 0.0
    %2675 = vmatpush1.msra.mxu0 0.0
    %2676 = vmatprep.subr.mxu0 0.0
    %2677 = vmatpush1.msra.mxu0 0.0
    %2678 = vmatprep.subr.mxu0 0.0
    %2679 = vmatpush1.msra.mxu0 0.0
    %2680 = vmatprep.subr.mxu0 0.0
    %2681 = vmatpush1.msra.mxu0 0.0
    %2682 = vmatprep.subr.mxu0 0.0
    %2683 = vmatpush1.msra.mxu0 0.0
    %2684 = vmatprep.subr.mxu0 0.0
    %2685 = vmatpush1.msra.mxu0 0.0
    %2686 = vmatprep.subr.mxu0 0.0
    %2687 = vmatpush1.msra.mxu0 0.0
    %2688 = vmatprep.subr.mxu0 0.0
    %2689 = vmatpush1.msra.mxu0 0.0
    %2690 = vmatprep.subr.mxu0 0.0
    %2691 = vmatpush1.msra.mxu0 0.0
    %2692 = vmatprep.subr.mxu0 0.0
    %2693 = vmatpush1.msra.mxu0 0.0
    %2694 = vmatprep.subr.mxu0 0.0
    %2695 = vmatpush1.msra.mxu0 0.0
    %2696 = vmatprep.subr.mxu0 0.0
    %2697 = vmatpush1.msra.mxu0 %v2385
    %2698 = vmatprep.subr.mxu0 0.0
    %2699 = vmatpush1.msra.mxu0 %v2384
    %2700 = vmatprep.subr.mxu0 0.0
    %2701 = vmatpush1.msra.mxu0 %v2383
    %2702 = vmatprep.subr.mxu0 0.0
    %2703 = vmatpush1.msra.mxu0 %v2382
    %2704 = vmatprep.subr.mxu0 0.0
    %2705 = vmatpush2.msra.mxu0 0.0
    %2706 = vmatprep.subr.mxu0 0.0
    %2707 = vmatpush2.msra.mxu0 0.0
    %2708 = vmatprep.subr.mxu0 0.0
    %2709 = vmatpush2.msra.mxu0 0.0
    %2710 = vmatprep.subr.mxu0 0.0
    %2711 = vmatpush2.msra.mxu0 0.0
    %2712 = vmatprep.subr.mxu0 0.0
    %2713 = vmatpush2.msra.mxu0 0.0
    %2714 = vmatprep.subr.mxu0 0.0
    %2715 = vmatpush2.msra.mxu0 0.0
    %2716 = vmatprep.subr.mxu0 0.0
    %2717 = vmatpush2.msra.mxu0 0.0
    %2718 = vmatprep.subr.mxu0 0.0
    %2719 = vmatpush2.msra.mxu0 0.0
    %2720 = vmatprep.subr.mxu0 0.0
    %2721 = vmatpush2.msra.mxu0 0.0
    %2722 = vmatprep.subr.mxu0 0.0
    %2723 = vmatpush2.msra.mxu0 0.0
    %2724 = vmatprep.subr.mxu0 0.0
    %2725 = vmatpush2.msra.mxu0 0.0
    %2726 = vmatprep.subr.mxu0 0.0
    %2727 = vmatpush2.msra.mxu0 0.0
    %2728 = vmatprep.subr.mxu0 0.0
    %2729 = vmatpush2.msra.mxu0 0.0
    %2730 = vmatprep.subr.mxu0 0.0
    %2731 = vmatpush2.msra.mxu0 0.0
    %2732 = vmatprep.subr.mxu0 0.0
    %2733 = vmatpush2.msra.mxu0 0.0
    %2734 = vmatprep.subr.mxu0 0.0
    %2735 = vmatpush2.msra.mxu0 0.0
    %2736 = vmatprep.mubr.f32.mxu0 0.0
    %2737 = vmatmul.mubr.f32.gmra.mxu0 %v2670
    %v2738 = vpop.f32.mrf.mxu0
    %v2739 = vadd.f32 %v2490, %v2738
    %v2740 = vpop.f32.mrf.mxu0
    %2741 = vdwg.mxu0
    %v2742 = vrot.slane %v550, 2
    %v2744 = vrot.slane %v550, 5
    %v2746 = vsel %vm577, %v2742, %v2744
    %2747 = vmatprep.subr.mxu0 0.0
    %2748 = vmatpush1.msra.mxu0 0.0
    %2749 = vmatprep.subr.mxu0 0.0
    %2750 = vmatpush1.msra.mxu0 0.0
    %2751 = vmatprep.subr.mxu0 0.0
    %2752 = vmatpush1.msra.mxu0 0.0
    %2753 = vmatprep.subr.mxu0 0.0
    %2754 = vmatpush1.msra.mxu0 0.0
    %2755 = vmatprep.subr.mxu0 0.0
    %2756 = vmatpush1.msra.mxu0 0.0
    %2757 = vmatprep.subr.mxu0 0.0
    %2758 = vmatpush1.msra.mxu0 0.0
    %2759 = vmatprep.subr.mxu0 0.0
    %2760 = vmatpush1.msra.mxu0 0.0
    %2761 = vmatprep.subr.mxu0 0.0
    %2762 = vmatpush1.msra.mxu0 0.0
    %2763 = vmatprep.subr.mxu0 0.0
    %2764 = vmatpush1.msra.mxu0 0.0
    %2765 = vmatprep.subr.mxu0 0.0
    %2766 = vmatpush1.msra.mxu0 0.0
    %2767 = vmatprep.subr.mxu0 0.0
    %2768 = vmatpush1.msra.mxu0 0.0
    %2769 = vmatprep.subr.mxu0 0.0
    %2770 = vmatpush1.msra.mxu0 0.0
    %2771 = vmatprep.subr.mxu0 0.0
    %2772 = vmatpush1.msra.mxu0 %v2381
    %2773 = vmatprep.subr.mxu0 0.0
    %2774 = vmatpush1.msra.mxu0 %v2380
    %2775 = vmatprep.subr.mxu0 0.0
    %2776 = vmatpush1.msra.mxu0 %v2379
    %2777 = vmatprep.subr.mxu0 0.0
    %2778 = vmatpush1.msra.mxu0 %v2378
    %2779 = vmatprep.subr.mxu0 0.0
    %2780 = vmatpush2.msra.mxu0 0.0
    %2781 = vmatprep.subr.mxu0 0.0
    %2782 = vmatpush2.msra.mxu0 0.0
    %2783 = vmatprep.subr.mxu0 0.0
    %2784 = vmatpush2.msra.mxu0 0.0
    %2785 = vmatprep.subr.mxu0 0.0
    %2786 = vmatpush2.msra.mxu0 0.0
    %2787 = vmatprep.subr.mxu0 0.0
    %2788 = vmatpush2.msra.mxu0 0.0
    %2789 = vmatprep.subr.mxu0 0.0
    %2790 = vmatpush2.msra.mxu0 0.0
    %2791 = vmatprep.subr.mxu0 0.0
    %2792 = vmatpush2.msra.mxu0 0.0
    %2793 = vmatprep.subr.mxu0 0.0
    %2794 = vmatpush2.msra.mxu0 0.0
    %2795 = vmatprep.subr.mxu0 0.0
    %2796 = vmatpush2.msra.mxu0 0.0
    %2797 = vmatprep.subr.mxu0 0.0
    %2798 = vmatpush2.msra.mxu0 0.0
    %2799 = vmatprep.subr.mxu0 0.0
    %2800 = vmatpush2.msra.mxu0 0.0
    %2801 = vmatprep.subr.mxu0 0.0
    %2802 = vmatpush2.msra.mxu0 0.0
    %2803 = vmatprep.subr.mxu0 0.0
    %2804 = vmatpush2.msra.mxu0 0.0
    %2805 = vmatprep.subr.mxu0 0.0
    %2806 = vmatpush2.msra.mxu0 0.0
    %2807 = vmatprep.subr.mxu0 0.0
    %2808 = vmatpush2.msra.mxu0 0.0
    %2809 = vmatprep.subr.mxu0 0.0
    %2810 = vmatpush2.msra.mxu0 0.0
    %2811 = vmatprep.mubr.f32.mxu0 0.0
    %2812 = vmatmul.mubr.f32.gmra.mxu0 %v2670
    %v2813 = vpop.f32.mrf.mxu0
    %v2814 = vadd.f32 0.0, %v2813
    %v2815 = vpop.f32.mrf.mxu0
    %2816 = vdwg.mxu0
    %v2817 = vadd.f32 %v2746, %v2814
    %v2818 = vxor.u32 %v2817, 2147483648
    %v2819 = vmul.f32 %v2818, 1.442695
    %v2820 = vpow.pop %v2819
    %v2821 = vadd.f32 %v2820, 1.0
    %v2822 = vrcp.pop %v2821
    %v2823 = vmul.f32 1.0, %v2822
    %v2824 = vtanh.pop %v2817
    %v2825 = vmul.f32 %v2823, %v2660
    %2827 = vrot.lane.b32.xlu0 %v2824, 64
    %v2828 = vpop.permute.xlu0 %2827
    %v2830 = vmul.f32 %v2823, %v2828
    %2832 = vrot.lane.b32.xlu0 %v2830, 32
    %v2833 = vpop.permute.xlu0 %2832
    %v2835 = vadd.f32 %v2825, %v2833
    %v2836 = vtanh.pop %v2835
    %2838 = vrot.lane.b32.xlu0 %v2836, 64
    %v2839 = vpop.permute.xlu0 %2838
    %v2841 = vmul.f32 %v2823, %v2839
    %2843 = vrot.lane.b32.xlu0 %v2841, 32
    %v2844 = vpop.permute.xlu0 %2843
    %v2845 = vsel %vm579, %v2844, 0
    %2847 = vmatprep.subr.mxu0 0.0
    %2848 = vmatpush1.msra.mxu0 0.0
    %2849 = vmatprep.subr.mxu0 0.0
    %2850 = vmatpush1.msra.mxu0 0.0
    %2851 = vmatprep.subr.mxu0 0.0
    %2852 = vmatpush1.msra.mxu0 0.0
    %2853 = vmatprep.subr.mxu0 0.0
    %2854 = vmatpush1.msra.mxu0 0.0
    %2855 = vmatprep.subr.mxu0 0.0
    %2856 = vmatpush1.msra.mxu0 0.0
    %2857 = vmatprep.subr.mxu0 0.0
    %2858 = vmatpush1.msra.mxu0 0.0
    %2859 = vmatprep.subr.mxu0 0.0
    %2860 = vmatpush1.msra.mxu0 0.0
    %2861 = vmatprep.subr.mxu0 0.0
    %2862 = vmatpush1.msra.mxu0 0.0
    %2863 = vmatprep.subr.mxu0 0.0
    %2864 = vmatpush1.msra.mxu0 0.0
    %2865 = vmatprep.subr.mxu0 0.0
    %2866 = vmatpush1.msra.mxu0 0.0
    %2867 = vmatprep.subr.mxu0 0.0
    %2868 = vmatpush1.msra.mxu0 0.0
    %2869 = vmatprep.subr.mxu0 0.0
    %2870 = vmatpush1.msra.mxu0 0.0
    %2871 = vmatprep.subr.mxu0 0.0
    %2872 = vmatpush1.msra.mxu0 %v2385
    %2873 = vmatprep.subr.mxu0 0.0
    %2874 = vmatpush1.msra.mxu0 %v2384
    %2875 = vmatprep.subr.mxu0 0.0
    %2876 = vmatpush1.msra.mxu0 %v2383
    %2877 = vmatprep.subr.mxu0 0.0
    %2878 = vmatpush1.msra.mxu0 %v2382
    %2879 = vmatprep.subr.mxu0 0.0
    %2880 = vmatpush2.msra.mxu0 0.0
    %2881 = vmatprep.subr.mxu0 0.0
    %2882 = vmatpush2.msra.mxu0 0.0
    %2883 = vmatprep.subr.mxu0 0.0
    %2884 = vmatpush2.msra.mxu0 0.0
    %2885 = vmatprep.subr.mxu0 0.0
    %2886 = vmatpush2.msra.mxu0 0.0
    %2887 = vmatprep.subr.mxu0 0.0
    %2888 = vmatpush2.msra.mxu0 0.0
    %2889 = vmatprep.subr.mxu0 0.0
    %2890 = vmatpush2.msra.mxu0 0.0
    %2891 = vmatprep.subr.mxu0 0.0
    %2892 = vmatpush2.msra.mxu0 0.0
    %2893 = vmatprep.subr.mxu0 0.0
    %2894 = vmatpush2.msra.mxu0 0.0
    %2895 = vmatprep.subr.mxu0 0.0
    %2896 = vmatpush2.msra.mxu0 0.0
    %2897 = vmatprep.subr.mxu0 0.0
    %2898 = vmatpush2.msra.mxu0 0.0
    %2899 = vmatprep.subr.mxu0 0.0
    %2900 = vmatpush2.msra.mxu0 0.0
    %2901 = vmatprep.subr.mxu0 0.0
    %2902 = vmatpush2.msra.mxu0 0.0
    %2903 = vmatprep.subr.mxu0 0.0
    %2904 = vmatpush2.msra.mxu0 0.0
    %2905 = vmatprep.subr.mxu0 0.0
    %2906 = vmatpush2.msra.mxu0 0.0
    %2907 = vmatprep.subr.mxu0 0.0
    %2908 = vmatpush2.msra.mxu0 0.0
    %2909 = vmatprep.subr.mxu0 0.0
    %2910 = vmatpush2.msra.mxu0 0.0
    %2911 = vmatprep.mubr.f32.mxu0 0.0
    %2912 = vmatmul.mubr.f32.gmra.mxu0 %v2845
    %v2913 = vpop.f32.mrf.mxu0
    %v2914 = vadd.f32 %v2490, %v2913
    %v2915 = vpop.f32.mrf.mxu0
    %2916 = vdwg.mxu0
    %v2917 = vrot.slane %v550, 6
    %v2919 = vsel %vm577, %v2388, %v2917
    %2920 = vmatprep.subr.mxu0 0.0
    %2921 = vmatpush1.msra.mxu0 0.0
    %2922 = vmatprep.subr.mxu0 0.0
    %2923 = vmatpush1.msra.mxu0 0.0
    %2924 = vmatprep.subr.mxu0 0.0
    %2925 = vmatpush1.msra.mxu0 0.0
    %2926 = vmatprep.subr.mxu0 0.0
    %2927 = vmatpush1.msra.mxu0 0.0
    %2928 = vmatprep.subr.mxu0 0.0
    %2929 = vmatpush1.msra.mxu0 0.0
    %2930 = vmatprep.subr.mxu0 0.0
    %2931 = vmatpush1.msra.mxu0 0.0
    %2932 = vmatprep.subr.mxu0 0.0
    %2933 = vmatpush1.msra.mxu0 0.0
    %2934 = vmatprep.subr.mxu0 0.0
    %2935 = vmatpush1.msra.mxu0 0.0
    %2936 = vmatprep.subr.mxu0 0.0
    %2937 = vmatpush1.msra.mxu0 0.0
    %2938 = vmatprep.subr.mxu0 0.0
    %2939 = vmatpush1.msra.mxu0 0.0
    %2940 = vmatprep.subr.mxu0 0.0
    %2941 = vmatpush1.msra.mxu0 0.0
    %2942 = vmatprep.subr.mxu0 0.0
    %2943 = vmatpush1.msra.mxu0 0.0
    %2944 = vmatprep.subr.mxu0 0.0
    %2945 = vmatpush1.msra.mxu0 %v2381
    %2946 = vmatprep.subr.mxu0 0.0
    %2947 = vmatpush1.msra.mxu0 %v2380
    %2948 = vmatprep.subr.mxu0 0.0
    %2949 = vmatpush1.msra.mxu0 %v2379
    %2950 = vmatprep.subr.mxu0 0.0
    %2951 = vmatpush1.msra.mxu0 %v2378
    %2952 = vmatprep.subr.mxu0 0.0
    %2953 = vmatpush2.msra.mxu0 0.0
    %2954 = vmatprep.subr.mxu0 0.0
    %2955 = vmatpush2.msra.mxu0 0.0
    %2956 = vmatprep.subr.mxu0 0.0
    %2957 = vmatpush2.msra.mxu0 0.0
    %2958 = vmatprep.subr.mxu0 0.0
    %2959 = vmatpush2.msra.mxu0 0.0
    %2960 = vmatprep.subr.mxu0 0.0
    %2961 = vmatpush2.msra.mxu0 0.0
    %2962 = vmatprep.subr.mxu0 0.0
    %2963 = vmatpush2.msra.mxu0 0.0
    %2964 = vmatprep.subr.mxu0 0.0
    %2965 = vmatpush2.msra.mxu0 0.0
    %2966 = vmatprep.subr.mxu0 0.0
    %2967 = vmatpush2.msra.mxu0 0.0
    %2968 = vmatprep.subr.mxu0 0.0
    %2969 = vmatpush2.msra.mxu0 0.0
    %2970 = vmatprep.subr.mxu0 0.0
    %2971 = vmatpush2.msra.mxu0 0.0
    %2972 = vmatprep.subr.mxu0 0.0
    %2973 = vmatpush2.msra.mxu0 0.0
    %2974 = vmatprep.subr.mxu0 0.0
    %2975 = vmatpush2.msra.mxu0 0.0
    %2976 = vmatprep.subr.mxu0 0.0
    %2977 = vmatpush2.msra.mxu0 0.0
    %2978 = vmatprep.subr.mxu0 0.0
    %2979 = vmatpush2.msra.mxu0 0.0
    %2980 = vmatprep.subr.mxu0 0.0
    %2981 = vmatpush2.msra.mxu0 0.0
    %2982 = vmatprep.subr.mxu0 0.0
    %2983 = vmatpush2.msra.mxu0 0.0
    %2984 = vmatprep.mubr.f32.mxu0 0.0
    %2985 = vmatmul.mubr.f32.gmra.mxu0 %v2845
    %v2986 = vpop.f32.mrf.mxu0
    %v2987 = vadd.f32 0.0, %v2986
    %v2988 = vpop.f32.mrf.mxu0
    %2989 = vdwg.mxu0
    %v2990 = vadd.f32 %v2919, %v2987
    %v2991 = vxor.u32 %v2990, 2147483648
    %v2992 = vmul.f32 %v2991, 1.442695
    %v2993 = vpow.pop %v2992
    %v2994 = vadd.f32 %v2993, 1.0
    %v2995 = vrcp.pop %v2994
    %v2996 = vmul.f32 1.0, %v2995
    %v2997 = vtanh.pop %v2990
    %v2998 = vmul.f32 %v2996, %v2835
    %3000 = vrot.lane.b32.xlu0 %v2997, 64
    %v3001 = vpop.permute.xlu0 %3000
    %v3003 = vmul.f32 %v2996, %v3001
    %3005 = vrot.lane.b32.xlu0 %v3003, 32
    %v3006 = vpop.permute.xlu0 %3005
    %v3008 = vadd.f32 %v2998, %v3006
    %v3009 = vtanh.pop %v3008
    %3011 = vrot.lane.b32.xlu0 %v3009, 64
    %v3012 = vpop.permute.xlu0 %3011
    %v3014 = vmul.f32 %v2996, %v3012
    %3016 = vrot.lane.b32.xlu0 %v3014, 32
    %v3017 = vpop.permute.xlu0 %3016
    %v3018 = vsel %vm579, %v3017, 0
    %3020 = vmatprep.subr.mxu0 0.0
    %3021 = vmatpush1.msra.mxu0 0.0
    %3022 = vmatprep.subr.mxu0 0.0
    %3023 = vmatpush1.msra.mxu0 0.0
    %3024 = vmatprep.subr.mxu0 0.0
    %3025 = vmatpush1.msra.mxu0 0.0
    %3026 = vmatprep.subr.mxu0 0.0
    %3027 = vmatpush1.msra.mxu0 0.0
    %3028 = vmatprep.subr.mxu0 0.0
    %3029 = vmatpush1.msra.mxu0 0.0
    %3030 = vmatprep.subr.mxu0 0.0
    %3031 = vmatpush1.msra.mxu0 0.0
    %3032 = vmatprep.subr.mxu0 0.0
    %3033 = vmatpush1.msra.mxu0 0.0
    %3034 = vmatprep.subr.mxu0 0.0
    %3035 = vmatpush1.msra.mxu0 0.0
    %3036 = vmatprep.subr.mxu0 0.0
    %3037 = vmatpush1.msra.mxu0 0.0
    %3038 = vmatprep.subr.mxu0 0.0
    %3039 = vmatpush1.msra.mxu0 0.0
    %3040 = vmatprep.subr.mxu0 0.0
    %3041 = vmatpush1.msra.mxu0 0.0
    %3042 = vmatprep.subr.mxu0 0.0
    %3043 = vmatpush1.msra.mxu0 0.0
    %3044 = vmatprep.subr.mxu0 0.0
    %3045 = vmatpush1.msra.mxu0 %v2385
    %3046 = vmatprep.subr.mxu0 0.0
    %3047 = vmatpush1.msra.mxu0 %v2384
    %3048 = vmatprep.subr.mxu0 0.0
    %3049 = vmatpush1.msra.mxu0 %v2383
    %3050 = vmatprep.subr.mxu0 0.0
    %3051 = vmatpush1.msra.mxu0 %v2382
    %3052 = vmatprep.subr.mxu0 0.0
    %3053 = vmatpush2.msra.mxu0 0.0
    %3054 = vmatprep.subr.mxu0 0.0
    %3055 = vmatpush2.msra.mxu0 0.0
    %3056 = vmatprep.subr.mxu0 0.0
    %3057 = vmatpush2.msra.mxu0 0.0
    %3058 = vmatprep.subr.mxu0 0.0
    %3059 = vmatpush2.msra.mxu0 0.0
    %3060 = vmatprep.subr.mxu0 0.0
    %3061 = vmatpush2.msra.mxu0 0.0
    %3062 = vmatprep.subr.mxu0 0.0
    %3063 = vmatpush2.msra.mxu0 0.0
    %3064 = vmatprep.subr.mxu0 0.0
    %3065 = vmatpush2.msra.mxu0 0.0
    %3066 = vmatprep.subr.mxu0 0.0
    %3067 = vmatpush2.msra.mxu0 0.0
    %3068 = vmatprep.subr.mxu0 0.0
    %3069 = vmatpush2.msra.mxu0 0.0
    %3070 = vmatprep.subr.mxu0 0.0
    %3071 = vmatpush2.msra.mxu0 0.0
    %3072 = vmatprep.subr.mxu0 0.0
    %3073 = vmatpush2.msra.mxu0 0.0
    %3074 = vmatprep.subr.mxu0 0.0
    %3075 = vmatpush2.msra.mxu0 0.0
    %3076 = vmatprep.subr.mxu0 0.0
    %3077 = vmatpush2.msra.mxu0 0.0
    %3078 = vmatprep.subr.mxu0 0.0
    %3079 = vmatpush2.msra.mxu0 0.0
    %3080 = vmatprep.subr.mxu0 0.0
    %3081 = vmatpush2.msra.mxu0 0.0
    %3082 = vmatprep.subr.mxu0 0.0
    %3083 = vmatpush2.msra.mxu0 0.0
    %3084 = vmatprep.mubr.f32.mxu0 0.0
    %3085 = vmatmul.mubr.f32.gmra.mxu0 %v3018
    %v3086 = vpop.f32.mrf.mxu0
    %v3087 = vadd.f32 %v2490, %v3086
    %v3088 = vpop.f32.mrf.mxu0
    %3089 = vdwg.mxu0
    %v3090 = vld [vmem:[#allocation13] sm:$0x7]
    %v3091 = vld [vmem:[#allocation15] sm:$0xff]
    %v3092 = vld [vmem:[#allocation15 + $0x8] sm:$0xff]
    %v3093 = vld [vmem:[#allocation15 + $0x10] sm:$0xff]
    %v3094 = vld [vmem:[#allocation15 + $0x18] sm:$0xff]
    %v3095 = vld [vmem:[#allocation16] sm:$0x1]
    %v3096 = vld [vmem:[#allocation22] sm:$0xff]
    %v3097 = vld [vmem:[#allocation22 + $0x8] sm:$0xff]
    %v3098 = vld [vmem:[#allocation22 + $0x10] sm:$0xff]
    %v3099 = vld [vmem:[#allocation22 + $0x18] sm:$0xff]
    %v3100 = vld [vmem:[#allocation24] sm:$0xff]
    %v3101 = vld [vmem:[#allocation24 + $0x8] sm:$0xff]
    %v3102 = vld [vmem:[#allocation24 + $0x10] sm:$0xff]
    %v3103 = vld [vmem:[#allocation24 + $0x18] sm:$0xff]
    %v3104 = vld [vmem:[%s24] sm:$0xff]
    %v3105 = vld [vmem:[%s24 + $0x8] sm:$0xff]
    %v3106 = vld [vmem:[%s24 + $0x10] sm:$0xff]
    %v3107 = vld [vmem:[%s24 + $0x18] sm:$0xff]
    %v3108 = vld [vmem:[%s25] sm:$0xff]
    %v3109 = vld [vmem:[%s25 + $0x8] sm:$0xff]
    %v3110 = vld [vmem:[%s25 + $0x10] sm:$0xff]
    %v3111 = vld [vmem:[%s25 + $0x18] sm:$0xff]
    %v3112 = vld [vmem:[%s26] sm:$0x1]
    %v3113 = vld [vmem:[%s2] sm:$0x3]
    %v3115 = vlaneseq
    %v3116 = vshrl.u32 %v3115, 7
    %v3117 = vsub.s32 0, %v3116
    %v3118 = vrot.slane %v3095, %v3117
    %v3121 = vsel %vm296, %v3113, 0
    %v3124 = vsel %vm300, %v3090, 0
    %3126 = vmatprep.subr.mxu0 0.0
    %3127 = vmatpush1.msra.mxu0 0.0
    %3128 = vmatprep.subr.mxu0 0.0
    %3129 = vmatpush1.msra.mxu0 0.0
    %3130 = vmatprep.subr.mxu0 0.0
    %3131 = vmatpush1.msra.mxu0 0.0
    %3132 = vmatprep.subr.mxu0 0.0
    %3133 = vmatpush1.msra.mxu0 0.0
    %3134 = vmatprep.subr.mxu0 0.0
    %3135 = vmatpush1.msra.mxu0 0.0
    %3136 = vmatprep.subr.mxu0 0.0
    %3137 = vmatpush1.msra.mxu0 0.0
    %3138 = vmatprep.subr.mxu0 0.0
    %3139 = vmatpush1.msra.mxu0 0.0
    %3140 = vmatprep.subr.mxu0 0.0
    %3141 = vmatpush1.msra.mxu0 0.0
    %3142 = vmatprep.subr.mxu0 0.0
    %3143 = vmatpush1.msra.mxu0 0.0
    %3144 = vmatprep.subr.mxu0 0.0
    %3145 = vmatpush1.msra.mxu0 0.0
    %3146 = vmatprep.subr.mxu0 0.0
    %3147 = vmatpush1.msra.mxu0 0.0
    %3148 = vmatprep.subr.mxu0 0.0
    %3149 = vmatpush1.msra.mxu0 0.0
    %3150 = vmatprep.subr.mxu0 0.0
    %3151 = vmatpush1.msra.mxu0 0.0
    %3152 = vmatprep.subr.mxu0 0.0
    %3153 = vmatpush1.msra.mxu0 0.0
    %3154 = vmatprep.subr.mxu0 0.0
    %3155 = vmatpush1.msra.mxu0 0.0
    %3156 = vmatprep.subr.mxu0 0.0
    %3157 = vmatpush1.msra.mxu0 %v3124
    %3158 = vmatprep.subr.mxu0 0.0
    %3159 = vmatpush2.msra.mxu0 0.0
    %3160 = vmatprep.subr.mxu0 0.0
    %3161 = vmatpush2.msra.mxu0 0.0
    %3162 = vmatprep.subr.mxu0 0.0
    %3163 = vmatpush2.msra.mxu0 0.0
    %3164 = vmatprep.subr.mxu0 0.0
    %3165 = vmatpush2.msra.mxu0 0.0
    %3166 = vmatprep.subr.mxu0 0.0
    %3167 = vmatpush2.msra.mxu0 0.0
    %3168 = vmatprep.subr.mxu0 0.0
    %3169 = vmatpush2.msra.mxu0 0.0
    %3170 = vmatprep.subr.mxu0 0.0
    %3171 = vmatpush2.msra.mxu0 0.0
    %3172 = vmatprep.subr.mxu0 0.0
    %3173 = vmatpush2.msra.mxu0 0.0
    %3174 = vmatprep.subr.mxu0 0.0
    %3175 = vmatpush2.msra.mxu0 0.0
    %3176 = vmatprep.subr.mxu0 0.0
    %3177 = vmatpush2.msra.mxu0 0.0
    %3178 = vmatprep.subr.mxu0 0.0
    %3179 = vmatpush2.msra.mxu0 0.0
    %3180 = vmatprep.subr.mxu0 0.0
    %3181 = vmatpush2.msra.mxu0 0.0
    %3182 = vmatprep.subr.mxu0 0.0
    %3183 = vmatpush2.msra.mxu0 0.0
    %3184 = vmatprep.subr.mxu0 0.0
    %3185 = vmatpush2.msra.mxu0 0.0
    %3186 = vmatprep.subr.mxu0 0.0
    %3187 = vmatpush2.msra.mxu0 0.0
    %3188 = vmatprep.subr.mxu0 0.0
    %3189 = vmatpush2.msra.mxu0 0.0
    %3190 = vmatprep.mubr.f32.mxu0 0.0
    %3191 = vmatmul.mubr.f32.gmra.mxu0 %v3121
    %v3192 = vpop.f32.mrf.mxu0
    %v3193 = vadd.f32 %v3118, %v3192
    %v3194 = vpop.f32.mrf.mxu0
    %3195 = vdwg.mxu0
    %3196 = vmatprep.subr.mxu0 0.0
    %3197 = vmatpush1.msra.mxu0 0.0
    %3198 = vmatprep.subr.mxu0 0.0
    %3199 = vmatpush1.msra.mxu0 0.0
    %3200 = vmatprep.subr.mxu0 0.0
    %3201 = vmatpush1.msra.mxu0 0.0
    %3202 = vmatprep.subr.mxu0 0.0
    %3203 = vmatpush1.msra.mxu0 0.0
    %3204 = vmatprep.subr.mxu0 0.0
    %3205 = vmatpush1.msra.mxu0 0.0
    %3206 = vmatprep.subr.mxu0 0.0
    %3207 = vmatpush1.msra.mxu0 0.0
    %3208 = vmatprep.subr.mxu0 0.0
    %3209 = vmatpush1.msra.mxu0 0.0
    %3210 = vmatprep.subr.mxu0 0.0
    %3211 = vmatpush1.msra.mxu0 0.0
    %3212 = vmatprep.subr.mxu0 0.0
    %3213 = vmatpush1.msra.mxu0 0.0
    %3214 = vmatprep.subr.mxu0 0.0
    %3215 = vmatpush1.msra.mxu0 0.0
    %3216 = vmatprep.subr.mxu0 0.0
    %3217 = vmatpush1.msra.mxu0 0.0
    %3218 = vmatprep.subr.mxu0 0.0
    %3219 = vmatpush1.msra.mxu0 0.0
    %3220 = vmatprep.subr.mxu0 0.0
    %3221 = vmatpush1.msra.mxu0 %v3094
    %3222 = vmatprep.subr.mxu0 0.0
    %3223 = vmatpush1.msra.mxu0 %v3093
    %3224 = vmatprep.subr.mxu0 0.0
    %3225 = vmatpush1.msra.mxu0 %v3092
    %3226 = vmatprep.subr.mxu0 0.0
    %3227 = vmatpush1.msra.mxu0 %v3091
    %3228 = vmatprep.subr.mxu0 0.0
    %3229 = vmatpush2.msra.mxu0 0.0
    %3230 = vmatprep.subr.mxu0 0.0
    %3231 = vmatpush2.msra.mxu0 0.0
    %3232 = vmatprep.subr.mxu0 0.0
    %3233 = vmatpush2.msra.mxu0 0.0
    %3234 = vmatprep.subr.mxu0 0.0
    %3235 = vmatpush2.msra.mxu0 0.0
    %3236 = vmatprep.subr.mxu0 0.0
    %3237 = vmatpush2.msra.mxu0 0.0
    %3238 = vmatprep.subr.mxu0 0.0
    %3239 = vmatpush2.msra.mxu0 0.0
    %3240 = vmatprep.subr.mxu0 0.0
    %3241 = vmatpush2.msra.mxu0 0.0
    %3242 = vmatprep.subr.mxu0 0.0
    %3243 = vmatpush2.msra.mxu0 0.0
    %3244 = vmatprep.subr.mxu0 0.0
    %3245 = vmatpush2.msra.mxu0 0.0
    %3246 = vmatprep.subr.mxu0 0.0
    %3247 = vmatpush2.msra.mxu0 0.0
    %3248 = vmatprep.subr.mxu0 0.0
    %3249 = vmatpush2.msra.mxu0 0.0
    %3250 = vmatprep.subr.mxu0 0.0
    %3251 = vmatpush2.msra.mxu0 0.0
    %3252 = vmatprep.subr.mxu0 0.0
    %3253 = vmatpush2.msra.mxu0 0.0
    %3254 = vmatprep.subr.mxu0 0.0
    %3255 = vmatpush2.msra.mxu0 0.0
    %3256 = vmatprep.subr.mxu0 0.0
    %3257 = vmatpush2.msra.mxu0 0.0
    %3258 = vmatprep.subr.mxu0 0.0
    %3259 = vmatpush2.msra.mxu0 0.0
    %3260 = vmatprep.mubr.f32.mxu0 0.0
    %3261 = vmatmul.mubr.f32.gmra.mxu0 %v2130
    %v3262 = vpop.f32.mrf.mxu0
    %v3263 = vadd.f32 0.0, %v3262
    %v3264 = vpop.f32.mrf.mxu0
    %3265 = vdwg.mxu0
    %v3266 = vadd.f32 %v3193, %v3263
    %v3267 = vxor.u32 %v3266, 2147483648
    %v3268 = vmul.f32 %v3267, 1.442695
    %v3269 = vpow.pop %v3268
    %v3270 = vadd.f32 %v3269, 1.0
    %v3271 = vrcp.pop %v3270
    %v3272 = vmul.f32 1.0, %v3271
    %v3273 = vtanh.pop %v3266
    %v3274 = vmul.f32 %v3272, %v2022
    %3276 = vrot.lane.b32.xlu0 %v3273, 64
    %v3277 = vpop.permute.xlu0 %3276
    %v3279 = vmul.f32 %v3272, %v3277
    %3281 = vrot.lane.b32.xlu0 %v3279, 32
    %v3282 = vpop.permute.xlu0 %3281
    %v3284 = vadd.f32 %v3274, %v3282
    %v3285 = vtanh.pop %v3284
    %3287 = vrot.lane.b32.xlu0 %v3285, 64
    %v3288 = vpop.permute.xlu0 %3287
    %v3290 = vmul.f32 %v3272, %v3288
    %3292 = vrot.lane.b32.xlu0 %v3290, 32
    %v3293 = vpop.permute.xlu0 %3292
    %v3294 = vsel %vm579, %v3293, 0
    %3296 = vmatprep.subr.mxu0 0.0
    %3297 = vmatpush1.msra.mxu0 0.0
    %3298 = vmatprep.subr.mxu0 0.0
    %3299 = vmatpush1.msra.mxu0 0.0
    %3300 = vmatprep.subr.mxu0 0.0
    %3301 = vmatpush1.msra.mxu0 0.0
    %3302 = vmatprep.subr.mxu0 0.0
    %3303 = vmatpush1.msra.mxu0 0.0
    %3304 = vmatprep.subr.mxu0 0.0
    %3305 = vmatpush1.msra.mxu0 0.0
    %3306 = vmatprep.subr.mxu0 0.0
    %3307 = vmatpush1.msra.mxu0 0.0
    %3308 = vmatprep.subr.mxu0 0.0
    %3309 = vmatpush1.msra.mxu0 0.0
    %3310 = vmatprep.subr.mxu0 0.0
    %3311 = vmatpush1.msra.mxu0 0.0
    %3312 = vmatprep.subr.mxu0 0.0
    %3313 = vmatpush1.msra.mxu0 0.0
    %3314 = vmatprep.subr.mxu0 0.0
    %3315 = vmatpush1.msra.mxu0 0.0
    %3316 = vmatprep.subr.mxu0 0.0
    %3317 = vmatpush1.msra.mxu0 0.0
    %3318 = vmatprep.subr.mxu0 0.0
    %3319 = vmatpush1.msra.mxu0 0.0
    %3320 = vmatprep.subr.mxu0 0.0
    %3321 = vmatpush1.msra.mxu0 %v3099
    %3322 = vmatprep.subr.mxu0 0.0
    %3323 = vmatpush1.msra.mxu0 %v3098
    %3324 = vmatprep.subr.mxu0 0.0
    %3325 = vmatpush1.msra.mxu0 %v3097
    %3326 = vmatprep.subr.mxu0 0.0
    %3327 = vmatpush1.msra.mxu0 %v3096
    %3328 = vmatprep.subr.mxu0 0.0
    %3329 = vmatpush2.msra.mxu0 0.0
    %3330 = vmatprep.subr.mxu0 0.0
    %3331 = vmatpush2.msra.mxu0 0.0
    %3332 = vmatprep.subr.mxu0 0.0
    %3333 = vmatpush2.msra.mxu0 0.0
    %3334 = vmatprep.subr.mxu0 0.0
    %3335 = vmatpush2.msra.mxu0 0.0
    %3336 = vmatprep.subr.mxu0 0.0
    %3337 = vmatpush2.msra.mxu0 0.0
    %3338 = vmatprep.subr.mxu0 0.0
    %3339 = vmatpush2.msra.mxu0 0.0
    %3340 = vmatprep.subr.mxu0 0.0
    %3341 = vmatpush2.msra.mxu0 0.0
    %3342 = vmatprep.subr.mxu0 0.0
    %3343 = vmatpush2.msra.mxu0 0.0
    %3344 = vmatprep.subr.mxu0 0.0
    %3345 = vmatpush2.msra.mxu0 0.0
    %3346 = vmatprep.subr.mxu0 0.0
    %3347 = vmatpush2.msra.mxu0 0.0
    %3348 = vmatprep.subr.mxu0 0.0
    %3349 = vmatpush2.msra.mxu0 0.0
    %3350 = vmatprep.subr.mxu0 0.0
    %3351 = vmatpush2.msra.mxu0 0.0
    %3352 = vmatprep.subr.mxu0 0.0
    %3353 = vmatpush2.msra.mxu0 0.0
    %3354 = vmatprep.subr.mxu0 0.0
    %3355 = vmatpush2.msra.mxu0 0.0
    %3356 = vmatprep.subr.mxu0 0.0
    %3357 = vmatpush2.msra.mxu0 0.0
    %3358 = vmatprep.subr.mxu0 0.0
    %3359 = vmatpush2.msra.mxu0 0.0
    %3360 = vmatprep.mubr.f32.mxu0 0.0
    %3361 = vmatmul.mubr.f32.gmra.mxu0 %v3294
    %v3362 = vpop.f32.mrf.mxu0
    %v3363 = vadd.f32 0.0, %v3362
    %v3364 = vpop.f32.mrf.mxu0
    %3365 = vdwg.mxu0
    %v3366 = vadd.f32 %v2564, %v3363
    %3368 = vrot.lane.b32.xlu0 %v2377, 32
    %v3369 = vpop.permute.xlu0 %3368
    %v3370 = vsel %vm579, %v3369, 0
    %3372 = vmatprep.subr.mxu0 0.0
    %3373 = vmatpush1.msra.mxu0 0.0
    %3374 = vmatprep.subr.mxu0 0.0
    %3375 = vmatpush1.msra.mxu0 0.0
    %3376 = vmatprep.subr.mxu0 0.0
    %3377 = vmatpush1.msra.mxu0 0.0
    %3378 = vmatprep.subr.mxu0 0.0
    %3379 = vmatpush1.msra.mxu0 0.0
    %3380 = vmatprep.subr.mxu0 0.0
    %3381 = vmatpush1.msra.mxu0 0.0
    %3382 = vmatprep.subr.mxu0 0.0
    %3383 = vmatpush1.msra.mxu0 0.0
    %3384 = vmatprep.subr.mxu0 0.0
    %3385 = vmatpush1.msra.mxu0 0.0
    %3386 = vmatprep.subr.mxu0 0.0
    %3387 = vmatpush1.msra.mxu0 0.0
    %3388 = vmatprep.subr.mxu0 0.0
    %3389 = vmatpush1.msra.mxu0 0.0
    %3390 = vmatprep.subr.mxu0 0.0
    %3391 = vmatpush1.msra.mxu0 0.0
    %3392 = vmatprep.subr.mxu0 0.0
    %3393 = vmatpush1.msra.mxu0 0.0
    %3394 = vmatprep.subr.mxu0 0.0
    %3395 = vmatpush1.msra.mxu0 0.0
    %3396 = vmatprep.subr.mxu0 0.0
    %3397 = vmatpush1.msra.mxu0 %v3103
    %3398 = vmatprep.subr.mxu0 0.0
    %3399 = vmatpush1.msra.mxu0 %v3102
    %3400 = vmatprep.subr.mxu0 0.0
    %3401 = vmatpush1.msra.mxu0 %v3101
    %3402 = vmatprep.subr.mxu0 0.0
    %3403 = vmatpush1.msra.mxu0 %v3100
    %3404 = vmatprep.subr.mxu0 0.0
    %3405 = vmatpush2.msra.mxu0 0.0
    %3406 = vmatprep.subr.mxu0 0.0
    %3407 = vmatpush2.msra.mxu0 0.0
    %3408 = vmatprep.subr.mxu0 0.0
    %3409 = vmatpush2.msra.mxu0 0.0
    %3410 = vmatprep.subr.mxu0 0.0
    %3411 = vmatpush2.msra.mxu0 0.0
    %3412 = vmatprep.subr.mxu0 0.0
    %3413 = vmatpush2.msra.mxu0 0.0
    %3414 = vmatprep.subr.mxu0 0.0
    %3415 = vmatpush2.msra.mxu0 0.0
    %3416 = vmatprep.subr.mxu0 0.0
    %3417 = vmatpush2.msra.mxu0 0.0
    %3418 = vmatprep.subr.mxu0 0.0
    %3419 = vmatpush2.msra.mxu0 0.0
    %3420 = vmatprep.subr.mxu0 0.0
    %3421 = vmatpush2.msra.mxu0 0.0
    %3422 = vmatprep.subr.mxu0 0.0
    %3423 = vmatpush2.msra.mxu0 0.0
    %3424 = vmatprep.subr.mxu0 0.0
    %3425 = vmatpush2.msra.mxu0 0.0
    %3426 = vmatprep.subr.mxu0 0.0
    %3427 = vmatpush2.msra.mxu0 0.0
    %3428 = vmatprep.subr.mxu0 0.0
    %3429 = vmatpush2.msra.mxu0 0.0
    %3430 = vmatprep.subr.mxu0 0.0
    %3431 = vmatpush2.msra.mxu0 0.0
    %3432 = vmatprep.subr.mxu0 0.0
    %3433 = vmatpush2.msra.mxu0 0.0
    %3434 = vmatprep.subr.mxu0 0.0
    %3435 = vmatpush2.msra.mxu0 0.0
    %3436 = vmatprep.mubr.f32.mxu0 0.0
    %3437 = vmatmul.mubr.f32.gmra.mxu0 %v3370
    %v3438 = vpop.f32.mrf.mxu0
    %v3439 = vadd.f32 0.0, %v3438
    %v3440 = vpop.f32.mrf.mxu0
    %3441 = vdwg.mxu0
    %v3442 = vadd.f32 %v3366, %v3439
    %v3443 = vxor.u32 %v3442, 2147483648
    %v3444 = vmul.f32 %v3443, 1.442695
    %v3445 = vpow.pop %v3444
    %v3446 = vadd.f32 %v3445, 1.0
    %v3447 = vrcp.pop %v3446
    %v3448 = vmul.f32 1.0, %v3447
    %v3449 = vtanh.pop %v3442
    %v3450 = vmul.f32 %v3448, %v2371
    %3452 = vrot.lane.b32.xlu0 %v3449, 64
    %v3453 = vpop.permute.xlu0 %3452
    %v3455 = vmul.f32 %v3448, %v3453
    %3457 = vrot.lane.b32.xlu0 %v3455, 32
    %v3458 = vpop.permute.xlu0 %3457
    %v3460 = vadd.f32 %v3450, %v3458
    %v3461 = vtanh.pop %v3460
    %3463 = vrot.lane.b32.xlu0 %v3461, 64
    %v3464 = vpop.permute.xlu0 %3463
    %v3466 = vmul.f32 %v3448, %v3464
    %3467 = vmatprep.subr.mxu0 0.0
    %3468 = vmatpush1.msra.mxu0 0.0
    %3469 = vmatprep.subr.mxu0 0.0
    %3470 = vmatpush1.msra.mxu0 0.0
    %3471 = vmatprep.subr.mxu0 0.0
    %3472 = vmatpush1.msra.mxu0 0.0
    %3473 = vmatprep.subr.mxu0 0.0
    %3474 = vmatpush1.msra.mxu0 0.0
    %3475 = vmatprep.subr.mxu0 0.0
    %3476 = vmatpush1.msra.mxu0 0.0
    %3477 = vmatprep.subr.mxu0 0.0
    %3478 = vmatpush1.msra.mxu0 0.0
    %3479 = vmatprep.subr.mxu0 0.0
    %3480 = vmatpush1.msra.mxu0 0.0
    %3481 = vmatprep.subr.mxu0 0.0
    %3482 = vmatpush1.msra.mxu0 0.0
    %3483 = vmatprep.subr.mxu0 0.0
    %3484 = vmatpush1.msra.mxu0 0.0
    %3485 = vmatprep.subr.mxu0 0.0
    %3486 = vmatpush1.msra.mxu0 0.0
    %3487 = vmatprep.subr.mxu0 0.0
    %3488 = vmatpush1.msra.mxu0 0.0
    %3489 = vmatprep.subr.mxu0 0.0
    %3490 = vmatpush1.msra.mxu0 0.0
    %3491 = vmatprep.subr.mxu0 0.0
    %3492 = vmatpush1.msra.mxu0 %v3107
    %3493 = vmatprep.subr.mxu0 0.0
    %3494 = vmatpush1.msra.mxu0 %v3106
    %3495 = vmatprep.subr.mxu0 0.0
    %3496 = vmatpush1.msra.mxu0 %v3105
    %3497 = vmatprep.subr.mxu0 0.0
    %3498 = vmatpush1.msra.mxu0 %v3104
    %3499 = vmatprep.subr.mxu0 0.0
    %3500 = vmatpush2.msra.mxu0 0.0
    %3501 = vmatprep.subr.mxu0 0.0
    %3502 = vmatpush2.msra.mxu0 0.0
    %3503 = vmatprep.subr.mxu0 0.0
    %3504 = vmatpush2.msra.mxu0 0.0
    %3505 = vmatprep.subr.mxu0 0.0
    %3506 = vmatpush2.msra.mxu0 0.0
    %3507 = vmatprep.subr.mxu0 0.0
    %3508 = vmatpush2.msra.mxu0 0.0
    %3509 = vmatprep.subr.mxu0 0.0
    %3510 = vmatpush2.msra.mxu0 0.0
    %3511 = vmatprep.subr.mxu0 0.0
    %3512 = vmatpush2.msra.mxu0 0.0
    %3513 = vmatprep.subr.mxu0 0.0
    %3514 = vmatpush2.msra.mxu0 0.0
    %3515 = vmatprep.subr.mxu0 0.0
    %3516 = vmatpush2.msra.mxu0 0.0
    %3517 = vmatprep.subr.mxu0 0.0
    %3518 = vmatpush2.msra.mxu0 0.0
    %3519 = vmatprep.subr.mxu0 0.0
    %3520 = vmatpush2.msra.mxu0 0.0
    %3521 = vmatprep.subr.mxu0 0.0
    %3522 = vmatpush2.msra.mxu0 0.0
    %3523 = vmatprep.subr.mxu0 0.0
    %3524 = vmatpush2.msra.mxu0 0.0
    %3525 = vmatprep.subr.mxu0 0.0
    %3526 = vmatpush2.msra.mxu0 0.0
    %3527 = vmatprep.subr.mxu0 0.0
    %3528 = vmatpush2.msra.mxu0 0.0
    %3529 = vmatprep.subr.mxu0 0.0
    %3530 = vmatpush2.msra.mxu0 0.0
    %3531 = vmatprep.mubr.f32.mxu0 0.0
    %3532 = vmatmul.mubr.f32.gmra.mxu0 %v3294
    %v3533 = vpop.f32.mrf.mxu0
    %v3534 = vadd.f32 0.0, %v3533
    %v3535 = vpop.f32.mrf.mxu0
    %3536 = vdwg.mxu0
    %v3537 = vadd.f32 %v3113, %v3534
    %3539 = vrot.lane.b32.xlu0 %v3466, 32
    %v3540 = vpop.permute.xlu0 %3539
    %v3541 = vsel %vm579, %v3540, 0
    %3543 = vmatprep.subr.mxu0 0.0
    %3544 = vmatpush1.msra.mxu0 0.0
    %3545 = vmatprep.subr.mxu0 0.0
    %3546 = vmatpush1.msra.mxu0 0.0
    %3547 = vmatprep.subr.mxu0 0.0
    %3548 = vmatpush1.msra.mxu0 0.0
    %3549 = vmatprep.subr.mxu0 0.0
    %3550 = vmatpush1.msra.mxu0 0.0
    %3551 = vmatprep.subr.mxu0 0.0
    %3552 = vmatpush1.msra.mxu0 0.0
    %3553 = vmatprep.subr.mxu0 0.0
    %3554 = vmatpush1.msra.mxu0 0.0
    %3555 = vmatprep.subr.mxu0 0.0
    %3556 = vmatpush1.msra.mxu0 0.0
    %3557 = vmatprep.subr.mxu0 0.0
    %3558 = vmatpush1.msra.mxu0 0.0
    %3559 = vmatprep.subr.mxu0 0.0
    %3560 = vmatpush1.msra.mxu0 0.0
    %3561 = vmatprep.subr.mxu0 0.0
    %3562 = vmatpush1.msra.mxu0 0.0
    %3563 = vmatprep.subr.mxu0 0.0
    %3564 = vmatpush1.msra.mxu0 0.0
    %3565 = vmatprep.subr.mxu0 0.0
    %3566 = vmatpush1.msra.mxu0 0.0
    %3567 = vmatprep.subr.mxu0 0.0
    %3568 = vmatpush1.msra.mxu0 %v3111
    %3569 = vmatprep.subr.mxu0 0.0
    %3570 = vmatpush1.msra.mxu0 %v3110
    %3571 = vmatprep.subr.mxu0 0.0
    %3572 = vmatpush1.msra.mxu0 %v3109
    %3573 = vmatprep.subr.mxu0 0.0
    %3574 = vmatpush1.msra.mxu0 %v3108
    %3575 = vmatprep.subr.mxu0 0.0
    %3576 = vmatpush2.msra.mxu0 0.0
    %3577 = vmatprep.subr.mxu0 0.0
    %3578 = vmatpush2.msra.mxu0 0.0
    %3579 = vmatprep.subr.mxu0 0.0
    %3580 = vmatpush2.msra.mxu0 0.0
    %3581 = vmatprep.subr.mxu0 0.0
    %3582 = vmatpush2.msra.mxu0 0.0
    %3583 = vmatprep.subr.mxu0 0.0
    %3584 = vmatpush2.msra.mxu0 0.0
    %3585 = vmatprep.subr.mxu0 0.0
    %3586 = vmatpush2.msra.mxu0 0.0
    %3587 = vmatprep.subr.mxu0 0.0
    %3588 = vmatpush2.msra.mxu0 0.0
    %3589 = vmatprep.subr.mxu0 0.0
    %3590 = vmatpush2.msra.mxu0 0.0
    %3591 = vmatprep.subr.mxu0 0.0
    %3592 = vmatpush2.msra.mxu0 0.0
    %3593 = vmatprep.subr.mxu0 0.0
    %3594 = vmatpush2.msra.mxu0 0.0
    %3595 = vmatprep.subr.mxu0 0.0
    %3596 = vmatpush2.msra.mxu0 0.0
    %3597 = vmatprep.subr.mxu0 0.0
    %3598 = vmatpush2.msra.mxu0 0.0
    %3599 = vmatprep.subr.mxu0 0.0
    %3600 = vmatpush2.msra.mxu0 0.0
    %3601 = vmatprep.subr.mxu0 0.0
    %3602 = vmatpush2.msra.mxu0 0.0
    %3603 = vmatprep.subr.mxu0 0.0
    %3604 = vmatpush2.msra.mxu0 0.0
    %3605 = vmatprep.subr.mxu0 0.0
    %3606 = vmatpush2.msra.mxu0 0.0
    %3607 = vmatprep.mubr.f32.mxu0 0.0
    %3608 = vmatmul.mubr.f32.gmra.mxu0 %v3541
    %v3609 = vpop.f32.mrf.mxu0
    %v3610 = vadd.f32 0.0, %v3609
    %v3611 = vpop.f32.mrf.mxu0
    %3612 = vdwg.mxu0
    %v3613 = vadd.f32 %v3537, %v3610
    %v3615 = vlaneseq
    %v3616 = vshrl.u32 %v3615, 7
    %v3617 = vsub.s32 0, %v3616
    %v3618 = vrot.slane %v3112, %v3617
    %v3620 = vadd.f32 %v3613, %v3618
    %vm3621 = vcmask 17408
    %3622 = vst.msk [vmem:[%s27] sm:$0x3] %vm3621, %v3620
    %v3624 = vsel %vm296, %v3620, 0
    %3626 = vmatprep.subr.mxu0 0.0
    %3627 = vmatpush1.msra.mxu0 0.0
    %3628 = vmatprep.subr.mxu0 0.0
    %3629 = vmatpush1.msra.mxu0 0.0
    %3630 = vmatprep.subr.mxu0 0.0
    %3631 = vmatpush1.msra.mxu0 0.0
    %3632 = vmatprep.subr.mxu0 0.0
    %3633 = vmatpush1.msra.mxu0 0.0
    %3634 = vmatprep.subr.mxu0 0.0
    %3635 = vmatpush1.msra.mxu0 0.0
    %3636 = vmatprep.subr.mxu0 0.0
    %3637 = vmatpush1.msra.mxu0 0.0
    %3638 = vmatprep.subr.mxu0 0.0
    %3639 = vmatpush1.msra.mxu0 0.0
    %3640 = vmatprep.subr.mxu0 0.0
    %3641 = vmatpush1.msra.mxu0 0.0
    %3642 = vmatprep.subr.mxu0 0.0
    %3643 = vmatpush1.msra.mxu0 0.0
    %3644 = vmatprep.subr.mxu0 0.0
    %3645 = vmatpush1.msra.mxu0 0.0
    %3646 = vmatprep.subr.mxu0 0.0
    %3647 = vmatpush1.msra.mxu0 0.0
    %3648 = vmatprep.subr.mxu0 0.0
    %3649 = vmatpush1.msra.mxu0 0.0
    %3650 = vmatprep.subr.mxu0 0.0
    %3651 = vmatpush1.msra.mxu0 0.0
    %3652 = vmatprep.subr.mxu0 0.0
    %3653 = vmatpush1.msra.mxu0 0.0
    %3654 = vmatprep.subr.mxu0 0.0
    %3655 = vmatpush1.msra.mxu0 0.0
    %3656 = vmatprep.subr.mxu0 0.0
    %3657 = vmatpush1.msra.mxu0 %v3124
    %3658 = vmatprep.subr.mxu0 0.0
    %3659 = vmatpush2.msra.mxu0 0.0
    %3660 = vmatprep.subr.mxu0 0.0
    %3661 = vmatpush2.msra.mxu0 0.0
    %3662 = vmatprep.subr.mxu0 0.0
    %3663 = vmatpush2.msra.mxu0 0.0
    %3664 = vmatprep.subr.mxu0 0.0
    %3665 = vmatpush2.msra.mxu0 0.0
    %3666 = vmatprep.subr.mxu0 0.0
    %3667 = vmatpush2.msra.mxu0 0.0
    %3668 = vmatprep.subr.mxu0 0.0
    %3669 = vmatpush2.msra.mxu0 0.0
    %3670 = vmatprep.subr.mxu0 0.0
    %3671 = vmatpush2.msra.mxu0 0.0
    %3672 = vmatprep.subr.mxu0 0.0
    %3673 = vmatpush2.msra.mxu0 0.0
    %3674 = vmatprep.subr.mxu0 0.0
    %3675 = vmatpush2.msra.mxu0 0.0
    %3676 = vmatprep.subr.mxu0 0.0
    %3677 = vmatpush2.msra.mxu0 0.0
    %3678 = vmatprep.subr.mxu0 0.0
    %3679 = vmatpush2.msra.mxu0 0.0
    %3680 = vmatprep.subr.mxu0 0.0
    %3681 = vmatpush2.msra.mxu0 0.0
    %3682 = vmatprep.subr.mxu0 0.0
    %3683 = vmatpush2.msra.mxu0 0.0
    %3684 = vmatprep.subr.mxu0 0.0
    %3685 = vmatpush2.msra.mxu0 0.0
    %3686 = vmatprep.subr.mxu0 0.0
    %3687 = vmatpush2.msra.mxu0 0.0
    %3688 = vmatprep.subr.mxu0 0.0
    %3689 = vmatpush2.msra.mxu0 0.0
    %3690 = vmatprep.mubr.f32.mxu0 0.0
    %3691 = vmatmul.mubr.f32.gmra.mxu0 %v3624
    %v3692 = vpop.f32.mrf.mxu0
    %v3693 = vadd.f32 %v3118, %v3692
    %v3694 = vpop.f32.mrf.mxu0
    %3695 = vdwg.mxu0
    %3696 = vmatprep.subr.mxu0 0.0
    %3697 = vmatpush1.msra.mxu0 0.0
    %3698 = vmatprep.subr.mxu0 0.0
    %3699 = vmatpush1.msra.mxu0 0.0
    %3700 = vmatprep.subr.mxu0 0.0
    %3701 = vmatpush1.msra.mxu0 0.0
    %3702 = vmatprep.subr.mxu0 0.0
    %3703 = vmatpush1.msra.mxu0 0.0
    %3704 = vmatprep.subr.mxu0 0.0
    %3705 = vmatpush1.msra.mxu0 0.0
    %3706 = vmatprep.subr.mxu0 0.0
    %3707 = vmatpush1.msra.mxu0 0.0
    %3708 = vmatprep.subr.mxu0 0.0
    %3709 = vmatpush1.msra.mxu0 0.0
    %3710 = vmatprep.subr.mxu0 0.0
    %3711 = vmatpush1.msra.mxu0 0.0
    %3712 = vmatprep.subr.mxu0 0.0
    %3713 = vmatpush1.msra.mxu0 0.0
    %3714 = vmatprep.subr.mxu0 0.0
    %3715 = vmatpush1.msra.mxu0 0.0
    %3716 = vmatprep.subr.mxu0 0.0
    %3717 = vmatpush1.msra.mxu0 0.0
    %3718 = vmatprep.subr.mxu0 0.0
    %3719 = vmatpush1.msra.mxu0 0.0
    %3720 = vmatprep.subr.mxu0 0.0
    %3721 = vmatpush1.msra.mxu0 %v3094
    %3722 = vmatprep.subr.mxu0 0.0
    %3723 = vmatpush1.msra.mxu0 %v3093
    %3724 = vmatprep.subr.mxu0 0.0
    %3725 = vmatpush1.msra.mxu0 %v3092
    %3726 = vmatprep.subr.mxu0 0.0
    %3727 = vmatpush1.msra.mxu0 %v3091
    %3728 = vmatprep.subr.mxu0 0.0
    %3729 = vmatpush2.msra.mxu0 0.0
    %3730 = vmatprep.subr.mxu0 0.0
    %3731 = vmatpush2.msra.mxu0 0.0
    %3732 = vmatprep.subr.mxu0 0.0
    %3733 = vmatpush2.msra.mxu0 0.0
    %3734 = vmatprep.subr.mxu0 0.0
    %3735 = vmatpush2.msra.mxu0 0.0
    %3736 = vmatprep.subr.mxu0 0.0
    %3737 = vmatpush2.msra.mxu0 0.0
    %3738 = vmatprep.subr.mxu0 0.0
    %3739 = vmatpush2.msra.mxu0 0.0
    %3740 = vmatprep.subr.mxu0 0.0
    %3741 = vmatpush2.msra.mxu0 0.0
    %3742 = vmatprep.subr.mxu0 0.0
    %3743 = vmatpush2.msra.mxu0 0.0
    %3744 = vmatprep.subr.mxu0 0.0
    %3745 = vmatpush2.msra.mxu0 0.0
    %3746 = vmatprep.subr.mxu0 0.0
    %3747 = vmatpush2.msra.mxu0 0.0
    %3748 = vmatprep.subr.mxu0 0.0
    %3749 = vmatpush2.msra.mxu0 0.0
    %3750 = vmatprep.subr.mxu0 0.0
    %3751 = vmatpush2.msra.mxu0 0.0
    %3752 = vmatprep.subr.mxu0 0.0
    %3753 = vmatpush2.msra.mxu0 0.0
    %3754 = vmatprep.subr.mxu0 0.0
    %3755 = vmatpush2.msra.mxu0 0.0
    %3756 = vmatprep.subr.mxu0 0.0
    %3757 = vmatpush2.msra.mxu0 0.0
    %3758 = vmatprep.subr.mxu0 0.0
    %3759 = vmatpush2.msra.mxu0 0.0
    %3760 = vmatprep.mubr.f32.mxu0 0.0
    %3761 = vmatmul.mubr.f32.gmra.mxu0 %v3294
    %v3762 = vpop.f32.mrf.mxu0
    %v3763 = vadd.f32 0.0, %v3762
    %v3764 = vpop.f32.mrf.mxu0
    %3765 = vdwg.mxu0
    %v3766 = vadd.f32 %v3693, %v3763
    %v3767 = vxor.u32 %v3766, 2147483648
    %v3768 = vmul.f32 %v3767, 1.442695
    %v3769 = vpow.pop %v3768
    %v3770 = vadd.f32 %v3769, 1.0
    %v3771 = vrcp.pop %v3770
    %v3772 = vmul.f32 1.0, %v3771
    %v3773 = vtanh.pop %v3766
    %v3774 = vmul.f32 %v3772, %v3284
    %3776 = vrot.lane.b32.xlu0 %v3773, 64
    %v3777 = vpop.permute.xlu0 %3776
    %v3779 = vmul.f32 %v3772, %v3777
    %3781 = vrot.lane.b32.xlu0 %v3779, 32
    %v3782 = vpop.permute.xlu0 %3781
    %v3784 = vadd.f32 %v3774, %v3782
    %v3785 = vtanh.pop %v3784
    %3787 = vrot.lane.b32.xlu0 %v3785, 64
    %v3788 = vpop.permute.xlu0 %3787
    %v3790 = vmul.f32 %v3772, %v3788
    %3792 = vrot.lane.b32.xlu0 %v3790, 32
    %v3793 = vpop.permute.xlu0 %3792
    %v3794 = vsel %vm579, %v3793, 0
    %3796 = vmatprep.subr.mxu0 0.0
    %3797 = vmatpush1.msra.mxu0 0.0
    %3798 = vmatprep.subr.mxu0 0.0
    %3799 = vmatpush1.msra.mxu0 0.0
    %3800 = vmatprep.subr.mxu0 0.0
    %3801 = vmatpush1.msra.mxu0 0.0
    %3802 = vmatprep.subr.mxu0 0.0
    %3803 = vmatpush1.msra.mxu0 0.0
    %3804 = vmatprep.subr.mxu0 0.0
    %3805 = vmatpush1.msra.mxu0 0.0
    %3806 = vmatprep.subr.mxu0 0.0
    %3807 = vmatpush1.msra.mxu0 0.0
    %3808 = vmatprep.subr.mxu0 0.0
    %3809 = vmatpush1.msra.mxu0 0.0
    %3810 = vmatprep.subr.mxu0 0.0
    %3811 = vmatpush1.msra.mxu0 0.0
    %3812 = vmatprep.subr.mxu0 0.0
    %3813 = vmatpush1.msra.mxu0 0.0
    %3814 = vmatprep.subr.mxu0 0.0
    %3815 = vmatpush1.msra.mxu0 0.0
    %3816 = vmatprep.subr.mxu0 0.0
    %3817 = vmatpush1.msra.mxu0 0.0
    %3818 = vmatprep.subr.mxu0 0.0
    %3819 = vmatpush1.msra.mxu0 0.0
    %3820 = vmatprep.subr.mxu0 0.0
    %3821 = vmatpush1.msra.mxu0 %v3099
    %3822 = vmatprep.subr.mxu0 0.0
    %3823 = vmatpush1.msra.mxu0 %v3098
    %3824 = vmatprep.subr.mxu0 0.0
    %3825 = vmatpush1.msra.mxu0 %v3097
    %3826 = vmatprep.subr.mxu0 0.0
    %3827 = vmatpush1.msra.mxu0 %v3096
    %3828 = vmatprep.subr.mxu0 0.0
    %3829 = vmatpush2.msra.mxu0 0.0
    %3830 = vmatprep.subr.mxu0 0.0
    %3831 = vmatpush2.msra.mxu0 0.0
    %3832 = vmatprep.subr.mxu0 0.0
    %3833 = vmatpush2.msra.mxu0 0.0
    %3834 = vmatprep.subr.mxu0 0.0
    %3835 = vmatpush2.msra.mxu0 0.0
    %3836 = vmatprep.subr.mxu0 0.0
    %3837 = vmatpush2.msra.mxu0 0.0
    %3838 = vmatprep.subr.mxu0 0.0
    %3839 = vmatpush2.msra.mxu0 0.0
    %3840 = vmatprep.subr.mxu0 0.0
    %3841 = vmatpush2.msra.mxu0 0.0
    %3842 = vmatprep.subr.mxu0 0.0
    %3843 = vmatpush2.msra.mxu0 0.0
    %3844 = vmatprep.subr.mxu0 0.0
    %3845 = vmatpush2.msra.mxu0 0.0
    %3846 = vmatprep.subr.mxu0 0.0
    %3847 = vmatpush2.msra.mxu0 0.0
    %3848 = vmatprep.subr.mxu0 0.0
    %3849 = vmatpush2.msra.mxu0 0.0
    %3850 = vmatprep.subr.mxu0 0.0
    %3851 = vmatpush2.msra.mxu0 0.0
    %3852 = vmatprep.subr.mxu0 0.0
    %3853 = vmatpush2.msra.mxu0 0.0
    %3854 = vmatprep.subr.mxu0 0.0
    %3855 = vmatpush2.msra.mxu0 0.0
    %3856 = vmatprep.subr.mxu0 0.0
    %3857 = vmatpush2.msra.mxu0 0.0
    %3858 = vmatprep.subr.mxu0 0.0
    %3859 = vmatpush2.msra.mxu0 0.0
    %3860 = vmatprep.mubr.f32.mxu0 0.0
    %3861 = vmatmul.mubr.f32.gmra.mxu0 %v3794
    %v3862 = vpop.f32.mrf.mxu0
    %v3863 = vadd.f32 0.0, %v3862
    %v3864 = vpop.f32.mrf.mxu0
    %3865 = vdwg.mxu0
    %v3866 = vadd.f32 %v2739, %v3863
    %3867 = vmatprep.subr.mxu0 0.0
    %3868 = vmatpush1.msra.mxu0 0.0
    %3869 = vmatprep.subr.mxu0 0.0
    %3870 = vmatpush1.msra.mxu0 0.0
    %3871 = vmatprep.subr.mxu0 0.0
    %3872 = vmatpush1.msra.mxu0 0.0
    %3873 = vmatprep.subr.mxu0 0.0
    %3874 = vmatpush1.msra.mxu0 0.0
    %3875 = vmatprep.subr.mxu0 0.0
    %3876 = vmatpush1.msra.mxu0 0.0
    %3877 = vmatprep.subr.mxu0 0.0
    %3878 = vmatpush1.msra.mxu0 0.0
    %3879 = vmatprep.subr.mxu0 0.0
    %3880 = vmatpush1.msra.mxu0 0.0
    %3881 = vmatprep.subr.mxu0 0.0
    %3882 = vmatpush1.msra.mxu0 0.0
    %3883 = vmatprep.subr.mxu0 0.0
    %3884 = vmatpush1.msra.mxu0 0.0
    %3885 = vmatprep.subr.mxu0 0.0
    %3886 = vmatpush1.msra.mxu0 0.0
    %3887 = vmatprep.subr.mxu0 0.0
    %3888 = vmatpush1.msra.mxu0 0.0
    %3889 = vmatprep.subr.mxu0 0.0
    %3890 = vmatpush1.msra.mxu0 0.0
    %3891 = vmatprep.subr.mxu0 0.0
    %3892 = vmatpush1.msra.mxu0 %v3103
    %3893 = vmatprep.subr.mxu0 0.0
    %3894 = vmatpush1.msra.mxu0 %v3102
    %3895 = vmatprep.subr.mxu0 0.0
    %3896 = vmatpush1.msra.mxu0 %v3101
    %3897 = vmatprep.subr.mxu0 0.0
    %3898 = vmatpush1.msra.mxu0 %v3100
    %3899 = vmatprep.subr.mxu0 0.0
    %3900 = vmatpush2.msra.mxu0 0.0
    %3901 = vmatprep.subr.mxu0 0.0
    %3902 = vmatpush2.msra.mxu0 0.0
    %3903 = vmatprep.subr.mxu0 0.0
    %3904 = vmatpush2.msra.mxu0 0.0
    %3905 = vmatprep.subr.mxu0 0.0
    %3906 = vmatpush2.msra.mxu0 0.0
    %3907 = vmatprep.subr.mxu0 0.0
    %3908 = vmatpush2.msra.mxu0 0.0
    %3909 = vmatprep.subr.mxu0 0.0
    %3910 = vmatpush2.msra.mxu0 0.0
    %3911 = vmatprep.subr.mxu0 0.0
    %3912 = vmatpush2.msra.mxu0 0.0
    %3913 = vmatprep.subr.mxu0 0.0
    %3914 = vmatpush2.msra.mxu0 0.0
    %3915 = vmatprep.subr.mxu0 0.0
    %3916 = vmatpush2.msra.mxu0 0.0
    %3917 = vmatprep.subr.mxu0 0.0
    %3918 = vmatpush2.msra.mxu0 0.0
    %3919 = vmatprep.subr.mxu0 0.0
    %3920 = vmatpush2.msra.mxu0 0.0
    %3921 = vmatprep.subr.mxu0 0.0
    %3922 = vmatpush2.msra.mxu0 0.0
    %3923 = vmatprep.subr.mxu0 0.0
    %3924 = vmatpush2.msra.mxu0 0.0
    %3925 = vmatprep.subr.mxu0 0.0
    %3926 = vmatpush2.msra.mxu0 0.0
    %3927 = vmatprep.subr.mxu0 0.0
    %3928 = vmatpush2.msra.mxu0 0.0
    %3929 = vmatprep.subr.mxu0 0.0
    %3930 = vmatpush2.msra.mxu0 0.0
    %3931 = vmatprep.mubr.f32.mxu0 0.0
    %3932 = vmatmul.mubr.f32.gmra.mxu0 %v3541
    %v3933 = vpop.f32.mrf.mxu0
    %v3934 = vadd.f32 0.0, %v3933
    %v3935 = vpop.f32.mrf.mxu0
    %3936 = vdwg.mxu0
    %v3937 = vadd.f32 %v3866, %v3934
    %v3938 = vxor.u32 %v3937, 2147483648
    %v3939 = vmul.f32 %v3938, 1.442695
    %v3940 = vpow.pop %v3939
    %v3941 = vadd.f32 %v3940, 1.0
    %v3942 = vrcp.pop %v3941
    %v3943 = vmul.f32 1.0, %v3942
    %v3944 = vtanh.pop %v3937
    %v3945 = vmul.f32 %v3943, %v3460
    %3947 = vrot.lane.b32.xlu0 %v3944, 64
    %v3948 = vpop.permute.xlu0 %3947
    %v3950 = vmul.f32 %v3943, %v3948
    %3952 = vrot.lane.b32.xlu0 %v3950, 32
    %v3953 = vpop.permute.xlu0 %3952
    %v3955 = vadd.f32 %v3945, %v3953
    %v3956 = vtanh.pop %v3955
    %3958 = vrot.lane.b32.xlu0 %v3956, 64
    %v3959 = vpop.permute.xlu0 %3958
    %v3961 = vmul.f32 %v3943, %v3959
    %3962 = vmatprep.subr.mxu0 0.0
    %3963 = vmatpush1.msra.mxu0 0.0
    %3964 = vmatprep.subr.mxu0 0.0
    %3965 = vmatpush1.msra.mxu0 0.0
    %3966 = vmatprep.subr.mxu0 0.0
    %3967 = vmatpush1.msra.mxu0 0.0
    %3968 = vmatprep.subr.mxu0 0.0
    %3969 = vmatpush1.msra.mxu0 0.0
    %3970 = vmatprep.subr.mxu0 0.0
    %3971 = vmatpush1.msra.mxu0 0.0
    %3972 = vmatprep.subr.mxu0 0.0
    %3973 = vmatpush1.msra.mxu0 0.0
    %3974 = vmatprep.subr.mxu0 0.0
    %3975 = vmatpush1.msra.mxu0 0.0
    %3976 = vmatprep.subr.mxu0 0.0
    %3977 = vmatpush1.msra.mxu0 0.0
    %3978 = vmatprep.subr.mxu0 0.0
    %3979 = vmatpush1.msra.mxu0 0.0
    %3980 = vmatprep.subr.mxu0 0.0
    %3981 = vmatpush1.msra.mxu0 0.0
    %3982 = vmatprep.subr.mxu0 0.0
    %3983 = vmatpush1.msra.mxu0 0.0
    %3984 = vmatprep.subr.mxu0 0.0
    %3985 = vmatpush1.msra.mxu0 0.0
    %3986 = vmatprep.subr.mxu0 0.0
    %3987 = vmatpush1.msra.mxu0 %v3107
    %3988 = vmatprep.subr.mxu0 0.0
    %3989 = vmatpush1.msra.mxu0 %v3106
    %3990 = vmatprep.subr.mxu0 0.0
    %3991 = vmatpush1.msra.mxu0 %v3105
    %3992 = vmatprep.subr.mxu0 0.0
    %3993 = vmatpush1.msra.mxu0 %v3104
    %3994 = vmatprep.subr.mxu0 0.0
    %3995 = vmatpush2.msra.mxu0 0.0
    %3996 = vmatprep.subr.mxu0 0.0
    %3997 = vmatpush2.msra.mxu0 0.0
    %3998 = vmatprep.subr.mxu0 0.0
    %3999 = vmatpush2.msra.mxu0 0.0
    %4000 = vmatprep.subr.mxu0 0.0
    %4001 = vmatpush2.msra.mxu0 0.0
    %4002 = vmatprep.subr.mxu0 0.0
    %4003 = vmatpush2.msra.mxu0 0.0
    %4004 = vmatprep.subr.mxu0 0.0
    %4005 = vmatpush2.msra.mxu0 0.0
    %4006 = vmatprep.subr.mxu0 0.0
    %4007 = vmatpush2.msra.mxu0 0.0
    %4008 = vmatprep.subr.mxu0 0.0
    %4009 = vmatpush2.msra.mxu0 0.0
    %4010 = vmatprep.subr.mxu0 0.0
    %4011 = vmatpush2.msra.mxu0 0.0
    %4012 = vmatprep.subr.mxu0 0.0
    %4013 = vmatpush2.msra.mxu0 0.0
    %4014 = vmatprep.subr.mxu0 0.0
    %4015 = vmatpush2.msra.mxu0 0.0
    %4016 = vmatprep.subr.mxu0 0.0
    %4017 = vmatpush2.msra.mxu0 0.0
    %4018 = vmatprep.subr.mxu0 0.0
    %4019 = vmatpush2.msra.mxu0 0.0
    %4020 = vmatprep.subr.mxu0 0.0
    %4021 = vmatpush2.msra.mxu0 0.0
    %4022 = vmatprep.subr.mxu0 0.0
    %4023 = vmatpush2.msra.mxu0 0.0
    %4024 = vmatprep.subr.mxu0 0.0
    %4025 = vmatpush2.msra.mxu0 0.0
    %4026 = vmatprep.mubr.f32.mxu0 0.0
    %4027 = vmatmul.mubr.f32.gmra.mxu0 %v3794
    %v4028 = vpop.f32.mrf.mxu0
    %v4029 = vadd.f32 0.0, %v4028
    %v4030 = vpop.f32.mrf.mxu0
    %4031 = vdwg.mxu0
    %v4032 = vadd.f32 %v3620, %v4029
    %4034 = vrot.lane.b32.xlu0 %v3961, 32
    %v4035 = vpop.permute.xlu0 %4034
    %v4036 = vsel %vm579, %v4035, 0
    %4038 = vmatprep.subr.mxu0 0.0
    %4039 = vmatpush1.msra.mxu0 0.0
    %4040 = vmatprep.subr.mxu0 0.0
    %4041 = vmatpush1.msra.mxu0 0.0
    %4042 = vmatprep.subr.mxu0 0.0
    %4043 = vmatpush1.msra.mxu0 0.0
    %4044 = vmatprep.subr.mxu0 0.0
    %4045 = vmatpush1.msra.mxu0 0.0
    %4046 = vmatprep.subr.mxu0 0.0
    %4047 = vmatpush1.msra.mxu0 0.0
    %4048 = vmatprep.subr.mxu0 0.0
    %4049 = vmatpush1.msra.mxu0 0.0
    %4050 = vmatprep.subr.mxu0 0.0
    %4051 = vmatpush1.msra.mxu0 0.0
    %4052 = vmatprep.subr.mxu0 0.0
    %4053 = vmatpush1.msra.mxu0 0.0
    %4054 = vmatprep.subr.mxu0 0.0
    %4055 = vmatpush1.msra.mxu0 0.0
    %4056 = vmatprep.subr.mxu0 0.0
    %4057 = vmatpush1.msra.mxu0 0.0
    %4058 = vmatprep.subr.mxu0 0.0
    %4059 = vmatpush1.msra.mxu0 0.0
    %4060 = vmatprep.subr.mxu0 0.0
    %4061 = vmatpush1.msra.mxu0 0.0
    %4062 = vmatprep.subr.mxu0 0.0
    %4063 = vmatpush1.msra.mxu0 %v3111
    %4064 = vmatprep.subr.mxu0 0.0
    %4065 = vmatpush1.msra.mxu0 %v3110
    %4066 = vmatprep.subr.mxu0 0.0
    %4067 = vmatpush1.msra.mxu0 %v3109
    %4068 = vmatprep.subr.mxu0 0.0
    %4069 = vmatpush1.msra.mxu0 %v3108
    %4070 = vmatprep.subr.mxu0 0.0
    %4071 = vmatpush2.msra.mxu0 0.0
    %4072 = vmatprep.subr.mxu0 0.0
    %4073 = vmatpush2.msra.mxu0 0.0
    %4074 = vmatprep.subr.mxu0 0.0
    %4075 = vmatpush2.msra.mxu0 0.0
    %4076 = vmatprep.subr.mxu0 0.0
    %4077 = vmatpush2.msra.mxu0 0.0
    %4078 = vmatprep.subr.mxu0 0.0
    %4079 = vmatpush2.msra.mxu0 0.0
    %4080 = vmatprep.subr.mxu0 0.0
    %4081 = vmatpush2.msra.mxu0 0.0
    %4082 = vmatprep.subr.mxu0 0.0
    %4083 = vmatpush2.msra.mxu0 0.0
    %4084 = vmatprep.subr.mxu0 0.0
    %4085 = vmatpush2.msra.mxu0 0.0
    %4086 = vmatprep.subr.mxu0 0.0
    %4087 = vmatpush2.msra.mxu0 0.0
    %4088 = vmatprep.subr.mxu0 0.0
    %4089 = vmatpush2.msra.mxu0 0.0
    %4090 = vmatprep.subr.mxu0 0.0
    %4091 = vmatpush2.msra.mxu0 0.0
    %4092 = vmatprep.subr.mxu0 0.0
    %4093 = vmatpush2.msra.mxu0 0.0
    %4094 = vmatprep.subr.mxu0 0.0
    %4095 = vmatpush2.msra.mxu0 0.0
    %4096 = vmatprep.subr.mxu0 0.0
    %4097 = vmatpush2.msra.mxu0 0.0
    %4098 = vmatprep.subr.mxu0 0.0
    %4099 = vmatpush2.msra.mxu0 0.0
    %4100 = vmatprep.subr.mxu0 0.0
    %4101 = vmatpush2.msra.mxu0 0.0
    %4102 = vmatprep.mubr.f32.mxu0 0.0
    %4103 = vmatmul.mubr.f32.gmra.mxu0 %v4036
    %v4104 = vpop.f32.mrf.mxu0
    %v4105 = vadd.f32 0.0, %v4104
    %v4106 = vpop.f32.mrf.mxu0
    %4107 = vdwg.mxu0
    %v4108 = vadd.f32 %v4032, %v4105
    %v4109 = vadd.f32 %v4108, %v3618
    %4111 = vrot.lane.b32.xlu0 %v4109, 3
    %v4112 = vpop.permute.xlu0 %4111
    %vm4114 = vcmask 42008
    %4115 = vst.msk [vmem:[%s27] sm:$0x3] %vm4114, %v4112
    %v4116 = vsel %vm296, %v4109, 0
    %4118 = vmatprep.subr.mxu0 0.0
    %4119 = vmatpush1.msra.mxu0 0.0
    %4120 = vmatprep.subr.mxu0 0.0
    %4121 = vmatpush1.msra.mxu0 0.0
    %4122 = vmatprep.subr.mxu0 0.0
    %4123 = vmatpush1.msra.mxu0 0.0
    %4124 = vmatprep.subr.mxu0 0.0
    %4125 = vmatpush1.msra.mxu0 0.0
    %4126 = vmatprep.subr.mxu0 0.0
    %4127 = vmatpush1.msra.mxu0 0.0
    %4128 = vmatprep.subr.mxu0 0.0
    %4129 = vmatpush1.msra.mxu0 0.0
    %4130 = vmatprep.subr.mxu0 0.0
    %4131 = vmatpush1.msra.mxu0 0.0
    %4132 = vmatprep.subr.mxu0 0.0
    %4133 = vmatpush1.msra.mxu0 0.0
    %4134 = vmatprep.subr.mxu0 0.0
    %4135 = vmatpush1.msra.mxu0 0.0
    %4136 = vmatprep.subr.mxu0 0.0
    %4137 = vmatpush1.msra.mxu0 0.0
    %4138 = vmatprep.subr.mxu0 0.0
    %4139 = vmatpush1.msra.mxu0 0.0
    %4140 = vmatprep.subr.mxu0 0.0
    %4141 = vmatpush1.msra.mxu0 0.0
    %4142 = vmatprep.subr.mxu0 0.0
    %4143 = vmatpush1.msra.mxu0 0.0
    %4144 = vmatprep.subr.mxu0 0.0
    %4145 = vmatpush1.msra.mxu0 0.0
    %4146 = vmatprep.subr.mxu0 0.0
    %4147 = vmatpush1.msra.mxu0 0.0
    %4148 = vmatprep.subr.mxu0 0.0
    %4149 = vmatpush1.msra.mxu0 %v3124
    %4150 = vmatprep.subr.mxu0 0.0
    %4151 = vmatpush2.msra.mxu0 0.0
    %4152 = vmatprep.subr.mxu0 0.0
    %4153 = vmatpush2.msra.mxu0 0.0
    %4154 = vmatprep.subr.mxu0 0.0
    %4155 = vmatpush2.msra.mxu0 0.0
    %4156 = vmatprep.subr.mxu0 0.0
    %4157 = vmatpush2.msra.mxu0 0.0
    %4158 = vmatprep.subr.mxu0 0.0
    %4159 = vmatpush2.msra.mxu0 0.0
    %4160 = vmatprep.subr.mxu0 0.0
    %4161 = vmatpush2.msra.mxu0 0.0
    %4162 = vmatprep.subr.mxu0 0.0
    %4163 = vmatpush2.msra.mxu0 0.0
    %4164 = vmatprep.subr.mxu0 0.0
    %4165 = vmatpush2.msra.mxu0 0.0
    %4166 = vmatprep.subr.mxu0 0.0
    %4167 = vmatpush2.msra.mxu0 0.0
    %4168 = vmatprep.subr.mxu0 0.0
    %4169 = vmatpush2.msra.mxu0 0.0
    %4170 = vmatprep.subr.mxu0 0.0
    %4171 = vmatpush2.msra.mxu0 0.0
    %4172 = vmatprep.subr.mxu0 0.0
    %4173 = vmatpush2.msra.mxu0 0.0
    %4174 = vmatprep.subr.mxu0 0.0
    %4175 = vmatpush2.msra.mxu0 0.0
    %4176 = vmatprep.subr.mxu0 0.0
    %4177 = vmatpush2.msra.mxu0 0.0
    %4178 = vmatprep.subr.mxu0 0.0
    %4179 = vmatpush2.msra.mxu0 0.0
    %4180 = vmatprep.subr.mxu0 0.0
    %4181 = vmatpush2.msra.mxu0 0.0
    %4182 = vmatprep.mubr.f32.mxu0 0.0
    %4183 = vmatmul.mubr.f32.gmra.mxu0 %v4116
    %v4184 = vpop.f32.mrf.mxu0
    %v4185 = vadd.f32 %v3118, %v4184
    %v4186 = vpop.f32.mrf.mxu0
    %4187 = vdwg.mxu0
    %4188 = vmatprep.subr.mxu0 0.0
    %4189 = vmatpush1.msra.mxu0 0.0
    %4190 = vmatprep.subr.mxu0 0.0
    %4191 = vmatpush1.msra.mxu0 0.0
    %4192 = vmatprep.subr.mxu0 0.0
    %4193 = vmatpush1.msra.mxu0 0.0
    %4194 = vmatprep.subr.mxu0 0.0
    %4195 = vmatpush1.msra.mxu0 0.0
    %4196 = vmatprep.subr.mxu0 0.0
    %4197 = vmatpush1.msra.mxu0 0.0
    %4198 = vmatprep.subr.mxu0 0.0
    %4199 = vmatpush1.msra.mxu0 0.0
    %4200 = vmatprep.subr.mxu0 0.0
    %4201 = vmatpush1.msra.mxu0 0.0
    %4202 = vmatprep.subr.mxu0 0.0
    %4203 = vmatpush1.msra.mxu0 0.0
    %4204 = vmatprep.subr.mxu0 0.0
    %4205 = vmatpush1.msra.mxu0 0.0
    %4206 = vmatprep.subr.mxu0 0.0
    %4207 = vmatpush1.msra.mxu0 0.0
    %4208 = vmatprep.subr.mxu0 0.0
    %4209 = vmatpush1.msra.mxu0 0.0
    %4210 = vmatprep.subr.mxu0 0.0
    %4211 = vmatpush1.msra.mxu0 0.0
    %4212 = vmatprep.subr.mxu0 0.0
    %4213 = vmatpush1.msra.mxu0 %v3094
    %4214 = vmatprep.subr.mxu0 0.0
    %4215 = vmatpush1.msra.mxu0 %v3093
    %4216 = vmatprep.subr.mxu0 0.0
    %4217 = vmatpush1.msra.mxu0 %v3092
    %4218 = vmatprep.subr.mxu0 0.0
    %4219 = vmatpush1.msra.mxu0 %v3091
    %4220 = vmatprep.subr.mxu0 0.0
    %4221 = vmatpush2.msra.mxu0 0.0
    %4222 = vmatprep.subr.mxu0 0.0
    %4223 = vmatpush2.msra.mxu0 0.0
    %4224 = vmatprep.subr.mxu0 0.0
    %4225 = vmatpush2.msra.mxu0 0.0
    %4226 = vmatprep.subr.mxu0 0.0
    %4227 = vmatpush2.msra.mxu0 0.0
    %4228 = vmatprep.subr.mxu0 0.0
    %4229 = vmatpush2.msra.mxu0 0.0
    %4230 = vmatprep.subr.mxu0 0.0
    %4231 = vmatpush2.msra.mxu0 0.0
    %4232 = vmatprep.subr.mxu0 0.0
    %4233 = vmatpush2.msra.mxu0 0.0
    %4234 = vmatprep.subr.mxu0 0.0
    %4235 = vmatpush2.msra.mxu0 0.0
    %4236 = vmatprep.subr.mxu0 0.0
    %4237 = vmatpush2.msra.mxu0 0.0
    %4238 = vmatprep.subr.mxu0 0.0
    %4239 = vmatpush2.msra.mxu0 0.0
    %4240 = vmatprep.subr.mxu0 0.0
    %4241 = vmatpush2.msra.mxu0 0.0
    %4242 = vmatprep.subr.mxu0 0.0
    %4243 = vmatpush2.msra.mxu0 0.0
    %4244 = vmatprep.subr.mxu0 0.0
    %4245 = vmatpush2.msra.mxu0 0.0
    %4246 = vmatprep.subr.mxu0 0.0
    %4247 = vmatpush2.msra.mxu0 0.0
    %4248 = vmatprep.subr.mxu0 0.0
    %4249 = vmatpush2.msra.mxu0 0.0
    %4250 = vmatprep.subr.mxu0 0.0
    %4251 = vmatpush2.msra.mxu0 0.0
    %4252 = vmatprep.mubr.f32.mxu0 0.0
    %4253 = vmatmul.mubr.f32.gmra.mxu0 %v3794
    %v4254 = vpop.f32.mrf.mxu0
    %v4255 = vadd.f32 0.0, %v4254
    %v4256 = vpop.f32.mrf.mxu0
    %4257 = vdwg.mxu0
    %v4258 = vadd.f32 %v4185, %v4255
    %v4259 = vxor.u32 %v4258, 2147483648
    %v4260 = vmul.f32 %v4259, 1.442695
    %v4261 = vpow.pop %v4260
    %v4262 = vadd.f32 %v4261, 1.0
    %v4263 = vrcp.pop %v4262
    %v4264 = vmul.f32 1.0, %v4263
    %v4265 = vtanh.pop %v4258
    %v4266 = vmul.f32 %v4264, %v3784
    %4268 = vrot.lane.b32.xlu0 %v4265, 64
    %v4269 = vpop.permute.xlu0 %4268
    %v4271 = vmul.f32 %v4264, %v4269
    %4273 = vrot.lane.b32.xlu0 %v4271, 32
    %v4274 = vpop.permute.xlu0 %4273
    %v4276 = vadd.f32 %v4266, %v4274
    %v4277 = vtanh.pop %v4276
    %4279 = vrot.lane.b32.xlu0 %v4277, 64
    %v4280 = vpop.permute.xlu0 %4279
    %v4282 = vmul.f32 %v4264, %v4280
    %4284 = vrot.lane.b32.xlu0 %v4282, 32
    %v4285 = vpop.permute.xlu0 %4284
    %v4286 = vsel %vm579, %v4285, 0
    %4288 = vmatprep.subr.mxu0 0.0
    %4289 = vmatpush1.msra.mxu0 0.0
    %4290 = vmatprep.subr.mxu0 0.0
    %4291 = vmatpush1.msra.mxu0 0.0
    %4292 = vmatprep.subr.mxu0 0.0
    %4293 = vmatpush1.msra.mxu0 0.0
    %4294 = vmatprep.subr.mxu0 0.0
    %4295 = vmatpush1.msra.mxu0 0.0
    %4296 = vmatprep.subr.mxu0 0.0
    %4297 = vmatpush1.msra.mxu0 0.0
    %4298 = vmatprep.subr.mxu0 0.0
    %4299 = vmatpush1.msra.mxu0 0.0
    %4300 = vmatprep.subr.mxu0 0.0
    %4301 = vmatpush1.msra.mxu0 0.0
    %4302 = vmatprep.subr.mxu0 0.0
    %4303 = vmatpush1.msra.mxu0 0.0
    %4304 = vmatprep.subr.mxu0 0.0
    %4305 = vmatpush1.msra.mxu0 0.0
    %4306 = vmatprep.subr.mxu0 0.0
    %4307 = vmatpush1.msra.mxu0 0.0
    %4308 = vmatprep.subr.mxu0 0.0
    %4309 = vmatpush1.msra.mxu0 0.0
    %4310 = vmatprep.subr.mxu0 0.0
    %4311 = vmatpush1.msra.mxu0 0.0
    %4312 = vmatprep.subr.mxu0 0.0
    %4313 = vmatpush1.msra.mxu0 %v3099
    %4314 = vmatprep.subr.mxu0 0.0
    %4315 = vmatpush1.msra.mxu0 %v3098
    %4316 = vmatprep.subr.mxu0 0.0
    %4317 = vmatpush1.msra.mxu0 %v3097
    %4318 = vmatprep.subr.mxu0 0.0
    %4319 = vmatpush1.msra.mxu0 %v3096
    %4320 = vmatprep.subr.mxu0 0.0
    %4321 = vmatpush2.msra.mxu0 0.0
    %4322 = vmatprep.subr.mxu0 0.0
    %4323 = vmatpush2.msra.mxu0 0.0
    %4324 = vmatprep.subr.mxu0 0.0
    %4325 = vmatpush2.msra.mxu0 0.0
    %4326 = vmatprep.subr.mxu0 0.0
    %4327 = vmatpush2.msra.mxu0 0.0
    %4328 = vmatprep.subr.mxu0 0.0
    %4329 = vmatpush2.msra.mxu0 0.0
    %4330 = vmatprep.subr.mxu0 0.0
    %4331 = vmatpush2.msra.mxu0 0.0
    %4332 = vmatprep.subr.mxu0 0.0
    %4333 = vmatpush2.msra.mxu0 0.0
    %4334 = vmatprep.subr.mxu0 0.0
    %4335 = vmatpush2.msra.mxu0 0.0
    %4336 = vmatprep.subr.mxu0 0.0
    %4337 = vmatpush2.msra.mxu0 0.0
    %4338 = vmatprep.subr.mxu0 0.0
    %4339 = vmatpush2.msra.mxu0 0.0
    %4340 = vmatprep.subr.mxu0 0.0
    %4341 = vmatpush2.msra.mxu0 0.0
    %4342 = vmatprep.subr.mxu0 0.0
    %4343 = vmatpush2.msra.mxu0 0.0
    %4344 = vmatprep.subr.mxu0 0.0
    %4345 = vmatpush2.msra.mxu0 0.0
    %4346 = vmatprep.subr.mxu0 0.0
    %4347 = vmatpush2.msra.mxu0 0.0
    %4348 = vmatprep.subr.mxu0 0.0
    %4349 = vmatpush2.msra.mxu0 0.0
    %4350 = vmatprep.subr.mxu0 0.0
    %4351 = vmatpush2.msra.mxu0 0.0
    %4352 = vmatprep.mubr.f32.mxu0 0.0
    %4353 = vmatmul.mubr.f32.gmra.mxu0 %v4286
    %v4354 = vpop.f32.mrf.mxu0
    %v4355 = vadd.f32 0.0, %v4354
    %v4356 = vpop.f32.mrf.mxu0
    %4357 = vdwg.mxu0
    %v4358 = vadd.f32 %v2914, %v4355
    %4359 = vmatprep.subr.mxu0 0.0
    %4360 = vmatpush1.msra.mxu0 0.0
    %4361 = vmatprep.subr.mxu0 0.0
    %4362 = vmatpush1.msra.mxu0 0.0
    %4363 = vmatprep.subr.mxu0 0.0
    %4364 = vmatpush1.msra.mxu0 0.0
    %4365 = vmatprep.subr.mxu0 0.0
    %4366 = vmatpush1.msra.mxu0 0.0
    %4367 = vmatprep.subr.mxu0 0.0
    %4368 = vmatpush1.msra.mxu0 0.0
    %4369 = vmatprep.subr.mxu0 0.0
    %4370 = vmatpush1.msra.mxu0 0.0
    %4371 = vmatprep.subr.mxu0 0.0
    %4372 = vmatpush1.msra.mxu0 0.0
    %4373 = vmatprep.subr.mxu0 0.0
    %4374 = vmatpush1.msra.mxu0 0.0
    %4375 = vmatprep.subr.mxu0 0.0
    %4376 = vmatpush1.msra.mxu0 0.0
    %4377 = vmatprep.subr.mxu0 0.0
    %4378 = vmatpush1.msra.mxu0 0.0
    %4379 = vmatprep.subr.mxu0 0.0
    %4380 = vmatpush1.msra.mxu0 0.0
    %4381 = vmatprep.subr.mxu0 0.0
    %4382 = vmatpush1.msra.mxu0 0.0
    %4383 = vmatprep.subr.mxu0 0.0
    %4384 = vmatpush1.msra.mxu0 %v3103
    %4385 = vmatprep.subr.mxu0 0.0
    %4386 = vmatpush1.msra.mxu0 %v3102
    %4387 = vmatprep.subr.mxu0 0.0
    %4388 = vmatpush1.msra.mxu0 %v3101
    %4389 = vmatprep.subr.mxu0 0.0
    %4390 = vmatpush1.msra.mxu0 %v3100
    %4391 = vmatprep.subr.mxu0 0.0
    %4392 = vmatpush2.msra.mxu0 0.0
    %4393 = vmatprep.subr.mxu0 0.0
    %4394 = vmatpush2.msra.mxu0 0.0
    %4395 = vmatprep.subr.mxu0 0.0
    %4396 = vmatpush2.msra.mxu0 0.0
    %4397 = vmatprep.subr.mxu0 0.0
    %4398 = vmatpush2.msra.mxu0 0.0
    %4399 = vmatprep.subr.mxu0 0.0
    %4400 = vmatpush2.msra.mxu0 0.0
    %4401 = vmatprep.subr.mxu0 0.0
    %4402 = vmatpush2.msra.mxu0 0.0
    %4403 = vmatprep.subr.mxu0 0.0
    %4404 = vmatpush2.msra.mxu0 0.0
    %4405 = vmatprep.subr.mxu0 0.0
    %4406 = vmatpush2.msra.mxu0 0.0
    %4407 = vmatprep.subr.mxu0 0.0
    %4408 = vmatpush2.msra.mxu0 0.0
    %4409 = vmatprep.subr.mxu0 0.0
    %4410 = vmatpush2.msra.mxu0 0.0
    %4411 = vmatprep.subr.mxu0 0.0
    %4412 = vmatpush2.msra.mxu0 0.0
    %4413 = vmatprep.subr.mxu0 0.0
    %4414 = vmatpush2.msra.mxu0 0.0
    %4415 = vmatprep.subr.mxu0 0.0
    %4416 = vmatpush2.msra.mxu0 0.0
    %4417 = vmatprep.subr.mxu0 0.0
    %4418 = vmatpush2.msra.mxu0 0.0
    %4419 = vmatprep.subr.mxu0 0.0
    %4420 = vmatpush2.msra.mxu0 0.0
    %4421 = vmatprep.subr.mxu0 0.0
    %4422 = vmatpush2.msra.mxu0 0.0
    %4423 = vmatprep.mubr.f32.mxu0 0.0
    %4424 = vmatmul.mubr.f32.gmra.mxu0 %v4036
    %v4425 = vpop.f32.mrf.mxu0
    %v4426 = vadd.f32 0.0, %v4425
    %v4427 = vpop.f32.mrf.mxu0
    %4428 = vdwg.mxu0
    %v4429 = vadd.f32 %v4358, %v4426
    %v4430 = vxor.u32 %v4429, 2147483648
    %v4431 = vmul.f32 %v4430, 1.442695
    %v4432 = vpow.pop %v4431
    %v4433 = vadd.f32 %v4432, 1.0
    %v4434 = vrcp.pop %v4433
    %v4435 = vmul.f32 1.0, %v4434
    %v4436 = vtanh.pop %v4429
    %v4437 = vmul.f32 %v4435, %v3955
    %4439 = vrot.lane.b32.xlu0 %v4436, 64
    %v4440 = vpop.permute.xlu0 %4439
    %v4442 = vmul.f32 %v4435, %v4440
    %4444 = vrot.lane.b32.xlu0 %v4442, 32
    %v4445 = vpop.permute.xlu0 %4444
    %v4447 = vadd.f32 %v4437, %v4445
    %v4448 = vtanh.pop %v4447
    %4450 = vrot.lane.b32.xlu0 %v4448, 64
    %v4451 = vpop.permute.xlu0 %4450
    %v4453 = vmul.f32 %v4435, %v4451
    %4454 = vmatprep.subr.mxu0 0.0
    %4455 = vmatpush1.msra.mxu0 0.0
    %4456 = vmatprep.subr.mxu0 0.0
    %4457 = vmatpush1.msra.mxu0 0.0
    %4458 = vmatprep.subr.mxu0 0.0
    %4459 = vmatpush1.msra.mxu0 0.0
    %4460 = vmatprep.subr.mxu0 0.0
    %4461 = vmatpush1.msra.mxu0 0.0
    %4462 = vmatprep.subr.mxu0 0.0
    %4463 = vmatpush1.msra.mxu0 0.0
    %4464 = vmatprep.subr.mxu0 0.0
    %4465 = vmatpush1.msra.mxu0 0.0
    %4466 = vmatprep.subr.mxu0 0.0
    %4467 = vmatpush1.msra.mxu0 0.0
    %4468 = vmatprep.subr.mxu0 0.0
    %4469 = vmatpush1.msra.mxu0 0.0
    %4470 = vmatprep.subr.mxu0 0.0
    %4471 = vmatpush1.msra.mxu0 0.0
    %4472 = vmatprep.subr.mxu0 0.0
    %4473 = vmatpush1.msra.mxu0 0.0
    %4474 = vmatprep.subr.mxu0 0.0
    %4475 = vmatpush1.msra.mxu0 0.0
    %4476 = vmatprep.subr.mxu0 0.0
    %4477 = vmatpush1.msra.mxu0 0.0
    %4478 = vmatprep.subr.mxu0 0.0
    %4479 = vmatpush1.msra.mxu0 %v3107
    %4480 = vmatprep.subr.mxu0 0.0
    %4481 = vmatpush1.msra.mxu0 %v3106
    %4482 = vmatprep.subr.mxu0 0.0
    %4483 = vmatpush1.msra.mxu0 %v3105
    %4484 = vmatprep.subr.mxu0 0.0
    %4485 = vmatpush1.msra.mxu0 %v3104
    %4486 = vmatprep.subr.mxu0 0.0
    %4487 = vmatpush2.msra.mxu0 0.0
    %4488 = vmatprep.subr.mxu0 0.0
    %4489 = vmatpush2.msra.mxu0 0.0
    %4490 = vmatprep.subr.mxu0 0.0
    %4491 = vmatpush2.msra.mxu0 0.0
    %4492 = vmatprep.subr.mxu0 0.0
    %4493 = vmatpush2.msra.mxu0 0.0
    %4494 = vmatprep.subr.mxu0 0.0
    %4495 = vmatpush2.msra.mxu0 0.0
    %4496 = vmatprep.subr.mxu0 0.0
    %4497 = vmatpush2.msra.mxu0 0.0
    %4498 = vmatprep.subr.mxu0 0.0
    %4499 = vmatpush2.msra.mxu0 0.0
    %4500 = vmatprep.subr.mxu0 0.0
    %4501 = vmatpush2.msra.mxu0 0.0
    %4502 = vmatprep.subr.mxu0 0.0
    %4503 = vmatpush2.msra.mxu0 0.0
    %4504 = vmatprep.subr.mxu0 0.0
    %4505 = vmatpush2.msra.mxu0 0.0
    %4506 = vmatprep.subr.mxu0 0.0
    %4507 = vmatpush2.msra.mxu0 0.0
    %4508 = vmatprep.subr.mxu0 0.0
    %4509 = vmatpush2.msra.mxu0 0.0
    %4510 = vmatprep.subr.mxu0 0.0
    %4511 = vmatpush2.msra.mxu0 0.0
    %4512 = vmatprep.subr.mxu0 0.0
    %4513 = vmatpush2.msra.mxu0 0.0
    %4514 = vmatprep.subr.mxu0 0.0
    %4515 = vmatpush2.msra.mxu0 0.0
    %4516 = vmatprep.subr.mxu0 0.0
    %4517 = vmatpush2.msra.mxu0 0.0
    %4518 = vmatprep.mubr.f32.mxu0 0.0
    %4519 = vmatmul.mubr.f32.gmra.mxu0 %v4286
    %v4520 = vpop.f32.mrf.mxu0
    %v4521 = vadd.f32 0.0, %v4520
    %v4522 = vpop.f32.mrf.mxu0
    %4523 = vdwg.mxu0
    %v4524 = vadd.f32 %v4109, %v4521
    %4526 = vrot.lane.b32.xlu0 %v4453, 32
    %v4527 = vpop.permute.xlu0 %4526
    %v4528 = vsel %vm579, %v4527, 0
    %4530 = vmatprep.subr.mxu0 0.0
    %4531 = vmatpush1.msra.mxu0 0.0
    %4532 = vmatprep.subr.mxu0 0.0
    %4533 = vmatpush1.msra.mxu0 0.0
    %4534 = vmatprep.subr.mxu0 0.0
    %4535 = vmatpush1.msra.mxu0 0.0
    %4536 = vmatprep.subr.mxu0 0.0
    %4537 = vmatpush1.msra.mxu0 0.0
    %4538 = vmatprep.subr.mxu0 0.0
    %4539 = vmatpush1.msra.mxu0 0.0
    %4540 = vmatprep.subr.mxu0 0.0
    %4541 = vmatpush1.msra.mxu0 0.0
    %4542 = vmatprep.subr.mxu0 0.0
    %4543 = vmatpush1.msra.mxu0 0.0
    %4544 = vmatprep.subr.mxu0 0.0
    %4545 = vmatpush1.msra.mxu0 0.0
    %4546 = vmatprep.subr.mxu0 0.0
    %4547 = vmatpush1.msra.mxu0 0.0
    %4548 = vmatprep.subr.mxu0 0.0
    %4549 = vmatpush1.msra.mxu0 0.0
    %4550 = vmatprep.subr.mxu0 0.0
    %4551 = vmatpush1.msra.mxu0 0.0
    %4552 = vmatprep.subr.mxu0 0.0
    %4553 = vmatpush1.msra.mxu0 0.0
    %4554 = vmatprep.subr.mxu0 0.0
    %4555 = vmatpush1.msra.mxu0 %v3111
    %4556 = vmatprep.subr.mxu0 0.0
    %4557 = vmatpush1.msra.mxu0 %v3110
    %4558 = vmatprep.subr.mxu0 0.0
    %4559 = vmatpush1.msra.mxu0 %v3109
    %4560 = vmatprep.subr.mxu0 0.0
    %4561 = vmatpush1.msra.mxu0 %v3108
    %4562 = vmatprep.subr.mxu0 0.0
    %4563 = vmatpush2.msra.mxu0 0.0
    %4564 = vmatprep.subr.mxu0 0.0
    %4565 = vmatpush2.msra.mxu0 0.0
    %4566 = vmatprep.subr.mxu0 0.0
    %4567 = vmatpush2.msra.mxu0 0.0
    %4568 = vmatprep.subr.mxu0 0.0
    %4569 = vmatpush2.msra.mxu0 0.0
    %4570 = vmatprep.subr.mxu0 0.0
    %4571 = vmatpush2.msra.mxu0 0.0
    %4572 = vmatprep.subr.mxu0 0.0
    %4573 = vmatpush2.msra.mxu0 0.0
    %4574 = vmatprep.subr.mxu0 0.0
    %4575 = vmatpush2.msra.mxu0 0.0
    %4576 = vmatprep.subr.mxu0 0.0
    %4577 = vmatpush2.msra.mxu0 0.0
    %4578 = vmatprep.subr.mxu0 0.0
    %4579 = vmatpush2.msra.mxu0 0.0
    %4580 = vmatprep.subr.mxu0 0.0
    %4581 = vmatpush2.msra.mxu0 0.0
    %4582 = vmatprep.subr.mxu0 0.0
    %4583 = vmatpush2.msra.mxu0 0.0
    %4584 = vmatprep.subr.mxu0 0.0
    %4585 = vmatpush2.msra.mxu0 0.0
    %4586 = vmatprep.subr.mxu0 0.0
    %4587 = vmatpush2.msra.mxu0 0.0
    %4588 = vmatprep.subr.mxu0 0.0
    %4589 = vmatpush2.msra.mxu0 0.0
    %4590 = vmatprep.subr.mxu0 0.0
    %4591 = vmatpush2.msra.mxu0 0.0
    %4592 = vmatprep.subr.mxu0 0.0
    %4593 = vmatpush2.msra.mxu0 0.0
    %4594 = vmatprep.mubr.f32.mxu0 0.0
    %4595 = vmatmul.mubr.f32.gmra.mxu0 %v4528
    %v4596 = vpop.f32.mrf.mxu0
    %v4597 = vadd.f32 0.0, %v4596
    %v4598 = vpop.f32.mrf.mxu0
    %4599 = vdwg.mxu0
    %v4600 = vadd.f32 %v4524, %v4597
    %v4601 = vadd.f32 %v4600, %v3618
    %4603 = vrot.lane.b32.xlu0 %v4601, 6
    %v4604 = vpop.permute.xlu0 %4603
    %vm4606 = vcmask 66608
    %4607 = vst.msk [vmem:[%s27] sm:$0x3] %vm4606, %v4604
    %v4608 = vsel %vm296, %v4601, 0
    %4610 = vmatprep.subr.mxu0 0.0
    %4611 = vmatpush1.msra.mxu0 0.0
    %4612 = vmatprep.subr.mxu0 0.0
    %4613 = vmatpush1.msra.mxu0 0.0
    %4614 = vmatprep.subr.mxu0 0.0
    %4615 = vmatpush1.msra.mxu0 0.0
    %4616 = vmatprep.subr.mxu0 0.0
    %4617 = vmatpush1.msra.mxu0 0.0
    %4618 = vmatprep.subr.mxu0 0.0
    %4619 = vmatpush1.msra.mxu0 0.0
    %4620 = vmatprep.subr.mxu0 0.0
    %4621 = vmatpush1.msra.mxu0 0.0
    %4622 = vmatprep.subr.mxu0 0.0
    %4623 = vmatpush1.msra.mxu0 0.0
    %4624 = vmatprep.subr.mxu0 0.0
    %4625 = vmatpush1.msra.mxu0 0.0
    %4626 = vmatprep.subr.mxu0 0.0
    %4627 = vmatpush1.msra.mxu0 0.0
    %4628 = vmatprep.subr.mxu0 0.0
    %4629 = vmatpush1.msra.mxu0 0.0
    %4630 = vmatprep.subr.mxu0 0.0
    %4631 = vmatpush1.msra.mxu0 0.0
    %4632 = vmatprep.subr.mxu0 0.0
    %4633 = vmatpush1.msra.mxu0 0.0
    %4634 = vmatprep.subr.mxu0 0.0
    %4635 = vmatpush1.msra.mxu0 0.0
    %4636 = vmatprep.subr.mxu0 0.0
    %4637 = vmatpush1.msra.mxu0 0.0
    %4638 = vmatprep.subr.mxu0 0.0
    %4639 = vmatpush1.msra.mxu0 0.0
    %4640 = vmatprep.subr.mxu0 0.0
    %4641 = vmatpush1.msra.mxu0 %v3124
    %4642 = vmatprep.subr.mxu0 0.0
    %4643 = vmatpush2.msra.mxu0 0.0
    %4644 = vmatprep.subr.mxu0 0.0
    %4645 = vmatpush2.msra.mxu0 0.0
    %4646 = vmatprep.subr.mxu0 0.0
    %4647 = vmatpush2.msra.mxu0 0.0
    %4648 = vmatprep.subr.mxu0 0.0
    %4649 = vmatpush2.msra.mxu0 0.0
    %4650 = vmatprep.subr.mxu0 0.0
    %4651 = vmatpush2.msra.mxu0 0.0
    %4652 = vmatprep.subr.mxu0 0.0
    %4653 = vmatpush2.msra.mxu0 0.0
    %4654 = vmatprep.subr.mxu0 0.0
    %4655 = vmatpush2.msra.mxu0 0.0
    %4656 = vmatprep.subr.mxu0 0.0
    %4657 = vmatpush2.msra.mxu0 0.0
    %4658 = vmatprep.subr.mxu0 0.0
    %4659 = vmatpush2.msra.mxu0 0.0
    %4660 = vmatprep.subr.mxu0 0.0
    %4661 = vmatpush2.msra.mxu0 0.0
    %4662 = vmatprep.subr.mxu0 0.0
    %4663 = vmatpush2.msra.mxu0 0.0
    %4664 = vmatprep.subr.mxu0 0.0
    %4665 = vmatpush2.msra.mxu0 0.0
    %4666 = vmatprep.subr.mxu0 0.0
    %4667 = vmatpush2.msra.mxu0 0.0
    %4668 = vmatprep.subr.mxu0 0.0
    %4669 = vmatpush2.msra.mxu0 0.0
    %4670 = vmatprep.subr.mxu0 0.0
    %4671 = vmatpush2.msra.mxu0 0.0
    %4672 = vmatprep.subr.mxu0 0.0
    %4673 = vmatpush2.msra.mxu0 0.0
    %4674 = vmatprep.mubr.f32.mxu0 0.0
    %4675 = vmatmul.mubr.f32.gmra.mxu0 %v4608
    %v4676 = vpop.f32.mrf.mxu0
    %v4677 = vadd.f32 %v3118, %v4676
    %v4678 = vpop.f32.mrf.mxu0
    %4679 = vdwg.mxu0
    %4680 = vmatprep.subr.mxu0 0.0
    %4681 = vmatpush1.msra.mxu0 0.0
    %4682 = vmatprep.subr.mxu0 0.0
    %4683 = vmatpush1.msra.mxu0 0.0
    %4684 = vmatprep.subr.mxu0 0.0
    %4685 = vmatpush1.msra.mxu0 0.0
    %4686 = vmatprep.subr.mxu0 0.0
    %4687 = vmatpush1.msra.mxu0 0.0
    %4688 = vmatprep.subr.mxu0 0.0
    %4689 = vmatpush1.msra.mxu0 0.0
    %4690 = vmatprep.subr.mxu0 0.0
    %4691 = vmatpush1.msra.mxu0 0.0
    %4692 = vmatprep.subr.mxu0 0.0
    %4693 = vmatpush1.msra.mxu0 0.0
    %4694 = vmatprep.subr.mxu0 0.0
    %4695 = vmatpush1.msra.mxu0 0.0
    %4696 = vmatprep.subr.mxu0 0.0
    %4697 = vmatpush1.msra.mxu0 0.0
    %4698 = vmatprep.subr.mxu0 0.0
    %4699 = vmatpush1.msra.mxu0 0.0
    %4700 = vmatprep.subr.mxu0 0.0
    %4701 = vmatpush1.msra.mxu0 0.0
    %4702 = vmatprep.subr.mxu0 0.0
    %4703 = vmatpush1.msra.mxu0 0.0
    %4704 = vmatprep.subr.mxu0 0.0
    %4705 = vmatpush1.msra.mxu0 %v3094
    %4706 = vmatprep.subr.mxu0 0.0
    %4707 = vmatpush1.msra.mxu0 %v3093
    %4708 = vmatprep.subr.mxu0 0.0
    %4709 = vmatpush1.msra.mxu0 %v3092
    %4710 = vmatprep.subr.mxu0 0.0
    %4711 = vmatpush1.msra.mxu0 %v3091
    %4712 = vmatprep.subr.mxu0 0.0
    %4713 = vmatpush2.msra.mxu0 0.0
    %4714 = vmatprep.subr.mxu0 0.0
    %4715 = vmatpush2.msra.mxu0 0.0
    %4716 = vmatprep.subr.mxu0 0.0
    %4717 = vmatpush2.msra.mxu0 0.0
    %4718 = vmatprep.subr.mxu0 0.0
    %4719 = vmatpush2.msra.mxu0 0.0
    %4720 = vmatprep.subr.mxu0 0.0
    %4721 = vmatpush2.msra.mxu0 0.0
    %4722 = vmatprep.subr.mxu0 0.0
    %4723 = vmatpush2.msra.mxu0 0.0
    %4724 = vmatprep.subr.mxu0 0.0
    %4725 = vmatpush2.msra.mxu0 0.0
    %4726 = vmatprep.subr.mxu0 0.0
    %4727 = vmatpush2.msra.mxu0 0.0
    %4728 = vmatprep.subr.mxu0 0.0
    %4729 = vmatpush2.msra.mxu0 0.0
    %4730 = vmatprep.subr.mxu0 0.0
    %4731 = vmatpush2.msra.mxu0 0.0
    %4732 = vmatprep.subr.mxu0 0.0
    %4733 = vmatpush2.msra.mxu0 0.0
    %4734 = vmatprep.subr.mxu0 0.0
    %4735 = vmatpush2.msra.mxu0 0.0
    %4736 = vmatprep.subr.mxu0 0.0
    %4737 = vmatpush2.msra.mxu0 0.0
    %4738 = vmatprep.subr.mxu0 0.0
    %4739 = vmatpush2.msra.mxu0 0.0
    %4740 = vmatprep.subr.mxu0 0.0
    %4741 = vmatpush2.msra.mxu0 0.0
    %4742 = vmatprep.subr.mxu0 0.0
    %4743 = vmatpush2.msra.mxu0 0.0
    %4744 = vmatprep.mubr.f32.mxu0 0.0
    %4745 = vmatmul.mubr.f32.gmra.mxu0 %v4286
    %v4746 = vpop.f32.mrf.mxu0
    %v4747 = vadd.f32 0.0, %v4746
    %v4748 = vpop.f32.mrf.mxu0
    %4749 = vdwg.mxu0
    %v4750 = vadd.f32 %v4677, %v4747
    %v4751 = vxor.u32 %v4750, 2147483648
    %v4752 = vmul.f32 %v4751, 1.442695
    %v4753 = vpow.pop %v4752
    %v4754 = vadd.f32 %v4753, 1.0
    %v4755 = vrcp.pop %v4754
    %v4756 = vmul.f32 1.0, %v4755
    %v4757 = vtanh.pop %v4750
    %v4758 = vmul.f32 %v4756, %v4276
    %4760 = vrot.lane.b32.xlu0 %v4757, 64
    %v4761 = vpop.permute.xlu0 %4760
    %v4763 = vmul.f32 %v4756, %v4761
    %4765 = vrot.lane.b32.xlu0 %v4763, 32
    %v4766 = vpop.permute.xlu0 %4765
    %v4768 = vadd.f32 %v4758, %v4766
    %v4769 = vtanh.pop %v4768
    %4771 = vrot.lane.b32.xlu0 %v4769, 64
    %v4772 = vpop.permute.xlu0 %4771
    %v4774 = vmul.f32 %v4756, %v4772
    %4776 = vrot.lane.b32.xlu0 %v4774, 32
    %v4777 = vpop.permute.xlu0 %4776
    %v4778 = vsel %vm579, %v4777, 0
    %4780 = vmatprep.subr.mxu0 0.0
    %4781 = vmatpush1.msra.mxu0 0.0
    %4782 = vmatprep.subr.mxu0 0.0
    %4783 = vmatpush1.msra.mxu0 0.0
    %4784 = vmatprep.subr.mxu0 0.0
    %4785 = vmatpush1.msra.mxu0 0.0
    %4786 = vmatprep.subr.mxu0 0.0
    %4787 = vmatpush1.msra.mxu0 0.0
    %4788 = vmatprep.subr.mxu0 0.0
    %4789 = vmatpush1.msra.mxu0 0.0
    %4790 = vmatprep.subr.mxu0 0.0
    %4791 = vmatpush1.msra.mxu0 0.0
    %4792 = vmatprep.subr.mxu0 0.0
    %4793 = vmatpush1.msra.mxu0 0.0
    %4794 = vmatprep.subr.mxu0 0.0
    %4795 = vmatpush1.msra.mxu0 0.0
    %4796 = vmatprep.subr.mxu0 0.0
    %4797 = vmatpush1.msra.mxu0 0.0
    %4798 = vmatprep.subr.mxu0 0.0
    %4799 = vmatpush1.msra.mxu0 0.0
    %4800 = vmatprep.subr.mxu0 0.0
    %4801 = vmatpush1.msra.mxu0 0.0
    %4802 = vmatprep.subr.mxu0 0.0
    %4803 = vmatpush1.msra.mxu0 0.0
    %4804 = vmatprep.subr.mxu0 0.0
    %4805 = vmatpush1.msra.mxu0 %v3099
    %4806 = vmatprep.subr.mxu0 0.0
    %4807 = vmatpush1.msra.mxu0 %v3098
    %4808 = vmatprep.subr.mxu0 0.0
    %4809 = vmatpush1.msra.mxu0 %v3097
    %4810 = vmatprep.subr.mxu0 0.0
    %4811 = vmatpush1.msra.mxu0 %v3096
    %4812 = vmatprep.subr.mxu0 0.0
    %4813 = vmatpush2.msra.mxu0 0.0
    %4814 = vmatprep.subr.mxu0 0.0
    %4815 = vmatpush2.msra.mxu0 0.0
    %4816 = vmatprep.subr.mxu0 0.0
    %4817 = vmatpush2.msra.mxu0 0.0
    %4818 = vmatprep.subr.mxu0 0.0
    %4819 = vmatpush2.msra.mxu0 0.0
    %4820 = vmatprep.subr.mxu0 0.0
    %4821 = vmatpush2.msra.mxu0 0.0
    %4822 = vmatprep.subr.mxu0 0.0
    %4823 = vmatpush2.msra.mxu0 0.0
    %4824 = vmatprep.subr.mxu0 0.0
    %4825 = vmatpush2.msra.mxu0 0.0
    %4826 = vmatprep.subr.mxu0 0.0
    %4827 = vmatpush2.msra.mxu0 0.0
    %4828 = vmatprep.subr.mxu0 0.0
    %4829 = vmatpush2.msra.mxu0 0.0
    %4830 = vmatprep.subr.mxu0 0.0
    %4831 = vmatpush2.msra.mxu0 0.0
    %4832 = vmatprep.subr.mxu0 0.0
    %4833 = vmatpush2.msra.mxu0 0.0
    %4834 = vmatprep.subr.mxu0 0.0
    %4835 = vmatpush2.msra.mxu0 0.0
    %4836 = vmatprep.subr.mxu0 0.0
    %4837 = vmatpush2.msra.mxu0 0.0
    %4838 = vmatprep.subr.mxu0 0.0
    %4839 = vmatpush2.msra.mxu0 0.0
    %4840 = vmatprep.subr.mxu0 0.0
    %4841 = vmatpush2.msra.mxu0 0.0
    %4842 = vmatprep.subr.mxu0 0.0
    %4843 = vmatpush2.msra.mxu0 0.0
    %4844 = vmatprep.mubr.f32.mxu0 0.0
    %4845 = vmatmul.mubr.f32.gmra.mxu0 %v4778
    %v4846 = vpop.f32.mrf.mxu0
    %v4847 = vadd.f32 0.0, %v4846
    %v4848 = vpop.f32.mrf.mxu0
    %4849 = vdwg.mxu0
    %v4850 = vadd.f32 %v3087, %v4847
    %4851 = vmatprep.subr.mxu0 0.0
    %4852 = vmatpush1.msra.mxu0 0.0
    %4853 = vmatprep.subr.mxu0 0.0
    %4854 = vmatpush1.msra.mxu0 0.0
    %4855 = vmatprep.subr.mxu0 0.0
    %4856 = vmatpush1.msra.mxu0 0.0
    %4857 = vmatprep.subr.mxu0 0.0
    %4858 = vmatpush1.msra.mxu0 0.0
    %4859 = vmatprep.subr.mxu0 0.0
    %4860 = vmatpush1.msra.mxu0 0.0
    %4861 = vmatprep.subr.mxu0 0.0
    %4862 = vmatpush1.msra.mxu0 0.0
    %4863 = vmatprep.subr.mxu0 0.0
    %4864 = vmatpush1.msra.mxu0 0.0
    %4865 = vmatprep.subr.mxu0 0.0
    %4866 = vmatpush1.msra.mxu0 0.0
    %4867 = vmatprep.subr.mxu0 0.0
    %4868 = vmatpush1.msra.mxu0 0.0
    %4869 = vmatprep.subr.mxu0 0.0
    %4870 = vmatpush1.msra.mxu0 0.0
    %4871 = vmatprep.subr.mxu0 0.0
    %4872 = vmatpush1.msra.mxu0 0.0
    %4873 = vmatprep.subr.mxu0 0.0
    %4874 = vmatpush1.msra.mxu0 0.0
    %4875 = vmatprep.subr.mxu0 0.0
    %4876 = vmatpush1.msra.mxu0 %v3103
    %4877 = vmatprep.subr.mxu0 0.0
    %4878 = vmatpush1.msra.mxu0 %v3102
    %4879 = vmatprep.subr.mxu0 0.0
    %4880 = vmatpush1.msra.mxu0 %v3101
    %4881 = vmatprep.subr.mxu0 0.0
    %4882 = vmatpush1.msra.mxu0 %v3100
    %4883 = vmatprep.subr.mxu0 0.0
    %4884 = vmatpush2.msra.mxu0 0.0
    %4885 = vmatprep.subr.mxu0 0.0
    %4886 = vmatpush2.msra.mxu0 0.0
    %4887 = vmatprep.subr.mxu0 0.0
    %4888 = vmatpush2.msra.mxu0 0.0
    %4889 = vmatprep.subr.mxu0 0.0
    %4890 = vmatpush2.msra.mxu0 0.0
    %4891 = vmatprep.subr.mxu0 0.0
    %4892 = vmatpush2.msra.mxu0 0.0
    %4893 = vmatprep.subr.mxu0 0.0
    %4894 = vmatpush2.msra.mxu0 0.0
    %4895 = vmatprep.subr.mxu0 0.0
    %4896 = vmatpush2.msra.mxu0 0.0
    %4897 = vmatprep.subr.mxu0 0.0
    %4898 = vmatpush2.msra.mxu0 0.0
    %4899 = vmatprep.subr.mxu0 0.0
    %4900 = vmatpush2.msra.mxu0 0.0
    %4901 = vmatprep.subr.mxu0 0.0
    %4902 = vmatpush2.msra.mxu0 0.0
    %4903 = vmatprep.subr.mxu0 0.0
    %4904 = vmatpush2.msra.mxu0 0.0
    %4905 = vmatprep.subr.mxu0 0.0
    %4906 = vmatpush2.msra.mxu0 0.0
    %4907 = vmatprep.subr.mxu0 0.0
    %4908 = vmatpush2.msra.mxu0 0.0
    %4909 = vmatprep.subr.mxu0 0.0
    %4910 = vmatpush2.msra.mxu0 0.0
    %4911 = vmatprep.subr.mxu0 0.0
    %4912 = vmatpush2.msra.mxu0 0.0
    %4913 = vmatprep.subr.mxu0 0.0
    %4914 = vmatpush2.msra.mxu0 0.0
    %4915 = vmatprep.mubr.f32.mxu0 0.0
    %4916 = vmatmul.mubr.f32.gmra.mxu0 %v4528
    %v4917 = vpop.f32.mrf.mxu0
    %v4918 = vadd.f32 0.0, %v4917
    %v4919 = vpop.f32.mrf.mxu0
    %4920 = vdwg.mxu0
    %v4921 = vadd.f32 %v4850, %v4918
    %v4922 = vxor.u32 %v4921, 2147483648
    %v4923 = vmul.f32 %v4922, 1.442695
    %v4924 = vpow.pop %v4923
    %v4925 = vadd.f32 %v4924, 1.0
    %v4926 = vrcp.pop %v4925
    %v4927 = vmul.f32 1.0, %v4926
    %v4928 = vtanh.pop %v4921
    %v4929 = vmul.f32 %v4927, %v4447
    %4931 = vrot.lane.b32.xlu0 %v4928, 64
    %v4932 = vpop.permute.xlu0 %4931
    %v4934 = vmul.f32 %v4927, %v4932
    %4936 = vrot.lane.b32.xlu0 %v4934, 32
    %v4937 = vpop.permute.xlu0 %4936
    %v4939 = vadd.f32 %v4929, %v4937
    %v4940 = vtanh.pop %v4939
    %4942 = vrot.lane.b32.xlu0 %v4940, 64
    %v4943 = vpop.permute.xlu0 %4942
    %v4945 = vmul.f32 %v4927, %v4943
    %4946 = vmatprep.subr.mxu0 0.0
    %4947 = vmatpush1.msra.mxu0 0.0
    %4948 = vmatprep.subr.mxu0 0.0
    %4949 = vmatpush1.msra.mxu0 0.0
    %4950 = vmatprep.subr.mxu0 0.0
    %4951 = vmatpush1.msra.mxu0 0.0
    %4952 = vmatprep.subr.mxu0 0.0
    %4953 = vmatpush1.msra.mxu0 0.0
    %4954 = vmatprep.subr.mxu0 0.0
    %4955 = vmatpush1.msra.mxu0 0.0
    %4956 = vmatprep.subr.mxu0 0.0
    %4957 = vmatpush1.msra.mxu0 0.0
    %4958 = vmatprep.subr.mxu0 0.0
    %4959 = vmatpush1.msra.mxu0 0.0
    %4960 = vmatprep.subr.mxu0 0.0
    %4961 = vmatpush1.msra.mxu0 0.0
    %4962 = vmatprep.subr.mxu0 0.0
    %4963 = vmatpush1.msra.mxu0 0.0
    %4964 = vmatprep.subr.mxu0 0.0
    %4965 = vmatpush1.msra.mxu0 0.0
    %4966 = vmatprep.subr.mxu0 0.0
    %4967 = vmatpush1.msra.mxu0 0.0
    %4968 = vmatprep.subr.mxu0 0.0
    %4969 = vmatpush1.msra.mxu0 0.0
    %4970 = vmatprep.subr.mxu0 0.0
    %4971 = vmatpush1.msra.mxu0 %v3107
    %4972 = vmatprep.subr.mxu0 0.0
    %4973 = vmatpush1.msra.mxu0 %v3106
    %4974 = vmatprep.subr.mxu0 0.0
    %4975 = vmatpush1.msra.mxu0 %v3105
    %4976 = vmatprep.subr.mxu0 0.0
    %4977 = vmatpush1.msra.mxu0 %v3104
    %4978 = vmatprep.subr.mxu0 0.0
    %4979 = vmatpush2.msra.mxu0 0.0
    %4980 = vmatprep.subr.mxu0 0.0
    %4981 = vmatpush2.msra.mxu0 0.0
    %4982 = vmatprep.subr.mxu0 0.0
    %4983 = vmatpush2.msra.mxu0 0.0
    %4984 = vmatprep.subr.mxu0 0.0
    %4985 = vmatpush2.msra.mxu0 0.0
    %4986 = vmatprep.subr.mxu0 0.0
    %4987 = vmatpush2.msra.mxu0 0.0
    %4988 = vmatprep.subr.mxu0 0.0
    %4989 = vmatpush2.msra.mxu0 0.0
    %4990 = vmatprep.subr.mxu0 0.0
    %4991 = vmatpush2.msra.mxu0 0.0
    %4992 = vmatprep.subr.mxu0 0.0
    %4993 = vmatpush2.msra.mxu0 0.0
    %4994 = vmatprep.subr.mxu0 0.0
    %4995 = vmatpush2.msra.mxu0 0.0
    %4996 = vmatprep.subr.mxu0 0.0
    %4997 = vmatpush2.msra.mxu0 0.0
    %4998 = vmatprep.subr.mxu0 0.0
    %4999 = vmatpush2.msra.mxu0 0.0
    %5000 = vmatprep.subr.mxu0 0.0
    %5001 = vmatpush2.msra.mxu0 0.0
    %5002 = vmatprep.subr.mxu0 0.0
    %5003 = vmatpush2.msra.mxu0 0.0
    %5004 = vmatprep.subr.mxu0 0.0
    %5005 = vmatpush2.msra.mxu0 0.0
    %5006 = vmatprep.subr.mxu0 0.0
    %5007 = vmatpush2.msra.mxu0 0.0
    %5008 = vmatprep.subr.mxu0 0.0
    %5009 = vmatpush2.msra.mxu0 0.0
    %5010 = vmatprep.mubr.f32.mxu0 0.0
    %5011 = vmatmul.mubr.f32.gmra.mxu0 %v4778
    %v5012 = vpop.f32.mrf.mxu0
    %v5013 = vadd.f32 0.0, %v5012
    %v5014 = vpop.f32.mrf.mxu0
    %5015 = vdwg.mxu0
    %v5016 = vadd.f32 %v4601, %v5013
    %5018 = vrot.lane.b32.xlu0 %v4945, 32
    %v5019 = vpop.permute.xlu0 %5018
    %v5020 = vsel %vm579, %v5019, 0
    %5022 = vmatprep.subr.mxu0 0.0
    %5023 = vmatpush1.msra.mxu0 0.0
    %5024 = vmatprep.subr.mxu0 0.0
    %5025 = vmatpush1.msra.mxu0 0.0
    %5026 = vmatprep.subr.mxu0 0.0
    %5027 = vmatpush1.msra.mxu0 0.0
    %5028 = vmatprep.subr.mxu0 0.0
    %5029 = vmatpush1.msra.mxu0 0.0
    %5030 = vmatprep.subr.mxu0 0.0
    %5031 = vmatpush1.msra.mxu0 0.0
    %5032 = vmatprep.subr.mxu0 0.0
    %5033 = vmatpush1.msra.mxu0 0.0
    %5034 = vmatprep.subr.mxu0 0.0
    %5035 = vmatpush1.msra.mxu0 0.0
    %5036 = vmatprep.subr.mxu0 0.0
    %5037 = vmatpush1.msra.mxu0 0.0
    %5038 = vmatprep.subr.mxu0 0.0
    %5039 = vmatpush1.msra.mxu0 0.0
    %5040 = vmatprep.subr.mxu0 0.0
    %5041 = vmatpush1.msra.mxu0 0.0
    %5042 = vmatprep.subr.mxu0 0.0
    %5043 = vmatpush1.msra.mxu0 0.0
    %5044 = vmatprep.subr.mxu0 0.0
    %5045 = vmatpush1.msra.mxu0 0.0
    %5046 = vmatprep.subr.mxu0 0.0
    %5047 = vmatpush1.msra.mxu0 %v3111
    %5048 = vmatprep.subr.mxu0 0.0
    %5049 = vmatpush1.msra.mxu0 %v3110
    %5050 = vmatprep.subr.mxu0 0.0
    %5051 = vmatpush1.msra.mxu0 %v3109
    %5052 = vmatprep.subr.mxu0 0.0
    %5053 = vmatpush1.msra.mxu0 %v3108
    %5054 = vmatprep.subr.mxu0 0.0
    %5055 = vmatpush2.msra.mxu0 0.0
    %5056 = vmatprep.subr.mxu0 0.0
    %5057 = vmatpush2.msra.mxu0 0.0
    %5058 = vmatprep.subr.mxu0 0.0
    %5059 = vmatpush2.msra.mxu0 0.0
    %5060 = vmatprep.subr.mxu0 0.0
    %5061 = vmatpush2.msra.mxu0 0.0
    %5062 = vmatprep.subr.mxu0 0.0
    %5063 = vmatpush2.msra.mxu0 0.0
    %5064 = vmatprep.subr.mxu0 0.0
    %5065 = vmatpush2.msra.mxu0 0.0
    %5066 = vmatprep.subr.mxu0 0.0
    %5067 = vmatpush2.msra.mxu0 0.0
    %5068 = vmatprep.subr.mxu0 0.0
    %5069 = vmatpush2.msra.mxu0 0.0
    %5070 = vmatprep.subr.mxu0 0.0
    %5071 = vmatpush2.msra.mxu0 0.0
    %5072 = vmatprep.subr.mxu0 0.0
    %5073 = vmatpush2.msra.mxu0 0.0
    %5074 = vmatprep.subr.mxu0 0.0
    %5075 = vmatpush2.msra.mxu0 0.0
    %5076 = vmatprep.subr.mxu0 0.0
    %5077 = vmatpush2.msra.mxu0 0.0
    %5078 = vmatprep.subr.mxu0 0.0
    %5079 = vmatpush2.msra.mxu0 0.0
    %5080 = vmatprep.subr.mxu0 0.0
    %5081 = vmatpush2.msra.mxu0 0.0
    %5082 = vmatprep.subr.mxu0 0.0
    %5083 = vmatpush2.msra.mxu0 0.0
    %5084 = vmatprep.subr.mxu0 0.0
    %5085 = vmatpush2.msra.mxu0 0.0
    %5086 = vmatprep.mubr.f32.mxu0 0.0
    %5087 = vmatmul.mubr.f32.gmra.mxu0 %v5020
    %v5088 = vpop.f32.mrf.mxu0
    %v5089 = vadd.f32 0.0, %v5088
    %v5090 = vpop.f32.mrf.mxu0
    %5091 = vdwg.mxu0
    %v5092 = vadd.f32 %v5016, %v5089
    %v5093 = vadd.f32 %v5092, %v3618
    %5095 = vrot.lane.b32.xlu0 %v5093, 9
    %v5096 = vpop.permute.xlu0 %5095
    %vm5098 = vcmask 91208
    %5099 = vst.msk [vmem:[%s27] sm:$0x3] %vm5098, %v5096
    // Predicated region
    $region174: #{track_res_forward.1} parent=1 // pred_check
      _
    $region175: #{track_res_forward.1} parent=1 // pred_check_branch
      %5101 = sbr.rel (0) target = $region177
    $region176: #{track_res_forward.1} parent=1 // pred_region
      _
    $region177: #{track_res_forward.1} parent=1 // pred_fallthru
      _
    // Predicated region
    $region178: #{track_res_forward.1} parent=1 // pred_check
      _
    $region179: #{track_res_forward.1} parent=1 // pred_check_branch
      %5103 = sbr.rel (0) target = $region181
    $region180: #{track_res_forward.1} parent=1 // pred_region
      _
    $region181: #{track_res_forward.1} parent=1 // pred_fallthru
      _
    %5104 = vsyncpa [#allocation3], 1
    %5105 = vsyncpa [#allocation5], 1
    %5106 = vsyncpa [#allocation8], 1
    %5107 = vsyncpa [#allocation11], 1
    %5108 = vsyncpa [#allocation14], 1
    %5109 = vsyncpa [#allocation17], 1
    %5110 = vsyncpa [#allocation20], 1
    %5111 = vsyncpa [#allocation23], 1
    %5112 = vsyncpa [#allocation26], 1

</llo_original>
